<compile_context>
chip_gen: v7x
topology: tpu7x:2x2x1
jax: 0.10.0
libtpu: 0.0.40
codegen_flags: <defaults>
</compile_context>

<pallas_src>
import functools
import math

import jax
import jax.numpy as jnp
from jax.experimental import pallas as pl
from jax.experimental.pallas import tpu as pltpu


# ---------------------------------------------------------------------------
# Mini-BERT config
# ---------------------------------------------------------------------------

CFG = dict(
    vocab_size=100,
    hidden=32,
    num_layers=2,
    num_heads=2,
    head_dim=16,
    intermediate=64,
    max_pos=16,
    num_labels=2,
)
LABEL_PAD = 128   # lane-dense padded classifier width (sliced back to 2 in JAX)


# ---------------------------------------------------------------------------
# Fused Pallas kernel: embeddings-LN -> encoder layers -> pooler -> classifier
# ---------------------------------------------------------------------------

def _layer_norm(h, g, b, eps):
    mu = jnp.mean(h, axis=-1, keepdims=True)
    var = jnp.mean(jnp.square(h - mu), axis=-1, keepdims=True)
    return (h - mu) * jax.lax.rsqrt(var + eps) * g + b


def _bf16_dot(a, w):
    # bf16 MXU inputs, f32 accumulation.
    return jnp.dot(a.astype(jnp.bfloat16), w.astype(jnp.bfloat16),
                   preferred_element_type=jnp.float32)


def _fused_bert_kernel(emb_ref, bias_ref, emb_ln_g, emb_ln_b,
                       wq, bq, wk, bk, wv, bv, wo, bo, ln1_g, ln1_b,
                       wi, bi, wout, bout, ln2_g, ln2_b,
                       pool_w, pool_b, cls_w, cls_b,
                       out_ref, *, batch, seq, num_layers, num_heads,
                       head_dim, eps):
    del head_dim  # folded into the per-head weight shapes

    # --- embedding LayerNorm over all packed rows (batch*seq, H) ---
    x = _layer_norm(emb_ref[...], emb_ln_g[...], emb_ln_b[...], eps)

    # --- per-example additive attention bias, broadcast once (hoisted) ---
    biases = [jnp.broadcast_to(bias_ref[b], (seq, seq)) for b in range(batch)]

    # --- encoder layers (unrolled; weights indexed by static layer/head id) ---
    for l in range(num_layers):
        x_bf = x.astype(jnp.bfloat16)                 # one cast, reused 3*nH times
        attn = None
        for h in range(num_heads):
            idx = l * num_heads + h
            # per-head projections over ALL packed rows: (B*S, H) x (H, Dh)
            # (1/sqrt(Dh) already folded into wq/bq on the JAX side)
            q = jnp.dot(x_bf, wq[idx], preferred_element_type=jnp.float32) + bq[idx]
            k = jnp.dot(x_bf, wk[idx], preferred_element_type=jnp.float32) + bk[idx]
            v = jnp.dot(x_bf, wv[idx], preferred_element_type=jnp.float32) + bv[idx]

            ctx = []
            for b in range(batch):                    # attention is per example
                r = b * seq                           # row-aligned (seq=8) slices
                qb = q[r:r + seq].astype(jnp.bfloat16)
                kb = k[r:r + seq].astype(jnp.bfloat16)
                vb = v[r:r + seq].astype(jnp.bfloat16)
                s = jax.lax.dot_general(
                    qb, kb, (((1,), (1,)), ((), ())),
                    preferred_element_type=jnp.float32) + biases[b]
                s = s - jnp.max(s, axis=-1, keepdims=True)
                p = jnp.exp(s)
                p = p * pl.reciprocal(jnp.sum(p, axis=-1, keepdims=True),
                                      approx=True)
                ctx.append(jnp.dot(p.astype(jnp.bfloat16), vb,
                                   preferred_element_type=jnp.float32))
            ctx = jnp.concatenate(ctx, axis=0) if batch > 1 else ctx[0]

            # per-head output projection accumulated in f32 (no lane concat)
            head_out = _bf16_dot(ctx, wo[idx])        # (B*S, H)
            attn = head_out if attn is None else attn + head_out

        x = _layer_norm(attn + bo[l] + x, ln1_g[l], ln1_b[l], eps)

        inter = _bf16_dot(x, wi[l]) + bi[l]           # (B*S, I)
        # TODO(synk): HF BERT uses exact erf-GELU; tanh approximation used here
        # (lowers cleanly to the TPU EUP).
        c = math.sqrt(2.0 / math.pi)
        inter = 0.5 * inter * (1.0 + jnp.tanh(
            c * (inter + 0.044715 * inter * inter * inter)))
        ff = _bf16_dot(inter, wout[l]) + bout[l]
        x = _layer_norm(ff + x, ln2_g[l], ln2_b[l], eps)

    # --- BERT pooler + classifier, evaluated on all packed rows; the CLS rows
    #     (every S-th row) are selected in JAX.  Dropout(p=0.1) eval -> identity.
    pooled = jnp.tanh(_bf16_dot(x, pool_w[...]) + pool_b[...])          # (B*S, H)
    logits = _bf16_dot(pooled, cls_w[...]) + cls_b[...]                 # (B*S, 128)
    out_ref[...] = logits.astype(out_ref.dtype)


# ---------------------------------------------------------------------------
# Parameter init (deterministic)
# ---------------------------------------------------------------------------

def init_params(key):
    def normal(key, shape, scale=0.02):
        return scale * jax.random.normal(key, shape, dtype=jnp.float32)

    keys = iter(jax.random.split(key, 128))
    H, I = CFG["hidden"], CFG["intermediate"]
    p = {
        "word_emb": normal(next(keys), (CFG["vocab_size"], H)),
        "pos_emb": normal(next(keys), (CFG["max_pos"], H)),
        "tok_emb": normal(next(keys), (2, H)),
        "emb_ln_g": jnp.ones((H,), jnp.float32),
        "emb_ln_b": jnp.zeros((H,), jnp.float32),
        "pool_w": normal(next(keys), (H, H)),
        "pool_b": jnp.zeros((H,), jnp.float32),
        "cls_w": normal(next(keys), (H, CFG["num_labels"])),
        "cls_b": jnp.zeros((CFG["num_labels"],), jnp.float32),
        "layers": [],
    }
    for _ in range(CFG["num_layers"]):
        p["layers"].append(dict(
            wq=normal(next(keys), (H, H)), bq=jnp.zeros((H,), jnp.float32),
            wk=normal(next(keys), (H, H)), bk=jnp.zeros((H,), jnp.float32),
            wv=normal(next(keys), (H, H)), bv=jnp.zeros((H,), jnp.float32),
            wo=normal(next(keys), (H, H)), bo=jnp.zeros((H,), jnp.float32),
            ln1_g=jnp.ones((H,), jnp.float32), ln1_b=jnp.zeros((H,), jnp.float32),
            wi=normal(next(keys), (H, I)), bi=jnp.zeros((I,), jnp.float32),
            wout=normal(next(keys), (I, H)), bout=jnp.zeros((H,), jnp.float32),
            ln2_g=jnp.ones((H,), jnp.float32), ln2_b=jnp.zeros((H,), jnp.float32),
        ))
    return p


# ---------------------------------------------------------------------------
# Forward pass (SentimentClassifier.forward)
# ---------------------------------------------------------------------------

def _stack(layers, name):
    return jnp.stack([lyr[name] for lyr in layers])


def _split_out_cols(w, nH, Dh):
    # (H, nH*Dh) -> (nH, H, Dh): head h uses output columns [h*Dh, (h+1)*Dh)
    H = w.shape[0]
    return jnp.transpose(w.reshape(H, nH, Dh), (1, 0, 2))


def sentiment_classifier_forward(params, input_ids, attention_mask,
                                 batch_blocks=1):
    B, S = input_ids.shape
    H, L = CFG["hidden"], CFG["num_layers"]
    I = CFG["intermediate"]
    nH, Dh = CFG["num_heads"], CFG["head_dim"]
    nL = CFG["num_labels"]
    assert B % batch_blocks == 0
    BT = B // batch_blocks          # examples per grid step (rows = BT*S)

    # --- embeddings (gather is glue; everything else is in the fused kernel) ---
    # TODO(synk): token_type_ids hardcoded to 0 (tok_emb[0]) as in the reference call.
    emb = (params["word_emb"][input_ids]
           + params["pos_emb"][None, :S, :]
           + params["tok_emb"][0][None, None, :]).astype(jnp.float32)
    emb = emb.reshape(B * S, H)                                         # packed rows
    bias = ((1.0 - attention_mask.astype(jnp.float32)) * -1e9).reshape(B, 1, S)

    layers = params["layers"]
    scale = 1.0 / math.sqrt(Dh)
    # per-head projection weights, (L*nH, H, Dh); softmax scale folded into Q
    wq = jnp.concatenate([_split_out_cols(l["wq"], nH, Dh) for l in layers], 0)
    wq = (wq * scale).astype(jnp.bfloat16)
    bq = jnp.concatenate([l["bq"].reshape(nH, 1, Dh) for l in layers], 0) * scale
    wk = jnp.concatenate([_split_out_cols(l["wk"], nH, Dh) for l in layers],
                         0).astype(jnp.bfloat16)
    bk = jnp.concatenate([l["bk"].reshape(nH, 1, Dh) for l in layers], 0)
    wv = jnp.concatenate([_split_out_cols(l["wv"], nH, Dh) for l in layers],
                         0).astype(jnp.bfloat16)
    bv = jnp.concatenate([l["bv"].reshape(nH, 1, Dh) for l in layers], 0)
    # per-head output projection rows, (L*nH, Dh, H)
    wo = jnp.concatenate([l["wo"].reshape(nH, Dh, H) for l in layers],
                         0).astype(jnp.bfloat16)
    bo = _stack(layers, "bo")[:, None, :]
    ln1_g = _stack(layers, "ln1_g")[:, None, :]
    ln1_b = _stack(layers, "ln1_b")[:, None, :]
    wi = _stack(layers, "wi").astype(jnp.bfloat16)
    bi = _stack(layers, "bi")[:, None, :]
    wout = _stack(layers, "wout").astype(jnp.bfloat16)
    bout = _stack(layers, "bout")[:, None, :]
    ln2_g = _stack(layers, "ln2_g")[:, None, :]
    ln2_b = _stack(layers, "ln2_b")[:, None, :]

    emb_ln_g = params["emb_ln_g"][None, :]
    emb_ln_b = params["emb_ln_b"][None, :]
    pool_w = params["pool_w"].astype(jnp.bfloat16)
    pool_b = params["pool_b"][None, :]
    # lane-dense padded classifier head (sliced back to num_labels in JAX)
    cls_w = jnp.zeros((H, LABEL_PAD), jnp.float32).at[:, :nL].set(params["cls_w"])
    cls_w = cls_w.astype(jnp.bfloat16)
    cls_b = jnp.zeros((1, LABEL_PAD), jnp.float32).at[0, :nL].set(params["cls_b"])

    kernel = functools.partial(
        _fused_bert_kernel,
        batch=BT, seq=S, num_layers=L, num_heads=nH, head_dim=Dh, eps=1e-12)

    def full(shape):
        n = len(shape)
        return pl.BlockSpec(shape, lambda i, n=n: (0,) * n)

    grid_spec = pltpu.PrefetchScalarGridSpec(
        num_scalar_prefetch=0,
        grid=(batch_blocks,),
        in_specs=[
            pl.BlockSpec((BT * S, H), lambda i: (i, 0)),          # packed embeddings
            pl.BlockSpec((BT, 1, S), lambda i: (i, 0, 0)),        # attention bias
            full((1, H)), full((1, H)),                           # emb LN
            full((L * nH, H, Dh)), full((L * nH, 1, Dh)),         # Q (scale folded)
            full((L * nH, H, Dh)), full((L * nH, 1, Dh)),         # K
            full((L * nH, H, Dh)), full((L * nH, 1, Dh)),         # V
            full((L * nH, Dh, H)), full((L, 1, H)),               # attn out proj
            full((L, 1, H)), full((L, 1, H)),                     # LN1
            full((L, H, I)), full((L, 1, I)),                     # FFN in
            full((L, I, H)), full((L, 1, H)),                     # FFN out
            full((L, 1, H)), full((L, 1, H)),                     # LN2
            full((H, H)), full((1, H)),                           # pooler
            full((H, LABEL_PAD)), full((1, LABEL_PAD)),           # classifier
        ],
        out_specs=pl.BlockSpec((BT * S, LABEL_PAD), lambda i: (i, 0)),
    )

    out = pl.pallas_call(
        kernel,
        out_shape=jax.ShapeDtypeStruct((B * S, LABEL_PAD), jnp.float32),
        grid_spec=grid_spec,
        compiler_params=pltpu.CompilerParams(
            dimension_semantics=("parallel",)),   # only matters if batch_blocks>1 (v7x)
    )(emb, bias, emb_ln_g, emb_ln_b,
      wq, bq, wk, bk, wv, bv, wo, bo, ln1_g, ln1_b,
      wi, bi, wout, bout, ln2_g, ln2_b,
      pool_w, pool_b, cls_w, cls_b)

    # CLS token is the first row of each example's packed block.
    return out[0::S, :nL]                                          # (B, num_labels)


# ---------------------------------------------------------------------------

if __name__ == "__main__":
    key = jax.random.PRNGKey(0)
    k_param, k_ids = jax.random.split(key)

    params = init_params(k_param)

    B, S = 2, 8
    input_ids = jax.random.randint(k_ids, (B, S), 0, CFG["vocab_size"],
                                   dtype=jnp.int32)
    attention_mask = jnp.array(
        [[1, 1, 1, 1, 1, 1, 1, 1],
         [1, 1, 1, 1, 1, 0, 0, 0]], dtype=jnp.int32)

    logits = sentiment_classifier_forward(params, input_ids, attention_mask)
    logits = jax.block_until_ready(logits)
    assert logits.shape == (B, CFG["num_labels"])
    assert bool(jnp.all(jnp.isfinite(logits)))
    print("KERNEL_OK")
</pallas_src>

<mosaic_0001>
module attributes {stable_mosaic.version = 11 : i64} {
  func.func @_fused_bert_kernel(%arg0: i32, %arg1: memref<16x32xf32, #tpu.memory_space<vmem>>, %arg2: memref<2x1x8xf32, #tpu.memory_space<vmem>>, %arg3: memref<1x32xf32, #tpu.memory_space<vmem>>, %arg4: memref<1x32xf32, #tpu.memory_space<vmem>>, %arg5: memref<4x32x16xbf16, #tpu.memory_space<vmem>>, %arg6: memref<4x1x16xf32, #tpu.memory_space<vmem>>, %arg7: memref<4x32x16xbf16, #tpu.memory_space<vmem>>, %arg8: memref<4x1x16xf32, #tpu.memory_space<vmem>>, %arg9: memref<4x32x16xbf16, #tpu.memory_space<vmem>>, %arg10: memref<4x1x16xf32, #tpu.memory_space<vmem>>, %arg11: memref<4x16x32xbf16, #tpu.memory_space<vmem>>, %arg12: memref<2x1x32xf32, #tpu.memory_space<vmem>>, %arg13: memref<2x1x32xf32, #tpu.memory_space<vmem>>, %arg14: memref<2x1x32xf32, #tpu.memory_space<vmem>>, %arg15: memref<2x32x64xbf16, #tpu.memory_space<vmem>>, %arg16: memref<2x1x64xf32, #tpu.memory_space<vmem>>, %arg17: memref<2x64x32xbf16, #tpu.memory_space<vmem>>, %arg18: memref<2x1x32xf32, #tpu.memory_space<vmem>>, %arg19: memref<2x1x32xf32, #tpu.memory_space<vmem>>, %arg20: memref<2x1x32xf32, #tpu.memory_space<vmem>>, %arg21: memref<32x32xbf16, #tpu.memory_space<vmem>>, %arg22: memref<1x32xf32, #tpu.memory_space<vmem>>, %arg23: memref<32x128xbf16, #tpu.memory_space<vmem>>, %arg24: memref<1x128xf32, #tpu.memory_space<vmem>>, %arg25: memref<16x128xf32, #tpu.memory_space<vmem>>) attributes {dimension_semantics = [#tpu.dimension_semantics<parallel>], iteration_bounds = array<i64: 1>, scalar_prefetch = 0 : i64, scratch_operands = 0 : i64, tpu.core_type = #tpu.core_type<tc>, window_params = [{transform_indices = @transform_0, window_bounds = array<i64: 16, 32>}, {transform_indices = @transform_1, window_bounds = array<i64: 2, 1, 8>}, {pipeline_mode = #tpu.pipeline_mode<synchronous>, transform_indices = @transform_2, window_bounds = array<i64: 1, 32>}, {pipeline_mode = #tpu.pipeline_mode<synchronous>, transform_indices = @transform_3, window_bounds = array<i64: 1, 32>}, {pipeline_mode = #tpu.pipeline_mode<synchronous>, transform_indices = @transform_4, window_bounds = array<i64: 4, 32, 16>}, {pipeline_mode = #tpu.pipeline_mode<synchronous>, transform_indices = @transform_5, window_bounds = array<i64: 4, 1, 16>}, {pipeline_mode = #tpu.pipeline_mode<synchronous>, transform_indices = @transform_6, window_bounds = array<i64: 4, 32, 16>}, {pipeline_mode = #tpu.pipeline_mode<synchronous>, transform_indices = @transform_7, window_bounds = array<i64: 4, 1, 16>}, {pipeline_mode = #tpu.pipeline_mode<synchronous>, transform_indices = @transform_8, window_bounds = array<i64: 4, 32, 16>}, {pipeline_mode = #tpu.pipeline_mode<synchronous>, transform_indices = @transform_9, window_bounds = array<i64: 4, 1, 16>}, {pipeline_mode = #tpu.pipeline_mode<synchronous>, transform_indices = @transform_10, window_bounds = array<i64: 4, 16, 32>}, {pipeline_mode = #tpu.pipeline_mode<synchronous>, transform_indices = @transform_11, window_bounds = array<i64: 2, 1, 32>}, {pipeline_mode = #tpu.pipeline_mode<synchronous>, transform_indices = @transform_12, window_bounds = array<i64: 2, 1, 32>}, {pipeline_mode = #tpu.pipeline_mode<synchronous>, transform_indices = @transform_13, window_bounds = array<i64: 2, 1, 32>}, {pipeline_mode = #tpu.pipeline_mode<synchronous>, transform_indices = @transform_14, window_bounds = array<i64: 2, 32, 64>}, {pipeline_mode = #tpu.pipeline_mode<synchronous>, transform_indices = @transform_15, window_bounds = array<i64: 2, 1, 64>}, {pipeline_mode = #tpu.pipeline_mode<synchronous>, transform_indices = @transform_16, window_bounds = array<i64: 2, 64, 32>}, {pipeline_mode = #tpu.pipeline_mode<synchronous>, transform_indices = @transform_17, window_bounds = array<i64: 2, 1, 32>}, {pipeline_mode = #tpu.pipeline_mode<synchronous>, transform_indices = @transform_18, window_bounds = array<i64: 2, 1, 32>}, {pipeline_mode = #tpu.pipeline_mode<synchronous>, transform_indices = @transform_19, window_bounds = array<i64: 2, 1, 32>}, {pipeline_mode = #tpu.pipeline_mode<synchronous>, transform_indices = @transform_20, window_bounds = array<i64: 32, 32>}, {pipeline_mode = #tpu.pipeline_mode<synchronous>, transform_indices = @transform_21, window_bounds = array<i64: 1, 32>}, {pipeline_mode = #tpu.pipeline_mode<synchronous>, transform_indices = @transform_22, window_bounds = array<i64: 32, 128>}, {pipeline_mode = #tpu.pipeline_mode<synchronous>, transform_indices = @transform_23, window_bounds = array<i64: 1, 128>}, {transform_indices = @transform_24, window_bounds = array<i64: 16, 128>}]} {
    %c0 = arith.constant 0 : index
    %c0_0 = arith.constant 0 : index
    %0 = vector.load %arg1[%c0, %c0_0] : memref<16x32xf32, #tpu.memory_space<vmem>>, vector<16x32xf32>
    %c0_1 = arith.constant 0 : index
    %c0_2 = arith.constant 0 : index
    %1 = vector.load %arg3[%c0_1, %c0_2] : memref<1x32xf32, #tpu.memory_space<vmem>>, vector<1x32xf32>
    %c0_3 = arith.constant 0 : index
    %c0_4 = arith.constant 0 : index
    %2 = vector.load %arg4[%c0_3, %c0_4] : memref<1x32xf32, #tpu.memory_space<vmem>>, vector<1x32xf32>
    %cst = arith.constant dense<0.000000e+00> : vector<16xf32>
    %3 = vector.multi_reduction <add>, %0, %cst [1] : vector<16x32xf32> to vector<16xf32>
    %4 = vector.shape_cast %3 : vector<16xf32> to vector<16x1xf32>
    %cst_5 = arith.constant 3.200000e+01 : f32
    %5 = vector.broadcast %cst_5 : f32 to vector<16x1xf32>
    %6 = arith.divf %4, %5 : vector<16x1xf32>
    %7 = vector.broadcast %6 : vector<16x1xf32> to vector<16x32xf32>
    %8 = arith.subf %0, %7 : vector<16x32xf32>
    %9 = arith.mulf %8, %8 : vector<16x32xf32>
    %cst_6 = arith.constant dense<0.000000e+00> : vector<16xf32>
    %10 = vector.multi_reduction <add>, %9, %cst_6 [1] : vector<16x32xf32> to vector<16xf32>
    %11 = vector.shape_cast %10 : vector<16xf32> to vector<16x1xf32>
    %cst_7 = arith.constant 3.200000e+01 : f32
    %12 = vector.broadcast %cst_7 : f32 to vector<16x1xf32>
    %13 = arith.divf %11, %12 : vector<16x1xf32>
    %14 = vector.broadcast %6 : vector<16x1xf32> to vector<16x32xf32>
    %15 = arith.subf %0, %14 : vector<16x32xf32>
    %cst_8 = arith.constant 9.99999996E-13 : f32
    %16 = vector.broadcast %cst_8 : f32 to vector<16x1xf32>
    %17 = arith.addf %13, %16 : vector<16x1xf32>
    %18 = math.rsqrt %17 : vector<16x1xf32>
    %19 = vector.broadcast %18 : vector<16x1xf32> to vector<16x32xf32>
    %20 = arith.mulf %15, %19 : vector<16x32xf32>
    %21 = vector.broadcast %1 : vector<1x32xf32> to vector<16x32xf32>
    %22 = arith.mulf %20, %21 : vector<16x32xf32>
    %23 = vector.broadcast %2 : vector<1x32xf32> to vector<16x32xf32>
    %24 = arith.addf %22, %23 : vector<16x32xf32>
    %c0_9 = arith.constant 0 : index
    %c0_10 = arith.constant 0 : index
    %c0_11 = arith.constant 0 : index
    %25 = vector.load %arg2[%c0_9, %c0_10, %c0_11] : memref<2x1x8xf32, #tpu.memory_space<vmem>>, vector<1x1x8xf32>
    %26 = vector.shape_cast %25 : vector<1x1x8xf32> to vector<1x8xf32>
    %27 = vector.shape_cast %26 : vector<1x8xf32> to vector<1x8xf32>
    %28 = vector.broadcast %27 : vector<1x8xf32> to vector<8x8xf32>
    %c1 = arith.constant 1 : index
    %c0_12 = arith.constant 0 : index
    %c0_13 = arith.constant 0 : index
    %29 = vector.load %arg2[%c1, %c0_12, %c0_13] : memref<2x1x8xf32, #tpu.memory_space<vmem>>, vector<1x1x8xf32>
    %30 = vector.shape_cast %29 : vector<1x1x8xf32> to vector<1x8xf32>
    %31 = vector.shape_cast %30 : vector<1x8xf32> to vector<1x8xf32>
    %32 = vector.broadcast %31 : vector<1x8xf32> to vector<8x8xf32>
    %33 = arith.truncf %24 : vector<16x32xf32> to vector<16x32xbf16>
    %c0_14 = arith.constant 0 : index
    %c0_15 = arith.constant 0 : index
    %c0_16 = arith.constant 0 : index
    %34 = vector.load %arg5[%c0_14, %c0_15, %c0_16] : memref<4x32x16xbf16, #tpu.memory_space<vmem>>, vector<1x32x16xbf16>
    %35 = vector.shape_cast %34 : vector<1x32x16xbf16> to vector<32x16xbf16>
    %cst_17 = arith.constant dense<0.000000e+00> : vector<16x16xf32>
    %36 = tpu.matmul %33, %35, %cst_17 {dimension_numbers = #tpu.dot_dimension_numbers<[1], [0], [0], [1], [0, 0, 1, 1], [], []>} : vector<16x32xbf16>, vector<32x16xbf16>, vector<16x16xf32> -> vector<16x16xf32>
    %c0_18 = arith.constant 0 : index
    %c0_19 = arith.constant 0 : index
    %c0_20 = arith.constant 0 : index
    %37 = vector.load %arg6[%c0_18, %c0_19, %c0_20] : memref<4x1x16xf32, #tpu.memory_space<vmem>>, vector<1x1x16xf32>
    %38 = vector.shape_cast %37 : vector<1x1x16xf32> to vector<1x16xf32>
    %39 = vector.broadcast %38 : vector<1x16xf32> to vector<16x16xf32>
    %40 = arith.addf %36, %39 : vector<16x16xf32>
    %c0_21 = arith.constant 0 : index
    %c0_22 = arith.constant 0 : index
    %c0_23 = arith.constant 0 : index
    %41 = vector.load %arg7[%c0_21, %c0_22, %c0_23] : memref<4x32x16xbf16, #tpu.memory_space<vmem>>, vector<1x32x16xbf16>
    %42 = vector.shape_cast %41 : vector<1x32x16xbf16> to vector<32x16xbf16>
    %cst_24 = arith.constant dense<0.000000e+00> : vector<16x16xf32>
    %43 = tpu.matmul %33, %42, %cst_24 {dimension_numbers = #tpu.dot_dimension_numbers<[1], [0], [0], [1], [0, 0, 1, 1], [], []>} : vector<16x32xbf16>, vector<32x16xbf16>, vector<16x16xf32> -> vector<16x16xf32>
    %c0_25 = arith.constant 0 : index
    %c0_26 = arith.constant 0 : index
    %c0_27 = arith.constant 0 : index
    %44 = vector.load %arg8[%c0_25, %c0_26, %c0_27] : memref<4x1x16xf32, #tpu.memory_space<vmem>>, vector<1x1x16xf32>
    %45 = vector.shape_cast %44 : vector<1x1x16xf32> to vector<1x16xf32>
    %46 = vector.broadcast %45 : vector<1x16xf32> to vector<16x16xf32>
    %47 = arith.addf %43, %46 : vector<16x16xf32>
    %c0_28 = arith.constant 0 : index
    %c0_29 = arith.constant 0 : index
    %c0_30 = arith.constant 0 : index
    %48 = vector.load %arg9[%c0_28, %c0_29, %c0_30] : memref<4x32x16xbf16, #tpu.memory_space<vmem>>, vector<1x32x16xbf16>
    %49 = vector.shape_cast %48 : vector<1x32x16xbf16> to vector<32x16xbf16>
    %cst_31 = arith.constant dense<0.000000e+00> : vector<16x16xf32>
    %50 = tpu.matmul %33, %49, %cst_31 {dimension_numbers = #tpu.dot_dimension_numbers<[1], [0], [0], [1], [0, 0, 1, 1], [], []>} : vector<16x32xbf16>, vector<32x16xbf16>, vector<16x16xf32> -> vector<16x16xf32>
    %c0_32 = arith.constant 0 : index
    %c0_33 = arith.constant 0 : index
    %c0_34 = arith.constant 0 : index
    %51 = vector.load %arg10[%c0_32, %c0_33, %c0_34] : memref<4x1x16xf32, #tpu.memory_space<vmem>>, vector<1x1x16xf32>
    %52 = vector.shape_cast %51 : vector<1x1x16xf32> to vector<1x16xf32>
    %53 = vector.broadcast %52 : vector<1x16xf32> to vector<16x16xf32>
    %54 = arith.addf %50, %53 : vector<16x16xf32>
    %55 = vector.extract_strided_slice %40 {offsets = [0, 0], sizes = [8, 16], strides = [1, 1]} : vector<16x16xf32> to vector<8x16xf32>
    %56 = arith.truncf %55 : vector<8x16xf32> to vector<8x16xbf16>
    %57 = vector.extract_strided_slice %47 {offsets = [0, 0], sizes = [8, 16], strides = [1, 1]} : vector<16x16xf32> to vector<8x16xf32>
    %58 = arith.truncf %57 : vector<8x16xf32> to vector<8x16xbf16>
    %59 = vector.extract_strided_slice %54 {offsets = [0, 0], sizes = [8, 16], strides = [1, 1]} : vector<16x16xf32> to vector<8x16xf32>
    %60 = arith.truncf %59 : vector<8x16xf32> to vector<8x16xbf16>
    %cst_35 = arith.constant dense<0.000000e+00> : vector<8x8xf32>
    %61 = tpu.matmul %56, %58, %cst_35 {dimension_numbers = #tpu.dot_dimension_numbers<[1], [1], [0], [0], [0, 0, 1, 0], [], []>} : vector<8x16xbf16>, vector<8x16xbf16>, vector<8x8xf32> -> vector<8x8xf32>
    %62 = arith.addf %61, %28 : vector<8x8xf32>
    %cst_36 = arith.constant dense<0xFF800000> : vector<8xf32>
    %63 = vector.multi_reduction <maximumf>, %62, %cst_36 [1] : vector<8x8xf32> to vector<8xf32>
    %64 = vector.shape_cast %63 : vector<8xf32> to vector<8x1xf32>
    %65 = vector.broadcast %64 : vector<8x1xf32> to vector<8x8xf32>
    %66 = arith.subf %62, %65 : vector<8x8xf32>
    %67 = math.exp %66 : vector<8x8xf32>
    %cst_37 = arith.constant dense<0.000000e+00> : vector<8xf32>
    %68 = vector.multi_reduction <add>, %67, %cst_37 [1] : vector<8x8xf32> to vector<8xf32>
    %69 = vector.shape_cast %68 : vector<8xf32> to vector<8x1xf32>
    %70 = tpu.reciprocal %69 {approx = true} : vector<8x1xf32> -> vector<8x1xf32>
    %71 = vector.broadcast %70 : vector<8x1xf32> to vector<8x8xf32>
    %72 = arith.mulf %67, %71 : vector<8x8xf32>
    %73 = arith.truncf %72 : vector<8x8xf32> to vector<8x8xbf16>
    %cst_38 = arith.constant dense<0.000000e+00> : vector<8x16xf32>
    %74 = tpu.matmul %73, %60, %cst_38 {dimension_numbers = #tpu.dot_dimension_numbers<[1], [0], [0], [1], [0, 0, 1, 1], [], []>} : vector<8x8xbf16>, vector<8x16xbf16>, vector<8x16xf32> -> vector<8x16xf32>
    %75 = vector.extract_strided_slice %40 {offsets = [8, 0], sizes = [8, 16], strides = [1, 1]} : vector<16x16xf32> to vector<8x16xf32>
    %76 = arith.truncf %75 : vector<8x16xf32> to vector<8x16xbf16>
    %77 = vector.extract_strided_slice %47 {offsets = [8, 0], sizes = [8, 16], strides = [1, 1]} : vector<16x16xf32> to vector<8x16xf32>
    %78 = arith.truncf %77 : vector<8x16xf32> to vector<8x16xbf16>
    %79 = vector.extract_strided_slice %54 {offsets = [8, 0], sizes = [8, 16], strides = [1, 1]} : vector<16x16xf32> to vector<8x16xf32>
    %80 = arith.truncf %79 : vector<8x16xf32> to vector<8x16xbf16>
    %cst_39 = arith.constant dense<0.000000e+00> : vector<8x8xf32>
    %81 = tpu.matmul %76, %78, %cst_39 {dimension_numbers = #tpu.dot_dimension_numbers<[1], [1], [0], [0], [0, 0, 1, 0], [], []>} : vector<8x16xbf16>, vector<8x16xbf16>, vector<8x8xf32> -> vector<8x8xf32>
    %82 = arith.addf %81, %32 : vector<8x8xf32>
    %cst_40 = arith.constant dense<0xFF800000> : vector<8xf32>
    %83 = vector.multi_reduction <maximumf>, %82, %cst_40 [1] : vector<8x8xf32> to vector<8xf32>
    %84 = vector.shape_cast %83 : vector<8xf32> to vector<8x1xf32>
    %85 = vector.broadcast %84 : vector<8x1xf32> to vector<8x8xf32>
    %86 = arith.subf %82, %85 : vector<8x8xf32>
    %87 = math.exp %86 : vector<8x8xf32>
    %cst_41 = arith.constant dense<0.000000e+00> : vector<8xf32>
    %88 = vector.multi_reduction <add>, %87, %cst_41 [1] : vector<8x8xf32> to vector<8xf32>
    %89 = vector.shape_cast %88 : vector<8xf32> to vector<8x1xf32>
    %90 = tpu.reciprocal %89 {approx = true} : vector<8x1xf32> -> vector<8x1xf32>
    %91 = vector.broadcast %90 : vector<8x1xf32> to vector<8x8xf32>
    %92 = arith.mulf %87, %91 : vector<8x8xf32>
    %93 = arith.truncf %92 : vector<8x8xf32> to vector<8x8xbf16>
    %cst_42 = arith.constant dense<0.000000e+00> : vector<8x16xf32>
    %94 = tpu.matmul %93, %80, %cst_42 {dimension_numbers = #tpu.dot_dimension_numbers<[1], [0], [0], [1], [0, 0, 1, 1], [], []>} : vector<8x8xbf16>, vector<8x16xbf16>, vector<8x16xf32> -> vector<8x16xf32>
    %95 = tpu.concatenate %74, %94 in 0 : vector<8x16xf32>, vector<8x16xf32> -> vector<16x16xf32>
    %c0_43 = arith.constant 0 : index
    %c0_44 = arith.constant 0 : index
    %c0_45 = arith.constant 0 : index
    %96 = vector.load %arg11[%c0_43, %c0_44, %c0_45] : memref<4x16x32xbf16, #tpu.memory_space<vmem>>, vector<1x16x32xbf16>
    %97 = vector.shape_cast %96 : vector<1x16x32xbf16> to vector<16x32xbf16>
    %98 = arith.truncf %95 : vector<16x16xf32> to vector<16x16xbf16>
    %cst_46 = arith.constant dense<0.000000e+00> : vector<16x32xf32>
    %99 = tpu.matmul %98, %97, %cst_46 {dimension_numbers = #tpu.dot_dimension_numbers<[1], [0], [0], [1], [0, 0, 1, 1], [], []>} : vector<16x16xbf16>, vector<16x32xbf16>, vector<16x32xf32> -> vector<16x32xf32>
    %c1_47 = arith.constant 1 : index
    %c0_48 = arith.constant 0 : index
    %c0_49 = arith.constant 0 : index
    %100 = vector.load %arg5[%c1_47, %c0_48, %c0_49] : memref<4x32x16xbf16, #tpu.memory_space<vmem>>, vector<1x32x16xbf16>
    %101 = vector.shape_cast %100 : vector<1x32x16xbf16> to vector<32x16xbf16>
    %cst_50 = arith.constant dense<0.000000e+00> : vector<16x16xf32>
    %102 = tpu.matmul %33, %101, %cst_50 {dimension_numbers = #tpu.dot_dimension_numbers<[1], [0], [0], [1], [0, 0, 1, 1], [], []>} : vector<16x32xbf16>, vector<32x16xbf16>, vector<16x16xf32> -> vector<16x16xf32>
    %c1_51 = arith.constant 1 : index
    %c0_52 = arith.constant 0 : index
    %c0_53 = arith.constant 0 : index
    %103 = vector.load %arg6[%c1_51, %c0_52, %c0_53] : memref<4x1x16xf32, #tpu.memory_space<vmem>>, vector<1x1x16xf32>
    %104 = vector.shape_cast %103 : vector<1x1x16xf32> to vector<1x16xf32>
    %105 = vector.broadcast %104 : vector<1x16xf32> to vector<16x16xf32>
    %106 = arith.addf %102, %105 : vector<16x16xf32>
    %c1_54 = arith.constant 1 : index
    %c0_55 = arith.constant 0 : index
    %c0_56 = arith.constant 0 : index
    %107 = vector.load %arg7[%c1_54, %c0_55, %c0_56] : memref<4x32x16xbf16, #tpu.memory_space<vmem>>, vector<1x32x16xbf16>
    %108 = vector.shape_cast %107 : vector<1x32x16xbf16> to vector<32x16xbf16>
    %cst_57 = arith.constant dense<0.000000e+00> : vector<16x16xf32>
    %109 = tpu.matmul %33, %108, %cst_57 {dimension_numbers = #tpu.dot_dimension_numbers<[1], [0], [0], [1], [0, 0, 1, 1], [], []>} : vector<16x32xbf16>, vector<32x16xbf16>, vector<16x16xf32> -> vector<16x16xf32>
    %c1_58 = arith.constant 1 : index
    %c0_59 = arith.constant 0 : index
    %c0_60 = arith.constant 0 : index
    %110 = vector.load %arg8[%c1_58, %c0_59, %c0_60] : memref<4x1x16xf32, #tpu.memory_space<vmem>>, vector<1x1x16xf32>
    %111 = vector.shape_cast %110 : vector<1x1x16xf32> to vector<1x16xf32>
    %112 = vector.broadcast %111 : vector<1x16xf32> to vector<16x16xf32>
    %113 = arith.addf %109, %112 : vector<16x16xf32>
    %c1_61 = arith.constant 1 : index
    %c0_62 = arith.constant 0 : index
    %c0_63 = arith.constant 0 : index
    %114 = vector.load %arg9[%c1_61, %c0_62, %c0_63] : memref<4x32x16xbf16, #tpu.memory_space<vmem>>, vector<1x32x16xbf16>
    %115 = vector.shape_cast %114 : vector<1x32x16xbf16> to vector<32x16xbf16>
    %cst_64 = arith.constant dense<0.000000e+00> : vector<16x16xf32>
    %116 = tpu.matmul %33, %115, %cst_64 {dimension_numbers = #tpu.dot_dimension_numbers<[1], [0], [0], [1], [0, 0, 1, 1], [], []>} : vector<16x32xbf16>, vector<32x16xbf16>, vector<16x16xf32> -> vector<16x16xf32>
    %c1_65 = arith.constant 1 : index
    %c0_66 = arith.constant 0 : index
    %c0_67 = arith.constant 0 : index
    %117 = vector.load %arg10[%c1_65, %c0_66, %c0_67] : memref<4x1x16xf32, #tpu.memory_space<vmem>>, vector<1x1x16xf32>
    %118 = vector.shape_cast %117 : vector<1x1x16xf32> to vector<1x16xf32>
    %119 = vector.broadcast %118 : vector<1x16xf32> to vector<16x16xf32>
    %120 = arith.addf %116, %119 : vector<16x16xf32>
    %121 = vector.extract_strided_slice %106 {offsets = [0, 0], sizes = [8, 16], strides = [1, 1]} : vector<16x16xf32> to vector<8x16xf32>
    %122 = arith.truncf %121 : vector<8x16xf32> to vector<8x16xbf16>
    %123 = vector.extract_strided_slice %113 {offsets = [0, 0], sizes = [8, 16], strides = [1, 1]} : vector<16x16xf32> to vector<8x16xf32>
    %124 = arith.truncf %123 : vector<8x16xf32> to vector<8x16xbf16>
    %125 = vector.extract_strided_slice %120 {offsets = [0, 0], sizes = [8, 16], strides = [1, 1]} : vector<16x16xf32> to vector<8x16xf32>
    %126 = arith.truncf %125 : vector<8x16xf32> to vector<8x16xbf16>
    %cst_68 = arith.constant dense<0.000000e+00> : vector<8x8xf32>
    %127 = tpu.matmul %122, %124, %cst_68 {dimension_numbers = #tpu.dot_dimension_numbers<[1], [1], [0], [0], [0, 0, 1, 0], [], []>} : vector<8x16xbf16>, vector<8x16xbf16>, vector<8x8xf32> -> vector<8x8xf32>
    %128 = arith.addf %127, %28 : vector<8x8xf32>
    %cst_69 = arith.constant dense<0xFF800000> : vector<8xf32>
    %129 = vector.multi_reduction <maximumf>, %128, %cst_69 [1] : vector<8x8xf32> to vector<8xf32>
    %130 = vector.shape_cast %129 : vector<8xf32> to vector<8x1xf32>
    %131 = vector.broadcast %130 : vector<8x1xf32> to vector<8x8xf32>
    %132 = arith.subf %128, %131 : vector<8x8xf32>
    %133 = math.exp %132 : vector<8x8xf32>
    %cst_70 = arith.constant dense<0.000000e+00> : vector<8xf32>
    %134 = vector.multi_reduction <add>, %133, %cst_70 [1] : vector<8x8xf32> to vector<8xf32>
    %135 = vector.shape_cast %134 : vector<8xf32> to vector<8x1xf32>
    %136 = tpu.reciprocal %135 {approx = true} : vector<8x1xf32> -> vector<8x1xf32>
    %137 = vector.broadcast %136 : vector<8x1xf32> to vector<8x8xf32>
    %138 = arith.mulf %133, %137 : vector<8x8xf32>
    %139 = arith.truncf %138 : vector<8x8xf32> to vector<8x8xbf16>
    %cst_71 = arith.constant dense<0.000000e+00> : vector<8x16xf32>
    %140 = tpu.matmul %139, %126, %cst_71 {dimension_numbers = #tpu.dot_dimension_numbers<[1], [0], [0], [1], [0, 0, 1, 1], [], []>} : vector<8x8xbf16>, vector<8x16xbf16>, vector<8x16xf32> -> vector<8x16xf32>
    %141 = vector.extract_strided_slice %106 {offsets = [8, 0], sizes = [8, 16], strides = [1, 1]} : vector<16x16xf32> to vector<8x16xf32>
    %142 = arith.truncf %141 : vector<8x16xf32> to vector<8x16xbf16>
    %143 = vector.extract_strided_slice %113 {offsets = [8, 0], sizes = [8, 16], strides = [1, 1]} : vector<16x16xf32> to vector<8x16xf32>
    %144 = arith.truncf %143 : vector<8x16xf32> to vector<8x16xbf16>
    %145 = vector.extract_strided_slice %120 {offsets = [8, 0], sizes = [8, 16], strides = [1, 1]} : vector<16x16xf32> to vector<8x16xf32>
    %146 = arith.truncf %145 : vector<8x16xf32> to vector<8x16xbf16>
    %cst_72 = arith.constant dense<0.000000e+00> : vector<8x8xf32>
    %147 = tpu.matmul %142, %144, %cst_72 {dimension_numbers = #tpu.dot_dimension_numbers<[1], [1], [0], [0], [0, 0, 1, 0], [], []>} : vector<8x16xbf16>, vector<8x16xbf16>, vector<8x8xf32> -> vector<8x8xf32>
    %148 = arith.addf %147, %32 : vector<8x8xf32>
    %cst_73 = arith.constant dense<0xFF800000> : vector<8xf32>
    %149 = vector.multi_reduction <maximumf>, %148, %cst_73 [1] : vector<8x8xf32> to vector<8xf32>
    %150 = vector.shape_cast %149 : vector<8xf32> to vector<8x1xf32>
    %151 = vector.broadcast %150 : vector<8x1xf32> to vector<8x8xf32>
    %152 = arith.subf %148, %151 : vector<8x8xf32>
    %153 = math.exp %152 : vector<8x8xf32>
    %cst_74 = arith.constant dense<0.000000e+00> : vector<8xf32>
    %154 = vector.multi_reduction <add>, %153, %cst_74 [1] : vector<8x8xf32> to vector<8xf32>
    %155 = vector.shape_cast %154 : vector<8xf32> to vector<8x1xf32>
    %156 = tpu.reciprocal %155 {approx = true} : vector<8x1xf32> -> vector<8x1xf32>
    %157 = vector.broadcast %156 : vector<8x1xf32> to vector<8x8xf32>
    %158 = arith.mulf %153, %157 : vector<8x8xf32>
    %159 = arith.truncf %158 : vector<8x8xf32> to vector<8x8xbf16>
    %cst_75 = arith.constant dense<0.000000e+00> : vector<8x16xf32>
    %160 = tpu.matmul %159, %146, %cst_75 {dimension_numbers = #tpu.dot_dimension_numbers<[1], [0], [0], [1], [0, 0, 1, 1], [], []>} : vector<8x8xbf16>, vector<8x16xbf16>, vector<8x16xf32> -> vector<8x16xf32>
    %161 = tpu.concatenate %140, %160 in 0 : vector<8x16xf32>, vector<8x16xf32> -> vector<16x16xf32>
    %c1_76 = arith.constant 1 : index
    %c0_77 = arith.constant 0 : index
    %c0_78 = arith.constant 0 : index
    %162 = vector.load %arg11[%c1_76, %c0_77, %c0_78] : memref<4x16x32xbf16, #tpu.memory_space<vmem>>, vector<1x16x32xbf16>
    %163 = vector.shape_cast %162 : vector<1x16x32xbf16> to vector<16x32xbf16>
    %164 = arith.truncf %161 : vector<16x16xf32> to vector<16x16xbf16>
    %cst_79 = arith.constant dense<0.000000e+00> : vector<16x32xf32>
    %165 = tpu.matmul %164, %163, %cst_79 {dimension_numbers = #tpu.dot_dimension_numbers<[1], [0], [0], [1], [0, 0, 1, 1], [], []>} : vector<16x16xbf16>, vector<16x32xbf16>, vector<16x32xf32> -> vector<16x32xf32>
    %166 = arith.addf %99, %165 : vector<16x32xf32>
    %c0_80 = arith.constant 0 : index
    %c0_81 = arith.constant 0 : index
    %c0_82 = arith.constant 0 : index
    %167 = vector.load %arg12[%c0_80, %c0_81, %c0_82] : memref<2x1x32xf32, #tpu.memory_space<vmem>>, vector<1x1x32xf32>
    %168 = vector.shape_cast %167 : vector<1x1x32xf32> to vector<1x32xf32>
    %169 = vector.broadcast %168 : vector<1x32xf32> to vector<16x32xf32>
    %170 = arith.addf %166, %169 : vector<16x32xf32>
    %171 = arith.addf %170, %24 : vector<16x32xf32>
    %c0_83 = arith.constant 0 : index
    %c0_84 = arith.constant 0 : index
    %c0_85 = arith.constant 0 : index
    %172 = vector.load %arg13[%c0_83, %c0_84, %c0_85] : memref<2x1x32xf32, #tpu.memory_space<vmem>>, vector<1x1x32xf32>
    %173 = vector.shape_cast %172 : vector<1x1x32xf32> to vector<1x32xf32>
    %c0_86 = arith.constant 0 : index
    %c0_87 = arith.constant 0 : index
    %c0_88 = arith.constant 0 : index
    %174 = vector.load %arg14[%c0_86, %c0_87, %c0_88] : memref<2x1x32xf32, #tpu.memory_space<vmem>>, vector<1x1x32xf32>
    %175 = vector.shape_cast %174 : vector<1x1x32xf32> to vector<1x32xf32>
    %cst_89 = arith.constant dense<0.000000e+00> : vector<16xf32>
    %176 = vector.multi_reduction <add>, %171, %cst_89 [1] : vector<16x32xf32> to vector<16xf32>
    %177 = vector.shape_cast %176 : vector<16xf32> to vector<16x1xf32>
    %cst_90 = arith.constant 3.200000e+01 : f32
    %178 = vector.broadcast %cst_90 : f32 to vector<16x1xf32>
    %179 = arith.divf %177, %178 : vector<16x1xf32>
    %180 = vector.broadcast %179 : vector<16x1xf32> to vector<16x32xf32>
    %181 = arith.subf %171, %180 : vector<16x32xf32>
    %182 = arith.mulf %181, %181 : vector<16x32xf32>
    %cst_91 = arith.constant dense<0.000000e+00> : vector<16xf32>
    %183 = vector.multi_reduction <add>, %182, %cst_91 [1] : vector<16x32xf32> to vector<16xf32>
    %184 = vector.shape_cast %183 : vector<16xf32> to vector<16x1xf32>
    %cst_92 = arith.constant 3.200000e+01 : f32
    %185 = vector.broadcast %cst_92 : f32 to vector<16x1xf32>
    %186 = arith.divf %184, %185 : vector<16x1xf32>
    %187 = vector.broadcast %179 : vector<16x1xf32> to vector<16x32xf32>
    %188 = arith.subf %171, %187 : vector<16x32xf32>
    %cst_93 = arith.constant 9.99999996E-13 : f32
    %189 = vector.broadcast %cst_93 : f32 to vector<16x1xf32>
    %190 = arith.addf %186, %189 : vector<16x1xf32>
    %191 = math.rsqrt %190 : vector<16x1xf32>
    %192 = vector.broadcast %191 : vector<16x1xf32> to vector<16x32xf32>
    %193 = arith.mulf %188, %192 : vector<16x32xf32>
    %194 = vector.broadcast %173 : vector<1x32xf32> to vector<16x32xf32>
    %195 = arith.mulf %193, %194 : vector<16x32xf32>
    %196 = vector.broadcast %175 : vector<1x32xf32> to vector<16x32xf32>
    %197 = arith.addf %195, %196 : vector<16x32xf32>
    %c0_94 = arith.constant 0 : index
    %c0_95 = arith.constant 0 : index
    %c0_96 = arith.constant 0 : index
    %198 = vector.load %arg15[%c0_94, %c0_95, %c0_96] : memref<2x32x64xbf16, #tpu.memory_space<vmem>>, vector<1x32x64xbf16>
    %199 = vector.shape_cast %198 : vector<1x32x64xbf16> to vector<32x64xbf16>
    %200 = arith.truncf %197 : vector<16x32xf32> to vector<16x32xbf16>
    %cst_97 = arith.constant dense<0.000000e+00> : vector<16x64xf32>
    %201 = tpu.matmul %200, %199, %cst_97 {dimension_numbers = #tpu.dot_dimension_numbers<[1], [0], [0], [1], [0, 0, 1, 1], [], []>} : vector<16x32xbf16>, vector<32x64xbf16>, vector<16x64xf32> -> vector<16x64xf32>
    %c0_98 = arith.constant 0 : index
    %c0_99 = arith.constant 0 : index
    %c0_100 = arith.constant 0 : index
    %202 = vector.load %arg16[%c0_98, %c0_99, %c0_100] : memref<2x1x64xf32, #tpu.memory_space<vmem>>, vector<1x1x64xf32>
    %203 = vector.shape_cast %202 : vector<1x1x64xf32> to vector<1x64xf32>
    %204 = vector.broadcast %203 : vector<1x64xf32> to vector<16x64xf32>
    %205 = arith.addf %201, %204 : vector<16x64xf32>
    %cst_101 = arith.constant 5.000000e-01 : f32
    %206 = vector.broadcast %cst_101 : f32 to vector<16x64xf32>
    %207 = arith.mulf %206, %205 : vector<16x64xf32>
    %cst_102 = arith.constant 4.471500e-02 : f32
    %208 = vector.broadcast %cst_102 : f32 to vector<16x64xf32>
    %209 = arith.mulf %208, %205 : vector<16x64xf32>
    %210 = arith.mulf %209, %205 : vector<16x64xf32>
    %211 = arith.mulf %210, %205 : vector<16x64xf32>
    %212 = arith.addf %205, %211 : vector<16x64xf32>
    %cst_103 = arith.constant 0.797884583 : f32
    %213 = vector.broadcast %cst_103 : f32 to vector<16x64xf32>
    %214 = arith.mulf %213, %212 : vector<16x64xf32>
    %215 = math.tanh %214 : vector<16x64xf32>
    %cst_104 = arith.constant 1.000000e+00 : f32
    %216 = vector.broadcast %cst_104 : f32 to vector<16x64xf32>
    %217 = arith.addf %216, %215 : vector<16x64xf32>
    %218 = arith.mulf %207, %217 : vector<16x64xf32>
    %c0_105 = arith.constant 0 : index
    %c0_106 = arith.constant 0 : index
    %c0_107 = arith.constant 0 : index
    %219 = vector.load %arg17[%c0_105, %c0_106, %c0_107] : memref<2x64x32xbf16, #tpu.memory_space<vmem>>, vector<1x64x32xbf16>
    %220 = vector.shape_cast %219 : vector<1x64x32xbf16> to vector<64x32xbf16>
    %221 = arith.truncf %218 : vector<16x64xf32> to vector<16x64xbf16>
    %cst_108 = arith.constant dense<0.000000e+00> : vector<16x32xf32>
    %222 = tpu.matmul %221, %220, %cst_108 {dimension_numbers = #tpu.dot_dimension_numbers<[1], [0], [0], [1], [0, 0, 1, 1], [], []>} : vector<16x64xbf16>, vector<64x32xbf16>, vector<16x32xf32> -> vector<16x32xf32>
    %c0_109 = arith.constant 0 : index
    %c0_110 = arith.constant 0 : index
    %c0_111 = arith.constant 0 : index
    %223 = vector.load %arg18[%c0_109, %c0_110, %c0_111] : memref<2x1x32xf32, #tpu.memory_space<vmem>>, vector<1x1x32xf32>
    %224 = vector.shape_cast %223 : vector<1x1x32xf32> to vector<1x32xf32>
    %225 = vector.broadcast %224 : vector<1x32xf32> to vector<16x32xf32>
    %226 = arith.addf %222, %225 : vector<16x32xf32>
    %227 = arith.addf %226, %197 : vector<16x32xf32>
    %c0_112 = arith.constant 0 : index
    %c0_113 = arith.constant 0 : index
    %c0_114 = arith.constant 0 : index
    %228 = vector.load %arg19[%c0_112, %c0_113, %c0_114] : memref<2x1x32xf32, #tpu.memory_space<vmem>>, vector<1x1x32xf32>
    %229 = vector.shape_cast %228 : vector<1x1x32xf32> to vector<1x32xf32>
    %c0_115 = arith.constant 0 : index
    %c0_116 = arith.constant 0 : index
    %c0_117 = arith.constant 0 : index
    %230 = vector.load %arg20[%c0_115, %c0_116, %c0_117] : memref<2x1x32xf32, #tpu.memory_space<vmem>>, vector<1x1x32xf32>
    %231 = vector.shape_cast %230 : vector<1x1x32xf32> to vector<1x32xf32>
    %cst_118 = arith.constant dense<0.000000e+00> : vector<16xf32>
    %232 = vector.multi_reduction <add>, %227, %cst_118 [1] : vector<16x32xf32> to vector<16xf32>
    %233 = vector.shape_cast %232 : vector<16xf32> to vector<16x1xf32>
    %cst_119 = arith.constant 3.200000e+01 : f32
    %234 = vector.broadcast %cst_119 : f32 to vector<16x1xf32>
    %235 = arith.divf %233, %234 : vector<16x1xf32>
    %236 = vector.broadcast %235 : vector<16x1xf32> to vector<16x32xf32>
    %237 = arith.subf %227, %236 : vector<16x32xf32>
    %238 = arith.mulf %237, %237 : vector<16x32xf32>
    %cst_120 = arith.constant dense<0.000000e+00> : vector<16xf32>
    %239 = vector.multi_reduction <add>, %238, %cst_120 [1] : vector<16x32xf32> to vector<16xf32>
    %240 = vector.shape_cast %239 : vector<16xf32> to vector<16x1xf32>
    %cst_121 = arith.constant 3.200000e+01 : f32
    %241 = vector.broadcast %cst_121 : f32 to vector<16x1xf32>
    %242 = arith.divf %240, %241 : vector<16x1xf32>
    %243 = vector.broadcast %235 : vector<16x1xf32> to vector<16x32xf32>
    %244 = arith.subf %227, %243 : vector<16x32xf32>
    %cst_122 = arith.constant 9.99999996E-13 : f32
    %245 = vector.broadcast %cst_122 : f32 to vector<16x1xf32>
    %246 = arith.addf %242, %245 : vector<16x1xf32>
    %247 = math.rsqrt %246 : vector<16x1xf32>
    %248 = vector.broadcast %247 : vector<16x1xf32> to vector<16x32xf32>
    %249 = arith.mulf %244, %248 : vector<16x32xf32>
    %250 = vector.broadcast %229 : vector<1x32xf32> to vector<16x32xf32>
    %251 = arith.mulf %249, %250 : vector<16x32xf32>
    %252 = vector.broadcast %231 : vector<1x32xf32> to vector<16x32xf32>
    %253 = arith.addf %251, %252 : vector<16x32xf32>
    %254 = arith.truncf %253 : vector<16x32xf32> to vector<16x32xbf16>
    %c2 = arith.constant 2 : index
    %c0_123 = arith.constant 0 : index
    %c0_124 = arith.constant 0 : index
    %255 = vector.load %arg5[%c2, %c0_123, %c0_124] : memref<4x32x16xbf16, #tpu.memory_space<vmem>>, vector<1x32x16xbf16>
    %256 = vector.shape_cast %255 : vector<1x32x16xbf16> to vector<32x16xbf16>
    %cst_125 = arith.constant dense<0.000000e+00> : vector<16x16xf32>
    %257 = tpu.matmul %254, %256, %cst_125 {dimension_numbers = #tpu.dot_dimension_numbers<[1], [0], [0], [1], [0, 0, 1, 1], [], []>} : vector<16x32xbf16>, vector<32x16xbf16>, vector<16x16xf32> -> vector<16x16xf32>
    %c2_126 = arith.constant 2 : index
    %c0_127 = arith.constant 0 : index
    %c0_128 = arith.constant 0 : index
    %258 = vector.load %arg6[%c2_126, %c0_127, %c0_128] : memref<4x1x16xf32, #tpu.memory_space<vmem>>, vector<1x1x16xf32>
    %259 = vector.shape_cast %258 : vector<1x1x16xf32> to vector<1x16xf32>
    %260 = vector.broadcast %259 : vector<1x16xf32> to vector<16x16xf32>
    %261 = arith.addf %257, %260 : vector<16x16xf32>
    %c2_129 = arith.constant 2 : index
    %c0_130 = arith.constant 0 : index
    %c0_131 = arith.constant 0 : index
    %262 = vector.load %arg7[%c2_129, %c0_130, %c0_131] : memref<4x32x16xbf16, #tpu.memory_space<vmem>>, vector<1x32x16xbf16>
    %263 = vector.shape_cast %262 : vector<1x32x16xbf16> to vector<32x16xbf16>
    %cst_132 = arith.constant dense<0.000000e+00> : vector<16x16xf32>
    %264 = tpu.matmul %254, %263, %cst_132 {dimension_numbers = #tpu.dot_dimension_numbers<[1], [0], [0], [1], [0, 0, 1, 1], [], []>} : vector<16x32xbf16>, vector<32x16xbf16>, vector<16x16xf32> -> vector<16x16xf32>
    %c2_133 = arith.constant 2 : index
    %c0_134 = arith.constant 0 : index
    %c0_135 = arith.constant 0 : index
    %265 = vector.load %arg8[%c2_133, %c0_134, %c0_135] : memref<4x1x16xf32, #tpu.memory_space<vmem>>, vector<1x1x16xf32>
    %266 = vector.shape_cast %265 : vector<1x1x16xf32> to vector<1x16xf32>
    %267 = vector.broadcast %266 : vector<1x16xf32> to vector<16x16xf32>
    %268 = arith.addf %264, %267 : vector<16x16xf32>
    %c2_136 = arith.constant 2 : index
    %c0_137 = arith.constant 0 : index
    %c0_138 = arith.constant 0 : index
    %269 = vector.load %arg9[%c2_136, %c0_137, %c0_138] : memref<4x32x16xbf16, #tpu.memory_space<vmem>>, vector<1x32x16xbf16>
    %270 = vector.shape_cast %269 : vector<1x32x16xbf16> to vector<32x16xbf16>
    %cst_139 = arith.constant dense<0.000000e+00> : vector<16x16xf32>
    %271 = tpu.matmul %254, %270, %cst_139 {dimension_numbers = #tpu.dot_dimension_numbers<[1], [0], [0], [1], [0, 0, 1, 1], [], []>} : vector<16x32xbf16>, vector<32x16xbf16>, vector<16x16xf32> -> vector<16x16xf32>
    %c2_140 = arith.constant 2 : index
    %c0_141 = arith.constant 0 : index
    %c0_142 = arith.constant 0 : index
    %272 = vector.load %arg10[%c2_140, %c0_141, %c0_142] : memref<4x1x16xf32, #tpu.memory_space<vmem>>, vector<1x1x16xf32>
    %273 = vector.shape_cast %272 : vector<1x1x16xf32> to vector<1x16xf32>
    %274 = vector.broadcast %273 : vector<1x16xf32> to vector<16x16xf32>
    %275 = arith.addf %271, %274 : vector<16x16xf32>
    %276 = vector.extract_strided_slice %261 {offsets = [0, 0], sizes = [8, 16], strides = [1, 1]} : vector<16x16xf32> to vector<8x16xf32>
    %277 = arith.truncf %276 : vector<8x16xf32> to vector<8x16xbf16>
    %278 = vector.extract_strided_slice %268 {offsets = [0, 0], sizes = [8, 16], strides = [1, 1]} : vector<16x16xf32> to vector<8x16xf32>
    %279 = arith.truncf %278 : vector<8x16xf32> to vector<8x16xbf16>
    %280 = vector.extract_strided_slice %275 {offsets = [0, 0], sizes = [8, 16], strides = [1, 1]} : vector<16x16xf32> to vector<8x16xf32>
    %281 = arith.truncf %280 : vector<8x16xf32> to vector<8x16xbf16>
    %cst_143 = arith.constant dense<0.000000e+00> : vector<8x8xf32>
    %282 = tpu.matmul %277, %279, %cst_143 {dimension_numbers = #tpu.dot_dimension_numbers<[1], [1], [0], [0], [0, 0, 1, 0], [], []>} : vector<8x16xbf16>, vector<8x16xbf16>, vector<8x8xf32> -> vector<8x8xf32>
    %283 = arith.addf %282, %28 : vector<8x8xf32>
    %cst_144 = arith.constant dense<0xFF800000> : vector<8xf32>
    %284 = vector.multi_reduction <maximumf>, %283, %cst_144 [1] : vector<8x8xf32> to vector<8xf32>
    %285 = vector.shape_cast %284 : vector<8xf32> to vector<8x1xf32>
    %286 = vector.broadcast %285 : vector<8x1xf32> to vector<8x8xf32>
    %287 = arith.subf %283, %286 : vector<8x8xf32>
    %288 = math.exp %287 : vector<8x8xf32>
    %cst_145 = arith.constant dense<0.000000e+00> : vector<8xf32>
    %289 = vector.multi_reduction <add>, %288, %cst_145 [1] : vector<8x8xf32> to vector<8xf32>
    %290 = vector.shape_cast %289 : vector<8xf32> to vector<8x1xf32>
    %291 = tpu.reciprocal %290 {approx = true} : vector<8x1xf32> -> vector<8x1xf32>
    %292 = vector.broadcast %291 : vector<8x1xf32> to vector<8x8xf32>
    %293 = arith.mulf %288, %292 : vector<8x8xf32>
    %294 = arith.truncf %293 : vector<8x8xf32> to vector<8x8xbf16>
    %cst_146 = arith.constant dense<0.000000e+00> : vector<8x16xf32>
    %295 = tpu.matmul %294, %281, %cst_146 {dimension_numbers = #tpu.dot_dimension_numbers<[1], [0], [0], [1], [0, 0, 1, 1], [], []>} : vector<8x8xbf16>, vector<8x16xbf16>, vector<8x16xf32> -> vector<8x16xf32>
    %296 = vector.extract_strided_slice %261 {offsets = [8, 0], sizes = [8, 16], strides = [1, 1]} : vector<16x16xf32> to vector<8x16xf32>
    %297 = arith.truncf %296 : vector<8x16xf32> to vector<8x16xbf16>
    %298 = vector.extract_strided_slice %268 {offsets = [8, 0], sizes = [8, 16], strides = [1, 1]} : vector<16x16xf32> to vector<8x16xf32>
    %299 = arith.truncf %298 : vector<8x16xf32> to vector<8x16xbf16>
    %300 = vector.extract_strided_slice %275 {offsets = [8, 0], sizes = [8, 16], strides = [1, 1]} : vector<16x16xf32> to vector<8x16xf32>
    %301 = arith.truncf %300 : vector<8x16xf32> to vector<8x16xbf16>
    %cst_147 = arith.constant dense<0.000000e+00> : vector<8x8xf32>
    %302 = tpu.matmul %297, %299, %cst_147 {dimension_numbers = #tpu.dot_dimension_numbers<[1], [1], [0], [0], [0, 0, 1, 0], [], []>} : vector<8x16xbf16>, vector<8x16xbf16>, vector<8x8xf32> -> vector<8x8xf32>
    %303 = arith.addf %302, %32 : vector<8x8xf32>
    %cst_148 = arith.constant dense<0xFF800000> : vector<8xf32>
    %304 = vector.multi_reduction <maximumf>, %303, %cst_148 [1] : vector<8x8xf32> to vector<8xf32>
    %305 = vector.shape_cast %304 : vector<8xf32> to vector<8x1xf32>
    %306 = vector.broadcast %305 : vector<8x1xf32> to vector<8x8xf32>
    %307 = arith.subf %303, %306 : vector<8x8xf32>
    %308 = math.exp %307 : vector<8x8xf32>
    %cst_149 = arith.constant dense<0.000000e+00> : vector<8xf32>
    %309 = vector.multi_reduction <add>, %308, %cst_149 [1] : vector<8x8xf32> to vector<8xf32>
    %310 = vector.shape_cast %309 : vector<8xf32> to vector<8x1xf32>
    %311 = tpu.reciprocal %310 {approx = true} : vector<8x1xf32> -> vector<8x1xf32>
    %312 = vector.broadcast %311 : vector<8x1xf32> to vector<8x8xf32>
    %313 = arith.mulf %308, %312 : vector<8x8xf32>
    %314 = arith.truncf %313 : vector<8x8xf32> to vector<8x8xbf16>
    %cst_150 = arith.constant dense<0.000000e+00> : vector<8x16xf32>
    %315 = tpu.matmul %314, %301, %cst_150 {dimension_numbers = #tpu.dot_dimension_numbers<[1], [0], [0], [1], [0, 0, 1, 1], [], []>} : vector<8x8xbf16>, vector<8x16xbf16>, vector<8x16xf32> -> vector<8x16xf32>
    %316 = tpu.concatenate %295, %315 in 0 : vector<8x16xf32>, vector<8x16xf32> -> vector<16x16xf32>
    %c2_151 = arith.constant 2 : index
    %c0_152 = arith.constant 0 : index
    %c0_153 = arith.constant 0 : index
    %317 = vector.load %arg11[%c2_151, %c0_152, %c0_153] : memref<4x16x32xbf16, #tpu.memory_space<vmem>>, vector<1x16x32xbf16>
    %318 = vector.shape_cast %317 : vector<1x16x32xbf16> to vector<16x32xbf16>
    %319 = arith.truncf %316 : vector<16x16xf32> to vector<16x16xbf16>
    %cst_154 = arith.constant dense<0.000000e+00> : vector<16x32xf32>
    %320 = tpu.matmul %319, %318, %cst_154 {dimension_numbers = #tpu.dot_dimension_numbers<[1], [0], [0], [1], [0, 0, 1, 1], [], []>} : vector<16x16xbf16>, vector<16x32xbf16>, vector<16x32xf32> -> vector<16x32xf32>
    %c3 = arith.constant 3 : index
    %c0_155 = arith.constant 0 : index
    %c0_156 = arith.constant 0 : index
    %321 = vector.load %arg5[%c3, %c0_155, %c0_156] : memref<4x32x16xbf16, #tpu.memory_space<vmem>>, vector<1x32x16xbf16>
    %322 = vector.shape_cast %321 : vector<1x32x16xbf16> to vector<32x16xbf16>
    %cst_157 = arith.constant dense<0.000000e+00> : vector<16x16xf32>
    %323 = tpu.matmul %254, %322, %cst_157 {dimension_numbers = #tpu.dot_dimension_numbers<[1], [0], [0], [1], [0, 0, 1, 1], [], []>} : vector<16x32xbf16>, vector<32x16xbf16>, vector<16x16xf32> -> vector<16x16xf32>
    %c3_158 = arith.constant 3 : index
    %c0_159 = arith.constant 0 : index
    %c0_160 = arith.constant 0 : index
    %324 = vector.load %arg6[%c3_158, %c0_159, %c0_160] : memref<4x1x16xf32, #tpu.memory_space<vmem>>, vector<1x1x16xf32>
    %325 = vector.shape_cast %324 : vector<1x1x16xf32> to vector<1x16xf32>
    %326 = vector.broadcast %325 : vector<1x16xf32> to vector<16x16xf32>
    %327 = arith.addf %323, %326 : vector<16x16xf32>
    %c3_161 = arith.constant 3 : index
    %c0_162 = arith.constant 0 : index
    %c0_163 = arith.constant 0 : index
    %328 = vector.load %arg7[%c3_161, %c0_162, %c0_163] : memref<4x32x16xbf16, #tpu.memory_space<vmem>>, vector<1x32x16xbf16>
    %329 = vector.shape_cast %328 : vector<1x32x16xbf16> to vector<32x16xbf16>
    %cst_164 = arith.constant dense<0.000000e+00> : vector<16x16xf32>
    %330 = tpu.matmul %254, %329, %cst_164 {dimension_numbers = #tpu.dot_dimension_numbers<[1], [0], [0], [1], [0, 0, 1, 1], [], []>} : vector<16x32xbf16>, vector<32x16xbf16>, vector<16x16xf32> -> vector<16x16xf32>
    %c3_165 = arith.constant 3 : index
    %c0_166 = arith.constant 0 : index
    %c0_167 = arith.constant 0 : index
    %331 = vector.load %arg8[%c3_165, %c0_166, %c0_167] : memref<4x1x16xf32, #tpu.memory_space<vmem>>, vector<1x1x16xf32>
    %332 = vector.shape_cast %331 : vector<1x1x16xf32> to vector<1x16xf32>
    %333 = vector.broadcast %332 : vector<1x16xf32> to vector<16x16xf32>
    %334 = arith.addf %330, %333 : vector<16x16xf32>
    %c3_168 = arith.constant 3 : index
    %c0_169 = arith.constant 0 : index
    %c0_170 = arith.constant 0 : index
    %335 = vector.load %arg9[%c3_168, %c0_169, %c0_170] : memref<4x32x16xbf16, #tpu.memory_space<vmem>>, vector<1x32x16xbf16>
    %336 = vector.shape_cast %335 : vector<1x32x16xbf16> to vector<32x16xbf16>
    %cst_171 = arith.constant dense<0.000000e+00> : vector<16x16xf32>
    %337 = tpu.matmul %254, %336, %cst_171 {dimension_numbers = #tpu.dot_dimension_numbers<[1], [0], [0], [1], [0, 0, 1, 1], [], []>} : vector<16x32xbf16>, vector<32x16xbf16>, vector<16x16xf32> -> vector<16x16xf32>
    %c3_172 = arith.constant 3 : index
    %c0_173 = arith.constant 0 : index
    %c0_174 = arith.constant 0 : index
    %338 = vector.load %arg10[%c3_172, %c0_173, %c0_174] : memref<4x1x16xf32, #tpu.memory_space<vmem>>, vector<1x1x16xf32>
    %339 = vector.shape_cast %338 : vector<1x1x16xf32> to vector<1x16xf32>
    %340 = vector.broadcast %339 : vector<1x16xf32> to vector<16x16xf32>
    %341 = arith.addf %337, %340 : vector<16x16xf32>
    %342 = vector.extract_strided_slice %327 {offsets = [0, 0], sizes = [8, 16], strides = [1, 1]} : vector<16x16xf32> to vector<8x16xf32>
    %343 = arith.truncf %342 : vector<8x16xf32> to vector<8x16xbf16>
    %344 = vector.extract_strided_slice %334 {offsets = [0, 0], sizes = [8, 16], strides = [1, 1]} : vector<16x16xf32> to vector<8x16xf32>
    %345 = arith.truncf %344 : vector<8x16xf32> to vector<8x16xbf16>
    %346 = vector.extract_strided_slice %341 {offsets = [0, 0], sizes = [8, 16], strides = [1, 1]} : vector<16x16xf32> to vector<8x16xf32>
    %347 = arith.truncf %346 : vector<8x16xf32> to vector<8x16xbf16>
    %cst_175 = arith.constant dense<0.000000e+00> : vector<8x8xf32>
    %348 = tpu.matmul %343, %345, %cst_175 {dimension_numbers = #tpu.dot_dimension_numbers<[1], [1], [0], [0], [0, 0, 1, 0], [], []>} : vector<8x16xbf16>, vector<8x16xbf16>, vector<8x8xf32> -> vector<8x8xf32>
    %349 = arith.addf %348, %28 : vector<8x8xf32>
    %cst_176 = arith.constant dense<0xFF800000> : vector<8xf32>
    %350 = vector.multi_reduction <maximumf>, %349, %cst_176 [1] : vector<8x8xf32> to vector<8xf32>
    %351 = vector.shape_cast %350 : vector<8xf32> to vector<8x1xf32>
    %352 = vector.broadcast %351 : vector<8x1xf32> to vector<8x8xf32>
    %353 = arith.subf %349, %352 : vector<8x8xf32>
    %354 = math.exp %353 : vector<8x8xf32>
    %cst_177 = arith.constant dense<0.000000e+00> : vector<8xf32>
    %355 = vector.multi_reduction <add>, %354, %cst_177 [1] : vector<8x8xf32> to vector<8xf32>
    %356 = vector.shape_cast %355 : vector<8xf32> to vector<8x1xf32>
    %357 = tpu.reciprocal %356 {approx = true} : vector<8x1xf32> -> vector<8x1xf32>
    %358 = vector.broadcast %357 : vector<8x1xf32> to vector<8x8xf32>
    %359 = arith.mulf %354, %358 : vector<8x8xf32>
    %360 = arith.truncf %359 : vector<8x8xf32> to vector<8x8xbf16>
    %cst_178 = arith.constant dense<0.000000e+00> : vector<8x16xf32>
    %361 = tpu.matmul %360, %347, %cst_178 {dimension_numbers = #tpu.dot_dimension_numbers<[1], [0], [0], [1], [0, 0, 1, 1], [], []>} : vector<8x8xbf16>, vector<8x16xbf16>, vector<8x16xf32> -> vector<8x16xf32>
    %362 = vector.extract_strided_slice %327 {offsets = [8, 0], sizes = [8, 16], strides = [1, 1]} : vector<16x16xf32> to vector<8x16xf32>
    %363 = arith.truncf %362 : vector<8x16xf32> to vector<8x16xbf16>
    %364 = vector.extract_strided_slice %334 {offsets = [8, 0], sizes = [8, 16], strides = [1, 1]} : vector<16x16xf32> to vector<8x16xf32>
    %365 = arith.truncf %364 : vector<8x16xf32> to vector<8x16xbf16>
    %366 = vector.extract_strided_slice %341 {offsets = [8, 0], sizes = [8, 16], strides = [1, 1]} : vector<16x16xf32> to vector<8x16xf32>
    %367 = arith.truncf %366 : vector<8x16xf32> to vector<8x16xbf16>
    %cst_179 = arith.constant dense<0.000000e+00> : vector<8x8xf32>
    %368 = tpu.matmul %363, %365, %cst_179 {dimension_numbers = #tpu.dot_dimension_numbers<[1], [1], [0], [0], [0, 0, 1, 0], [], []>} : vector<8x16xbf16>, vector<8x16xbf16>, vector<8x8xf32> -> vector<8x8xf32>
    %369 = arith.addf %368, %32 : vector<8x8xf32>
    %cst_180 = arith.constant dense<0xFF800000> : vector<8xf32>
    %370 = vector.multi_reduction <maximumf>, %369, %cst_180 [1] : vector<8x8xf32> to vector<8xf32>
    %371 = vector.shape_cast %370 : vector<8xf32> to vector<8x1xf32>
    %372 = vector.broadcast %371 : vector<8x1xf32> to vector<8x8xf32>
    %373 = arith.subf %369, %372 : vector<8x8xf32>
    %374 = math.exp %373 : vector<8x8xf32>
    %cst_181 = arith.constant dense<0.000000e+00> : vector<8xf32>
    %375 = vector.multi_reduction <add>, %374, %cst_181 [1] : vector<8x8xf32> to vector<8xf32>
    %376 = vector.shape_cast %375 : vector<8xf32> to vector<8x1xf32>
    %377 = tpu.reciprocal %376 {approx = true} : vector<8x1xf32> -> vector<8x1xf32>
    %378 = vector.broadcast %377 : vector<8x1xf32> to vector<8x8xf32>
    %379 = arith.mulf %374, %378 : vector<8x8xf32>
    %380 = arith.truncf %379 : vector<8x8xf32> to vector<8x8xbf16>
    %cst_182 = arith.constant dense<0.000000e+00> : vector<8x16xf32>
    %381 = tpu.matmul %380, %367, %cst_182 {dimension_numbers = #tpu.dot_dimension_numbers<[1], [0], [0], [1], [0, 0, 1, 1], [], []>} : vector<8x8xbf16>, vector<8x16xbf16>, vector<8x16xf32> -> vector<8x16xf32>
    %382 = tpu.concatenate %361, %381 in 0 : vector<8x16xf32>, vector<8x16xf32> -> vector<16x16xf32>
    %c3_183 = arith.constant 3 : index
    %c0_184 = arith.constant 0 : index
    %c0_185 = arith.constant 0 : index
    %383 = vector.load %arg11[%c3_183, %c0_184, %c0_185] : memref<4x16x32xbf16, #tpu.memory_space<vmem>>, vector<1x16x32xbf16>
    %384 = vector.shape_cast %383 : vector<1x16x32xbf16> to vector<16x32xbf16>
    %385 = arith.truncf %382 : vector<16x16xf32> to vector<16x16xbf16>
    %cst_186 = arith.constant dense<0.000000e+00> : vector<16x32xf32>
    %386 = tpu.matmul %385, %384, %cst_186 {dimension_numbers = #tpu.dot_dimension_numbers<[1], [0], [0], [1], [0, 0, 1, 1], [], []>} : vector<16x16xbf16>, vector<16x32xbf16>, vector<16x32xf32> -> vector<16x32xf32>
    %387 = arith.addf %320, %386 : vector<16x32xf32>
    %c1_187 = arith.constant 1 : index
    %c0_188 = arith.constant 0 : index
    %c0_189 = arith.constant 0 : index
    %388 = vector.load %arg12[%c1_187, %c0_188, %c0_189] : memref<2x1x32xf32, #tpu.memory_space<vmem>>, vector<1x1x32xf32>
    %389 = vector.shape_cast %388 : vector<1x1x32xf32> to vector<1x32xf32>
    %390 = vector.broadcast %389 : vector<1x32xf32> to vector<16x32xf32>
    %391 = arith.addf %387, %390 : vector<16x32xf32>
    %392 = arith.addf %391, %253 : vector<16x32xf32>
    %c1_190 = arith.constant 1 : index
    %c0_191 = arith.constant 0 : index
    %c0_192 = arith.constant 0 : index
    %393 = vector.load %arg13[%c1_190, %c0_191, %c0_192] : memref<2x1x32xf32, #tpu.memory_space<vmem>>, vector<1x1x32xf32>
    %394 = vector.shape_cast %393 : vector<1x1x32xf32> to vector<1x32xf32>
    %c1_193 = arith.constant 1 : index
    %c0_194 = arith.constant 0 : index
    %c0_195 = arith.constant 0 : index
    %395 = vector.load %arg14[%c1_193, %c0_194, %c0_195] : memref<2x1x32xf32, #tpu.memory_space<vmem>>, vector<1x1x32xf32>
    %396 = vector.shape_cast %395 : vector<1x1x32xf32> to vector<1x32xf32>
    %cst_196 = arith.constant dense<0.000000e+00> : vector<16xf32>
    %397 = vector.multi_reduction <add>, %392, %cst_196 [1] : vector<16x32xf32> to vector<16xf32>
    %398 = vector.shape_cast %397 : vector<16xf32> to vector<16x1xf32>
    %cst_197 = arith.constant 3.200000e+01 : f32
    %399 = vector.broadcast %cst_197 : f32 to vector<16x1xf32>
    %400 = arith.divf %398, %399 : vector<16x1xf32>
    %401 = vector.broadcast %400 : vector<16x1xf32> to vector<16x32xf32>
    %402 = arith.subf %392, %401 : vector<16x32xf32>
    %403 = arith.mulf %402, %402 : vector<16x32xf32>
    %cst_198 = arith.constant dense<0.000000e+00> : vector<16xf32>
    %404 = vector.multi_reduction <add>, %403, %cst_198 [1] : vector<16x32xf32> to vector<16xf32>
    %405 = vector.shape_cast %404 : vector<16xf32> to vector<16x1xf32>
    %cst_199 = arith.constant 3.200000e+01 : f32
    %406 = vector.broadcast %cst_199 : f32 to vector<16x1xf32>
    %407 = arith.divf %405, %406 : vector<16x1xf32>
    %408 = vector.broadcast %400 : vector<16x1xf32> to vector<16x32xf32>
    %409 = arith.subf %392, %408 : vector<16x32xf32>
    %cst_200 = arith.constant 9.99999996E-13 : f32
    %410 = vector.broadcast %cst_200 : f32 to vector<16x1xf32>
    %411 = arith.addf %407, %410 : vector<16x1xf32>
    %412 = math.rsqrt %411 : vector<16x1xf32>
    %413 = vector.broadcast %412 : vector<16x1xf32> to vector<16x32xf32>
    %414 = arith.mulf %409, %413 : vector<16x32xf32>
    %415 = vector.broadcast %394 : vector<1x32xf32> to vector<16x32xf32>
    %416 = arith.mulf %414, %415 : vector<16x32xf32>
    %417 = vector.broadcast %396 : vector<1x32xf32> to vector<16x32xf32>
    %418 = arith.addf %416, %417 : vector<16x32xf32>
    %c1_201 = arith.constant 1 : index
    %c0_202 = arith.constant 0 : index
    %c0_203 = arith.constant 0 : index
    %419 = vector.load %arg15[%c1_201, %c0_202, %c0_203] : memref<2x32x64xbf16, #tpu.memory_space<vmem>>, vector<1x32x64xbf16>
    %420 = vector.shape_cast %419 : vector<1x32x64xbf16> to vector<32x64xbf16>
    %421 = arith.truncf %418 : vector<16x32xf32> to vector<16x32xbf16>
    %cst_204 = arith.constant dense<0.000000e+00> : vector<16x64xf32>
    %422 = tpu.matmul %421, %420, %cst_204 {dimension_numbers = #tpu.dot_dimension_numbers<[1], [0], [0], [1], [0, 0, 1, 1], [], []>} : vector<16x32xbf16>, vector<32x64xbf16>, vector<16x64xf32> -> vector<16x64xf32>
    %c1_205 = arith.constant 1 : index
    %c0_206 = arith.constant 0 : index
    %c0_207 = arith.constant 0 : index
    %423 = vector.load %arg16[%c1_205, %c0_206, %c0_207] : memref<2x1x64xf32, #tpu.memory_space<vmem>>, vector<1x1x64xf32>
    %424 = vector.shape_cast %423 : vector<1x1x64xf32> to vector<1x64xf32>
    %425 = vector.broadcast %424 : vector<1x64xf32> to vector<16x64xf32>
    %426 = arith.addf %422, %425 : vector<16x64xf32>
    %cst_208 = arith.constant 5.000000e-01 : f32
    %427 = vector.broadcast %cst_208 : f32 to vector<16x64xf32>
    %428 = arith.mulf %427, %426 : vector<16x64xf32>
    %cst_209 = arith.constant 4.471500e-02 : f32
    %429 = vector.broadcast %cst_209 : f32 to vector<16x64xf32>
    %430 = arith.mulf %429, %426 : vector<16x64xf32>
    %431 = arith.mulf %430, %426 : vector<16x64xf32>
    %432 = arith.mulf %431, %426 : vector<16x64xf32>
    %433 = arith.addf %426, %432 : vector<16x64xf32>
    %cst_210 = arith.constant 0.797884583 : f32
    %434 = vector.broadcast %cst_210 : f32 to vector<16x64xf32>
    %435 = arith.mulf %434, %433 : vector<16x64xf32>
    %436 = math.tanh %435 : vector<16x64xf32>
    %cst_211 = arith.constant 1.000000e+00 : f32
    %437 = vector.broadcast %cst_211 : f32 to vector<16x64xf32>
    %438 = arith.addf %437, %436 : vector<16x64xf32>
    %439 = arith.mulf %428, %438 : vector<16x64xf32>
    %c1_212 = arith.constant 1 : index
    %c0_213 = arith.constant 0 : index
    %c0_214 = arith.constant 0 : index
    %440 = vector.load %arg17[%c1_212, %c0_213, %c0_214] : memref<2x64x32xbf16, #tpu.memory_space<vmem>>, vector<1x64x32xbf16>
    %441 = vector.shape_cast %440 : vector<1x64x32xbf16> to vector<64x32xbf16>
    %442 = arith.truncf %439 : vector<16x64xf32> to vector<16x64xbf16>
    %cst_215 = arith.constant dense<0.000000e+00> : vector<16x32xf32>
    %443 = tpu.matmul %442, %441, %cst_215 {dimension_numbers = #tpu.dot_dimension_numbers<[1], [0], [0], [1], [0, 0, 1, 1], [], []>} : vector<16x64xbf16>, vector<64x32xbf16>, vector<16x32xf32> -> vector<16x32xf32>
    %c1_216 = arith.constant 1 : index
    %c0_217 = arith.constant 0 : index
    %c0_218 = arith.constant 0 : index
    %444 = vector.load %arg18[%c1_216, %c0_217, %c0_218] : memref<2x1x32xf32, #tpu.memory_space<vmem>>, vector<1x1x32xf32>
    %445 = vector.shape_cast %444 : vector<1x1x32xf32> to vector<1x32xf32>
    %446 = vector.broadcast %445 : vector<1x32xf32> to vector<16x32xf32>
    %447 = arith.addf %443, %446 : vector<16x32xf32>
    %448 = arith.addf %447, %418 : vector<16x32xf32>
    %c1_219 = arith.constant 1 : index
    %c0_220 = arith.constant 0 : index
    %c0_221 = arith.constant 0 : index
    %449 = vector.load %arg19[%c1_219, %c0_220, %c0_221] : memref<2x1x32xf32, #tpu.memory_space<vmem>>, vector<1x1x32xf32>
    %450 = vector.shape_cast %449 : vector<1x1x32xf32> to vector<1x32xf32>
    %c1_222 = arith.constant 1 : index
    %c0_223 = arith.constant 0 : index
    %c0_224 = arith.constant 0 : index
    %451 = vector.load %arg20[%c1_222, %c0_223, %c0_224] : memref<2x1x32xf32, #tpu.memory_space<vmem>>, vector<1x1x32xf32>
    %452 = vector.shape_cast %451 : vector<1x1x32xf32> to vector<1x32xf32>
    %cst_225 = arith.constant dense<0.000000e+00> : vector<16xf32>
    %453 = vector.multi_reduction <add>, %448, %cst_225 [1] : vector<16x32xf32> to vector<16xf32>
    %454 = vector.shape_cast %453 : vector<16xf32> to vector<16x1xf32>
    %cst_226 = arith.constant 3.200000e+01 : f32
    %455 = vector.broadcast %cst_226 : f32 to vector<16x1xf32>
    %456 = arith.divf %454, %455 : vector<16x1xf32>
    %457 = vector.broadcast %456 : vector<16x1xf32> to vector<16x32xf32>
    %458 = arith.subf %448, %457 : vector<16x32xf32>
    %459 = arith.mulf %458, %458 : vector<16x32xf32>
    %cst_227 = arith.constant dense<0.000000e+00> : vector<16xf32>
    %460 = vector.multi_reduction <add>, %459, %cst_227 [1] : vector<16x32xf32> to vector<16xf32>
    %461 = vector.shape_cast %460 : vector<16xf32> to vector<16x1xf32>
    %cst_228 = arith.constant 3.200000e+01 : f32
    %462 = vector.broadcast %cst_228 : f32 to vector<16x1xf32>
    %463 = arith.divf %461, %462 : vector<16x1xf32>
    %464 = vector.broadcast %456 : vector<16x1xf32> to vector<16x32xf32>
    %465 = arith.subf %448, %464 : vector<16x32xf32>
    %cst_229 = arith.constant 9.99999996E-13 : f32
    %466 = vector.broadcast %cst_229 : f32 to vector<16x1xf32>
    %467 = arith.addf %463, %466 : vector<16x1xf32>
    %468 = math.rsqrt %467 : vector<16x1xf32>
    %469 = vector.broadcast %468 : vector<16x1xf32> to vector<16x32xf32>
    %470 = arith.mulf %465, %469 : vector<16x32xf32>
    %471 = vector.broadcast %450 : vector<1x32xf32> to vector<16x32xf32>
    %472 = arith.mulf %470, %471 : vector<16x32xf32>
    %473 = vector.broadcast %452 : vector<1x32xf32> to vector<16x32xf32>
    %474 = arith.addf %472, %473 : vector<16x32xf32>
    %c0_230 = arith.constant 0 : index
    %c0_231 = arith.constant 0 : index
    %475 = vector.load %arg21[%c0_230, %c0_231] : memref<32x32xbf16, #tpu.memory_space<vmem>>, vector<32x32xbf16>
    %476 = arith.truncf %474 : vector<16x32xf32> to vector<16x32xbf16>
    %cst_232 = arith.constant dense<0.000000e+00> : vector<16x32xf32>
    %477 = tpu.matmul %476, %475, %cst_232 {dimension_numbers = #tpu.dot_dimension_numbers<[1], [0], [0], [1], [0, 0, 1, 1], [], []>} : vector<16x32xbf16>, vector<32x32xbf16>, vector<16x32xf32> -> vector<16x32xf32>
    %c0_233 = arith.constant 0 : index
    %c0_234 = arith.constant 0 : index
    %478 = vector.load %arg22[%c0_233, %c0_234] : memref<1x32xf32, #tpu.memory_space<vmem>>, vector<1x32xf32>
    %479 = vector.broadcast %478 : vector<1x32xf32> to vector<16x32xf32>
    %480 = arith.addf %477, %479 : vector<16x32xf32>
    %481 = math.tanh %480 : vector<16x32xf32>
    %c0_235 = arith.constant 0 : index
    %c0_236 = arith.constant 0 : index
    %482 = vector.load %arg23[%c0_235, %c0_236] : memref<32x128xbf16, #tpu.memory_space<vmem>>, vector<32x128xbf16>
    %483 = arith.truncf %481 : vector<16x32xf32> to vector<16x32xbf16>
    %cst_237 = arith.constant dense<0.000000e+00> : vector<16x128xf32>
    %484 = tpu.matmul %483, %482, %cst_237 {dimension_numbers = #tpu.dot_dimension_numbers<[1], [0], [0], [1], [0, 0, 1, 1], [], []>} : vector<16x32xbf16>, vector<32x128xbf16>, vector<16x128xf32> -> vector<16x128xf32>
    %c0_238 = arith.constant 0 : index
    %c0_239 = arith.constant 0 : index
    %485 = vector.load %arg24[%c0_238, %c0_239] : memref<1x128xf32, #tpu.memory_space<vmem>>, vector<1x128xf32>
    %486 = vector.broadcast %485 : vector<1x128xf32> to vector<16x128xf32>
    %487 = arith.addf %484, %486 : vector<16x128xf32>
    %c0_240 = arith.constant 0 : index
    %c0_241 = arith.constant 0 : index
    %488 = vector.load %arg25[%c0_240, %c0_241] : memref<16x128xf32, #tpu.memory_space<vmem>>, vector<16x128xf32>
    tpu.vector_store %arg25[%c0_240, %c0_241], %487 {strides = array<i32>} : memref<16x128xf32, #tpu.memory_space<vmem>>, vector<16x128xf32>,
    return
  }
  func.func @transform_0(%arg0: i32) -> (i32, i32) {
    %c0_i32 = arith.constant 0 : i32
    %c0_i32_0 = arith.constant 0 : i32
    return %arg0, %c0_i32 : i32, i32
  }
  func.func @transform_1(%arg0: i32) -> (i32, i32, i32) {
    %c0_i32 = arith.constant 0 : i32
    %c0_i32_0 = arith.constant 0 : i32
    %c0_i32_1 = arith.constant 0 : i32
    return %arg0, %c0_i32, %c0_i32_0 : i32, i32, i32
  }
  func.func @transform_2(%arg0: i32) -> (i32, i32) {
    %c0_i32 = arith.constant 0 : i32
    %c0_i32_0 = arith.constant 0 : i32
    %c0_i32_1 = arith.constant 0 : i32
    return %c0_i32, %c0_i32_0 : i32, i32
  }
  func.func @transform_3(%arg0: i32) -> (i32, i32) {
    %c0_i32 = arith.constant 0 : i32
    %c0_i32_0 = arith.constant 0 : i32
    %c0_i32_1 = arith.constant 0 : i32
    return %c0_i32, %c0_i32_0 : i32, i32
  }
  func.func @transform_4(%arg0: i32) -> (i32, i32, i32) {
    %c0_i32 = arith.constant 0 : i32
    %c0_i32_0 = arith.constant 0 : i32
    %c0_i32_1 = arith.constant 0 : i32
    %c0_i32_2 = arith.constant 0 : i32
    return %c0_i32, %c0_i32_0, %c0_i32_1 : i32, i32, i32
  }
  func.func @transform_5(%arg0: i32) -> (i32, i32, i32) {
    %c0_i32 = arith.constant 0 : i32
    %c0_i32_0 = arith.constant 0 : i32
    %c0_i32_1 = arith.constant 0 : i32
    %c0_i32_2 = arith.constant 0 : i32
    return %c0_i32, %c0_i32_0, %c0_i32_1 : i32, i32, i32
  }
  func.func @transform_6(%arg0: i32) -> (i32, i32, i32) {
    %c0_i32 = arith.constant 0 : i32
    %c0_i32_0 = arith.constant 0 : i32
    %c0_i32_1 = arith.constant 0 : i32
    %c0_i32_2 = arith.constant 0 : i32
    return %c0_i32, %c0_i32_0, %c0_i32_1 : i32, i32, i32
  }
  func.func @transform_7(%arg0: i32) -> (i32, i32, i32) {
    %c0_i32 = arith.constant 0 : i32
    %c0_i32_0 = arith.constant 0 : i32
    %c0_i32_1 = arith.constant 0 : i32
    %c0_i32_2 = arith.constant 0 : i32
    return %c0_i32, %c0_i32_0, %c0_i32_1 : i32, i32, i32
  }
  func.func @transform_8(%arg0: i32) -> (i32, i32, i32) {
    %c0_i32 = arith.constant 0 : i32
    %c0_i32_0 = arith.constant 0 : i32
    %c0_i32_1 = arith.constant 0 : i32
    %c0_i32_2 = arith.constant 0 : i32
    return %c0_i32, %c0_i32_0, %c0_i32_1 : i32, i32, i32
  }
  func.func @transform_9(%arg0: i32) -> (i32, i32, i32) {
    %c0_i32 = arith.constant 0 : i32
    %c0_i32_0 = arith.constant 0 : i32
    %c0_i32_1 = arith.constant 0 : i32
    %c0_i32_2 = arith.constant 0 : i32
    return %c0_i32, %c0_i32_0, %c0_i32_1 : i32, i32, i32
  }
  func.func @transform_10(%arg0: i32) -> (i32, i32, i32) {
    %c0_i32 = arith.constant 0 : i32
    %c0_i32_0 = arith.constant 0 : i32
    %c0_i32_1 = arith.constant 0 : i32
    %c0_i32_2 = arith.constant 0 : i32
    return %c0_i32, %c0_i32_0, %c0_i32_1 : i32, i32, i32
  }
  func.func @transform_11(%arg0: i32) -> (i32, i32, i32) {
    %c0_i32 = arith.constant 0 : i32
    %c0_i32_0 = arith.constant 0 : i32
    %c0_i32_1 = arith.constant 0 : i32
    %c0_i32_2 = arith.constant 0 : i32
    return %c0_i32, %c0_i32_0, %c0_i32_1 : i32, i32, i32
  }
  func.func @transform_12(%arg0: i32) -> (i32, i32, i32) {
    %c0_i32 = arith.constant 0 : i32
    %c0_i32_0 = arith.constant 0 : i32
    %c0_i32_1 = arith.constant 0 : i32
    %c0_i32_2 = arith.constant 0 : i32
    return %c0_i32, %c0_i32_0, %c0_i32_1 : i32, i32, i32
  }
  func.func @transform_13(%arg0: i32) -> (i32, i32, i32) {
    %c0_i32 = arith.constant 0 : i32
    %c0_i32_0 = arith.constant 0 : i32
    %c0_i32_1 = arith.constant 0 : i32
    %c0_i32_2 = arith.constant 0 : i32
    return %c0_i32, %c0_i32_0, %c0_i32_1 : i32, i32, i32
  }
  func.func @transform_14(%arg0: i32) -> (i32, i32, i32) {
    %c0_i32 = arith.constant 0 : i32
    %c0_i32_0 = arith.constant 0 : i32
    %c0_i32_1 = arith.constant 0 : i32
    %c0_i32_2 = arith.constant 0 : i32
    return %c0_i32, %c0_i32_0, %c0_i32_1 : i32, i32, i32
  }
  func.func @transform_15(%arg0: i32) -> (i32, i32, i32) {
    %c0_i32 = arith.constant 0 : i32
    %c0_i32_0 = arith.constant 0 : i32
    %c0_i32_1 = arith.constant 0 : i32
    %c0_i32_2 = arith.constant 0 : i32
    return %c0_i32, %c0_i32_0, %c0_i32_1 : i32, i32, i32
  }
  func.func @transform_16(%arg0: i32) -> (i32, i32, i32) {
    %c0_i32 = arith.constant 0 : i32
    %c0_i32_0 = arith.constant 0 : i32
    %c0_i32_1 = arith.constant 0 : i32
    %c0_i32_2 = arith.constant 0 : i32
    return %c0_i32, %c0_i32_0, %c0_i32_1 : i32, i32, i32
  }
  func.func @transform_17(%arg0: i32) -> (i32, i32, i32) {
    %c0_i32 = arith.constant 0 : i32
    %c0_i32_0 = arith.constant 0 : i32
    %c0_i32_1 = arith.constant 0 : i32
    %c0_i32_2 = arith.constant 0 : i32
    return %c0_i32, %c0_i32_0, %c0_i32_1 : i32, i32, i32
  }
  func.func @transform_18(%arg0: i32) -> (i32, i32, i32) {
    %c0_i32 = arith.constant 0 : i32
    %c0_i32_0 = arith.constant 0 : i32
    %c0_i32_1 = arith.constant 0 : i32
    %c0_i32_2 = arith.constant 0 : i32
    return %c0_i32, %c0_i32_0, %c0_i32_1 : i32, i32, i32
  }
  func.func @transform_19(%arg0: i32) -> (i32, i32, i32) {
    %c0_i32 = arith.constant 0 : i32
    %c0_i32_0 = arith.constant 0 : i32
    %c0_i32_1 = arith.constant 0 : i32
    %c0_i32_2 = arith.constant 0 : i32
    return %c0_i32, %c0_i32_0, %c0_i32_1 : i32, i32, i32
  }
  func.func @transform_20(%arg0: i32) -> (i32, i32) {
    %c0_i32 = arith.constant 0 : i32
    %c0_i32_0 = arith.constant 0 : i32
    %c0_i32_1 = arith.constant 0 : i32
    return %c0_i32, %c0_i32_0 : i32, i32
  }
  func.func @transform_21(%arg0: i32) -> (i32, i32) {
    %c0_i32 = arith.constant 0 : i32
    %c0_i32_0 = arith.constant 0 : i32
    %c0_i32_1 = arith.constant 0 : i32
    return %c0_i32, %c0_i32_0 : i32, i32
  }
  func.func @transform_22(%arg0: i32) -> (i32, i32) {
    %c0_i32 = arith.constant 0 : i32
    %c0_i32_0 = arith.constant 0 : i32
    %c0_i32_1 = arith.constant 0 : i32
    return %c0_i32, %c0_i32_0 : i32, i32
  }
  func.func @transform_23(%arg0: i32) -> (i32, i32) {
    %c0_i32 = arith.constant 0 : i32
    %c0_i32_0 = arith.constant 0 : i32
    %c0_i32_1 = arith.constant 0 : i32
    return %c0_i32, %c0_i32_0 : i32, i32
  }
  func.func @transform_24(%arg0: i32) -> (i32, i32) {
    %c0_i32 = arith.constant 0 : i32
    %c0_i32_0 = arith.constant 0 : i32
    return %arg0, %c0_i32 : i32, i32
  }
}

</mosaic_0001>

<llo_original>
// kernel: tpu_custom_call.1
$region0: #{tpu_custom_call.1}
  #allocation0 [shape = 'u32[]', space=smem, size = 0x4, offset = 0x4, fixed_abs, tag = 'smem constant byte address 0x4 - core index']
  #allocation1 [shape = 'u32[144,128]{1,0:T(1,128)}', space=vmem, size = 0x12000, scoped, tag = 'internal scratch']
  %s0 = inlined_call_operand.vmem [shape: f32[16,32], index: 0, kind: input, shape index: {}]
  %s1 = inlined_call_operand.vmem [shape: f32[2,1,8], index: 1, kind: input, shape index: {}]
  %s2 = inlined_call_operand.vmem [shape: f32[1,32], index: 2, kind: input, shape index: {}]
  %s3 = inlined_call_operand.vmem [shape: f32[1,32], index: 3, kind: input, shape index: {}]
  %s4 = inlined_call_operand.vmem [shape: bf16[4,32,16], index: 4, kind: input, shape index: {}]
  %s5 = inlined_call_operand.vmem [shape: f32[4,1,16], index: 5, kind: input, shape index: {}]
  %s6 = inlined_call_operand.vmem [shape: bf16[4,32,16], index: 6, kind: input, shape index: {}]
  %s7 = inlined_call_operand.vmem [shape: f32[4,1,16], index: 7, kind: input, shape index: {}]
  %s8 = inlined_call_operand.vmem [shape: bf16[4,32,16], index: 8, kind: input, shape index: {}]
  %s9 = inlined_call_operand.vmem [shape: f32[4,1,16], index: 9, kind: input, shape index: {}]
  %s10 = inlined_call_operand.vmem [shape: bf16[4,16,32], index: 10, kind: input, shape index: {}]
  %s11 = inlined_call_operand.vmem [shape: f32[2,1,32], index: 11, kind: input, shape index: {}]
  %s12 = inlined_call_operand.vmem [shape: f32[2,1,32], index: 12, kind: input, shape index: {}]
  %s13 = inlined_call_operand.vmem [shape: f32[2,1,32], index: 13, kind: input, shape index: {}]
  %s14 = inlined_call_operand.vmem [shape: bf16[2,32,64], index: 14, kind: input, shape index: {}]
  %s15 = inlined_call_operand.vmem [shape: f32[2,1,64], index: 15, kind: input, shape index: {}]
  %s16 = inlined_call_operand.vmem [shape: bf16[2,64,32], index: 16, kind: input, shape index: {}]
  %s17 = inlined_call_operand.vmem [shape: f32[2,1,32], index: 17, kind: input, shape index: {}]
  %s18 = inlined_call_operand.vmem [shape: f32[2,1,32], index: 18, kind: input, shape index: {}]
  %s19 = inlined_call_operand.vmem [shape: f32[2,1,32], index: 19, kind: input, shape index: {}]
  %s20 = inlined_call_operand.vmem [shape: bf16[32,32], index: 20, kind: input, shape index: {}]
  %s21 = inlined_call_operand.vmem [shape: f32[1,32], index: 21, kind: input, shape index: {}]
  %s22 = inlined_call_operand.vmem [shape: bf16[32,128], index: 22, kind: input, shape index: {}]
  %s23 = inlined_call_operand.vmem [shape: f32[1,128], index: 23, kind: input, shape index: {}]
  %s24 = inlined_call_operand.hbm [shape: f32[16,128], index: 24, kind: output, shape index: {}]
  %s25 = sld [smem:[#allocation0]]
  $region106: #{tpu_custom_call.1} parent=0
    _
  %s27 = ssub.s32 1, %s25
  %s28 = scalar_select 0, %s27, %s25
  $region1: #{tpu_custom_call.1} parent=0
    #allocation2 [shape = 'u8[8192]{0}', space=vmem, size = 0x2000, scoped, tag = 'output window, operand 0, single buffered']
    #allocation3 [shape = 's32[1]{0}', space=sflag, size = 0x4, scoped, tag = 'scoped memory for tpu_custom_call.1']
    %29 = vsyncpa [#allocation3], 0
    // Predicated region
    $region2: #{tpu_custom_call.1} parent=1 // pred_check
      _
    $region3: #{tpu_custom_call.1} parent=1 // pred_check_branch
      %31 = sbr.rel (0) target = $region5
    $region4: #{tpu_custom_call.1} parent=1 // pred_region
      _
    $region5: #{tpu_custom_call.1} parent=1 // pred_fallthru
      _
    // Predicated region
    $region6: #{tpu_custom_call.1} parent=1 // pred_check
      _
    $region7: #{tpu_custom_call.1} parent=1 // pred_check_branch
      %33 = sbr.rel (0) target = $region9
    $region8: #{tpu_custom_call.1} parent=1 // pred_region
      _
    $region9: #{tpu_custom_call.1} parent=1 // pred_fallthru
      _
    // Predicated region
    $region10: #{tpu_custom_call.1} parent=1 // pred_check
      _
    $region11: #{tpu_custom_call.1} parent=1 // pred_check_branch
      %35 = sbr.rel (0) target = $region13
    $region12: #{tpu_custom_call.1} parent=1 // pred_region
      _
    $region13: #{tpu_custom_call.1} parent=1 // pred_fallthru
      _
    // Predicated region
    $region14: #{tpu_custom_call.1} parent=1 // pred_check
      _
    $region15: #{tpu_custom_call.1} parent=1 // pred_check_branch
      %37 = sbr.rel (0) target = $region17
    $region16: #{tpu_custom_call.1} parent=1 // pred_region
      _
    $region17: #{tpu_custom_call.1} parent=1 // pred_fallthru
      _
    // Predicated region
    $region18: #{tpu_custom_call.1} parent=1 // pred_check
      _
    $region19: #{tpu_custom_call.1} parent=1 // pred_check_branch
      %39 = sbr.rel (0) target = $region21
    $region20: #{tpu_custom_call.1} parent=1 // pred_region
      _
    $region21: #{tpu_custom_call.1} parent=1 // pred_fallthru
      _
    // Predicated region
    $region22: #{tpu_custom_call.1} parent=1 // pred_check
      _
    $region23: #{tpu_custom_call.1} parent=1 // pred_check_branch
      %41 = sbr.rel (0) target = $region25
    $region24: #{tpu_custom_call.1} parent=1 // pred_region
      _
    $region25: #{tpu_custom_call.1} parent=1 // pred_fallthru
      _
    // Predicated region
    $region26: #{tpu_custom_call.1} parent=1 // pred_check
      _
    $region27: #{tpu_custom_call.1} parent=1 // pred_check_branch
      %43 = sbr.rel (0) target = $region29
    $region28: #{tpu_custom_call.1} parent=1 // pred_region
      _
    $region29: #{tpu_custom_call.1} parent=1 // pred_fallthru
      _
    // Predicated region
    $region30: #{tpu_custom_call.1} parent=1 // pred_check
      _
    $region31: #{tpu_custom_call.1} parent=1 // pred_check_branch
      %45 = sbr.rel (0) target = $region33
    $region32: #{tpu_custom_call.1} parent=1 // pred_region
      _
    $region33: #{tpu_custom_call.1} parent=1 // pred_fallthru
      _
    // Predicated region
    $region34: #{tpu_custom_call.1} parent=1 // pred_check
      _
    $region35: #{tpu_custom_call.1} parent=1 // pred_check_branch
      %47 = sbr.rel (0) target = $region37
    $region36: #{tpu_custom_call.1} parent=1 // pred_region
      _
    $region37: #{tpu_custom_call.1} parent=1 // pred_fallthru
      _
    // Predicated region
    $region38: #{tpu_custom_call.1} parent=1 // pred_check
      _
    $region39: #{tpu_custom_call.1} parent=1 // pred_check_branch
      %49 = sbr.rel (0) target = $region41
    $region40: #{tpu_custom_call.1} parent=1 // pred_region
      _
    $region41: #{tpu_custom_call.1} parent=1 // pred_fallthru
      _
    // Predicated region
    $region42: #{tpu_custom_call.1} parent=1 // pred_check
      _
    $region43: #{tpu_custom_call.1} parent=1 // pred_check_branch
      %51 = sbr.rel (0) target = $region45
    $region44: #{tpu_custom_call.1} parent=1 // pred_region
      _
    $region45: #{tpu_custom_call.1} parent=1 // pred_fallthru
      _
    // Predicated region
    $region46: #{tpu_custom_call.1} parent=1 // pred_check
      _
    $region47: #{tpu_custom_call.1} parent=1 // pred_check_branch
      %53 = sbr.rel (0) target = $region49
    $region48: #{tpu_custom_call.1} parent=1 // pred_region
      _
    $region49: #{tpu_custom_call.1} parent=1 // pred_fallthru
      _
    // Predicated region
    $region50: #{tpu_custom_call.1} parent=1 // pred_check
      _
    $region51: #{tpu_custom_call.1} parent=1 // pred_check_branch
      %55 = sbr.rel (0) target = $region53
    $region52: #{tpu_custom_call.1} parent=1 // pred_region
      _
    $region53: #{tpu_custom_call.1} parent=1 // pred_fallthru
      _
    // Predicated region
    $region54: #{tpu_custom_call.1} parent=1 // pred_check
      _
    $region55: #{tpu_custom_call.1} parent=1 // pred_check_branch
      %57 = sbr.rel (0) target = $region57
    $region56: #{tpu_custom_call.1} parent=1 // pred_region
      _
    $region57: #{tpu_custom_call.1} parent=1 // pred_fallthru
      _
    // Predicated region
    $region58: #{tpu_custom_call.1} parent=1 // pred_check
      _
    $region59: #{tpu_custom_call.1} parent=1 // pred_check_branch
      %59 = sbr.rel (0) target = $region61
    $region60: #{tpu_custom_call.1} parent=1 // pred_region
      _
    $region61: #{tpu_custom_call.1} parent=1 // pred_fallthru
      _
    // Predicated region
    $region62: #{tpu_custom_call.1} parent=1 // pred_check
      _
    $region63: #{tpu_custom_call.1} parent=1 // pred_check_branch
      %61 = sbr.rel (0) target = $region65
    $region64: #{tpu_custom_call.1} parent=1 // pred_region
      _
    $region65: #{tpu_custom_call.1} parent=1 // pred_fallthru
      _
    // Predicated region
    $region66: #{tpu_custom_call.1} parent=1 // pred_check
      _
    $region67: #{tpu_custom_call.1} parent=1 // pred_check_branch
      %63 = sbr.rel (0) target = $region69
    $region68: #{tpu_custom_call.1} parent=1 // pred_region
      _
    $region69: #{tpu_custom_call.1} parent=1 // pred_fallthru
      _
    // Predicated region
    $region70: #{tpu_custom_call.1} parent=1 // pred_check
      _
    $region71: #{tpu_custom_call.1} parent=1 // pred_check_branch
      %65 = sbr.rel (0) target = $region73
    $region72: #{tpu_custom_call.1} parent=1 // pred_region
      _
    $region73: #{tpu_custom_call.1} parent=1 // pred_fallthru
      _
    // Predicated region
    $region74: #{tpu_custom_call.1} parent=1 // pred_check
      _
    $region75: #{tpu_custom_call.1} parent=1 // pred_check_branch
      %67 = sbr.rel (0) target = $region77
    $region76: #{tpu_custom_call.1} parent=1 // pred_region
      _
    $region77: #{tpu_custom_call.1} parent=1 // pred_fallthru
      _
    // Predicated region
    $region78: #{tpu_custom_call.1} parent=1 // pred_check
      _
    $region79: #{tpu_custom_call.1} parent=1 // pred_check_branch
      %69 = sbr.rel (0) target = $region81
    $region80: #{tpu_custom_call.1} parent=1 // pred_region
      _
    $region81: #{tpu_custom_call.1} parent=1 // pred_fallthru
      _
    // Predicated region
    $region82: #{tpu_custom_call.1} parent=1 // pred_check
      _
    $region83: #{tpu_custom_call.1} parent=1 // pred_check_branch
      %71 = sbr.rel (0) target = $region85
    $region84: #{tpu_custom_call.1} parent=1 // pred_region
      _
    $region85: #{tpu_custom_call.1} parent=1 // pred_fallthru
      _
    // Predicated region
    $region86: #{tpu_custom_call.1} parent=1 // pred_check
      _
    $region87: #{tpu_custom_call.1} parent=1 // pred_check_branch
      %73 = sbr.rel (0) target = $region89
    $region88: #{tpu_custom_call.1} parent=1 // pred_region
      _
    $region89: #{tpu_custom_call.1} parent=1 // pred_fallthru
      _
    // Predicated region
    $region90: #{tpu_custom_call.1} parent=1 // pred_check
      _
    $region91: #{tpu_custom_call.1} parent=1 // pred_check_branch
      %75 = sbr.rel (0) target = $region93
    $region92: #{tpu_custom_call.1} parent=1 // pred_region
      _
    $region93: #{tpu_custom_call.1} parent=1 // pred_fallthru
      _
    // Predicated region
    $region94: #{tpu_custom_call.1} parent=1 // pred_check
      _
    $region95: #{tpu_custom_call.1} parent=1 // pred_check_branch
      %77 = sbr.rel (0) target = $region97
    $region96: #{tpu_custom_call.1} parent=1 // pred_region
      _
    $region97: #{tpu_custom_call.1} parent=1 // pred_fallthru
      _
    %v79 = vld [vmem:[%s0] sm:$0xff]
    %v80 = vld [vmem:[%s0 + $0x8] sm:$0xff]
    %v81 = vld [vmem:[%s2] sm:$0x1]
    %v82 = vld [vmem:[%s3] sm:$0x1]
    %vm83 = vcmask 261120
    %v84 = vsel %vm83, %v79, 0.0
    %85 = vadd.xlane.f32.xlu0 %v84
    %v86 = vpop.xlane.xlu0 %85
    %v87 = vsel %vm83, %v80, 0.0
    %88 = vadd.xlane.f32.xlu0 %v87
    %v89 = vpop.xlane.xlu0 %88
    %v90 = vrcp.pop 32.0
    %v91 = vmul.f32 %v86, %v90
    %v92 = vmul.f32 %v89, %v90
    %v93 = vsub.f32 %v79, %v91
    %v94 = vsub.f32 %v80, %v92
    %v95 = vmul.f32 %v93, %v93
    %v96 = vmul.f32 %v94, %v94
    %v97 = vsel %vm83, %v95, 0.0
    %98 = vadd.xlane.f32.xlu0 %v97
    %v99 = vpop.xlane.xlu0 %98
    %v100 = vsel %vm83, %v96, 0.0
    %101 = vadd.xlane.f32.xlu0 %v100
    %v102 = vpop.xlane.xlu0 %101
    %v103 = vmul.f32 %v99, %v90
    %v104 = vmul.f32 %v102, %v90
    %v105 = vadd.f32 %v103, 1e-12
    %v106 = vadd.f32 %v104, 1e-12
    %v107 = vrsqrt.pop %v105
    %v108 = vrsqrt.pop %v106
    %v109 = vmul.f32 %v93, %v107
    %v110 = vmul.f32 %v94, %v108
    %v112 = vlaneseq
    %v113 = vshrl.u32 %v112, 7
    %v114 = vsub.s32 0, %v113
    %v115 = vrot.slane %v81, %v114
    %v117 = vmul.f32 %v109, %v115
    %v118 = vmul.f32 %v110, %v115
    %v120 = vlaneseq
    %v121 = vshrl.u32 %v120, 7
    %v122 = vsub.s32 0, %v121
    %v123 = vrot.slane %v82, %v122
    %v125 = vadd.f32 %v117, %v123
    %v126 = vadd.f32 %v118, %v123
    %v127 = vld [vmem:[%s1] sm:$0x1]
    %v129 = vlaneseq
    %v130 = vshrl.u32 %v129, 7
    %v131 = vsub.s32 0, %v130
    %v132 = vrot.slane %v127, %v131
    %s134 = scalar_lea.vmem %s1, 1
    %v135 = vld [vmem:[%s134] sm:$0x1]
    %v137 = vlaneseq
    %v138 = vshrl.u32 %v137, 7
    %v139 = vsub.s32 0, %v138
    %v140 = vrot.slane %v135, %v139
    %v142 = vpack.c.bf16 %v126, %v125
    %v143 = vld [vmem:[%s4] sm:$0xf]
    %v144 = vld [vmem:[%s4 + $0x4] sm:$0xf]
    %v145 = vld [vmem:[%s4 + $0x8] sm:$0xf]
    %v146 = vld [vmem:[%s4 + $0xc] sm:$0xf]
    %v147 = vld [vmem:[%s5] sm:$0x1]
    %v149 = vlaneseq
    %v150 = vshrl.u32 %v149, 7
    %v151 = vsub.s32 0, %v150
    %v152 = vrot.slane %v147, %v151
    %v158 = vunpack.c.l.b16 %v143
    %v159 = vunpack.c.l.b16 %v144
    %v160 = vunpack.c.l.b16 %v145
    %v161 = vunpack.c.l.b16 %v146
    %v162 = vpack.c.b16 %v159, %v158
    %v163 = vpack.c.b16 %v161, %v160
    %v167 = vsel %vm83, %v142, 0
    %169 = vmatprep.subr.bf16.mxu0 0
    %170 = vmatpush1.bf16.msra.mxu0 %v162
    %171 = vmatprep.subr.bf16.mxu0 0
    %172 = vmatpush1.bf16.msra.mxu0 %v163
    %173 = vmatprep.subr.bf16.mxu0 0
    %174 = vmatpush1.bf16.msra.mxu0 0
    %175 = vmatprep.subr.bf16.mxu0 0
    %176 = vmatpush1.bf16.msra.mxu0 0
    %177 = vmatprep.subr.bf16.mxu0 0
    %178 = vmatpush1.bf16.msra.mxu0 0
    %179 = vmatprep.subr.bf16.mxu0 0
    %180 = vmatpush1.bf16.msra.mxu0 0
    %181 = vmatprep.subr.bf16.mxu0 0
    %182 = vmatpush1.bf16.msra.mxu0 0
    %183 = vmatprep.subr.bf16.mxu0 0
    %184 = vmatpush1.bf16.msra.mxu0 0
    %185 = vmatprep.subr.bf16.mxu0 0
    %186 = vmatpush1.bf16.msra.mxu0 0
    %187 = vmatprep.subr.bf16.mxu0 0
    %188 = vmatpush1.bf16.msra.mxu0 0
    %189 = vmatprep.subr.bf16.mxu0 0
    %190 = vmatpush1.bf16.msra.mxu0 0
    %191 = vmatprep.subr.bf16.mxu0 0
    %192 = vmatpush1.bf16.msra.mxu0 0
    %193 = vmatprep.subr.bf16.mxu0 0
    %194 = vmatpush1.bf16.msra.mxu0 0
    %195 = vmatprep.subr.bf16.mxu0 0
    %196 = vmatpush1.bf16.msra.mxu0 0
    %197 = vmatprep.subr.bf16.mxu0 0
    %198 = vmatpush1.bf16.msra.mxu0 0
    %199 = vmatprep.subr.bf16.mxu0 0
    %200 = vmatpush1.bf16.msra.mxu0 0
    %201 = vmatprep.mubr.bf16.mxu0 0
    %202 = vmatmul.mubr.bf16.gmra.mrb[0].mxu0 %v167
    %v203 = vpop.f32.mrb[0].mxu0
    %v204 = vadd.f32 %v152, %v203
    %v205 = vpop.f32.mrb[0].mxu0
    %v206 = vpop.f32.mrb[0].mxu0
    %v207 = vadd.f32 %v152, %v206
    %v208 = vpop.f32.mrb[0].mxu0
    %209 = vdwg.mxu0
    %v210 = vld [vmem:[%s6] sm:$0xf]
    %v211 = vld [vmem:[%s6 + $0x4] sm:$0xf]
    %v212 = vld [vmem:[%s6 + $0x8] sm:$0xf]
    %v213 = vld [vmem:[%s6 + $0xc] sm:$0xf]
    %v214 = vld [vmem:[%s7] sm:$0x1]
    %v216 = vlaneseq
    %v217 = vshrl.u32 %v216, 7
    %v218 = vsub.s32 0, %v217
    %v219 = vrot.slane %v214, %v218
    %v225 = vunpack.c.l.b16 %v210
    %v226 = vunpack.c.l.b16 %v211
    %v227 = vunpack.c.l.b16 %v212
    %v228 = vunpack.c.l.b16 %v213
    %v229 = vpack.c.b16 %v226, %v225
    %v230 = vpack.c.b16 %v228, %v227
    %233 = vmatprep.subr.bf16.mxu0 0
    %234 = vmatpush1.bf16.msra.mxu0 %v229
    %235 = vmatprep.subr.bf16.mxu0 0
    %236 = vmatpush1.bf16.msra.mxu0 %v230
    %237 = vmatprep.subr.bf16.mxu0 0
    %238 = vmatpush1.bf16.msra.mxu0 0
    %239 = vmatprep.subr.bf16.mxu0 0
    %240 = vmatpush1.bf16.msra.mxu0 0
    %241 = vmatprep.subr.bf16.mxu0 0
    %242 = vmatpush1.bf16.msra.mxu0 0
    %243 = vmatprep.subr.bf16.mxu0 0
    %244 = vmatpush1.bf16.msra.mxu0 0
    %245 = vmatprep.subr.bf16.mxu0 0
    %246 = vmatpush1.bf16.msra.mxu0 0
    %247 = vmatprep.subr.bf16.mxu0 0
    %248 = vmatpush1.bf16.msra.mxu0 0
    %249 = vmatprep.subr.bf16.mxu0 0
    %250 = vmatpush1.bf16.msra.mxu0 0
    %251 = vmatprep.subr.bf16.mxu0 0
    %252 = vmatpush1.bf16.msra.mxu0 0
    %253 = vmatprep.subr.bf16.mxu0 0
    %254 = vmatpush1.bf16.msra.mxu0 0
    %255 = vmatprep.subr.bf16.mxu0 0
    %256 = vmatpush1.bf16.msra.mxu0 0
    %257 = vmatprep.subr.bf16.mxu0 0
    %258 = vmatpush1.bf16.msra.mxu0 0
    %259 = vmatprep.subr.bf16.mxu0 0
    %260 = vmatpush1.bf16.msra.mxu0 0
    %261 = vmatprep.subr.bf16.mxu0 0
    %262 = vmatpush1.bf16.msra.mxu0 0
    %263 = vmatprep.subr.bf16.mxu0 0
    %264 = vmatpush1.bf16.msra.mxu0 0
    %265 = vmatprep.mubr.bf16.mxu0 0
    %266 = vmatmul.mubr.bf16.gmra.mrb[0].mxu0 %v167
    %v267 = vpop.f32.mrb[0].mxu0
    %v268 = vadd.f32 %v219, %v267
    %v269 = vpop.f32.mrb[0].mxu0
    %v270 = vpop.f32.mrb[0].mxu0
    %v271 = vadd.f32 %v219, %v270
    %v272 = vpop.f32.mrb[0].mxu0
    %273 = vdwg.mxu0
    %v274 = vld [vmem:[%s8] sm:$0xf]
    %v275 = vld [vmem:[%s8 + $0x4] sm:$0xf]
    %v276 = vld [vmem:[%s8 + $0x8] sm:$0xf]
    %v277 = vld [vmem:[%s8 + $0xc] sm:$0xf]
    %v278 = vld [vmem:[%s9] sm:$0x1]
    %v280 = vlaneseq
    %v281 = vshrl.u32 %v280, 7
    %v282 = vsub.s32 0, %v281
    %v283 = vrot.slane %v278, %v282
    %v289 = vunpack.c.l.b16 %v274
    %v290 = vunpack.c.l.b16 %v275
    %v291 = vunpack.c.l.b16 %v276
    %v292 = vunpack.c.l.b16 %v277
    %v293 = vpack.c.b16 %v290, %v289
    %v294 = vpack.c.b16 %v292, %v291
    %297 = vmatprep.subr.bf16.mxu0 0
    %298 = vmatpush1.bf16.msra.mxu0 %v293
    %299 = vmatprep.subr.bf16.mxu0 0
    %300 = vmatpush1.bf16.msra.mxu0 %v294
    %301 = vmatprep.subr.bf16.mxu0 0
    %302 = vmatpush1.bf16.msra.mxu0 0
    %303 = vmatprep.subr.bf16.mxu0 0
    %304 = vmatpush1.bf16.msra.mxu0 0
    %305 = vmatprep.subr.bf16.mxu0 0
    %306 = vmatpush1.bf16.msra.mxu0 0
    %307 = vmatprep.subr.bf16.mxu0 0
    %308 = vmatpush1.bf16.msra.mxu0 0
    %309 = vmatprep.subr.bf16.mxu0 0
    %310 = vmatpush1.bf16.msra.mxu0 0
    %311 = vmatprep.subr.bf16.mxu0 0
    %312 = vmatpush1.bf16.msra.mxu0 0
    %313 = vmatprep.subr.bf16.mxu0 0
    %314 = vmatpush1.bf16.msra.mxu0 0
    %315 = vmatprep.subr.bf16.mxu0 0
    %316 = vmatpush1.bf16.msra.mxu0 0
    %317 = vmatprep.subr.bf16.mxu0 0
    %318 = vmatpush1.bf16.msra.mxu0 0
    %319 = vmatprep.subr.bf16.mxu0 0
    %320 = vmatpush1.bf16.msra.mxu0 0
    %321 = vmatprep.subr.bf16.mxu0 0
    %322 = vmatpush1.bf16.msra.mxu0 0
    %323 = vmatprep.subr.bf16.mxu0 0
    %324 = vmatpush1.bf16.msra.mxu0 0
    %325 = vmatprep.subr.bf16.mxu0 0
    %326 = vmatpush1.bf16.msra.mxu0 0
    %327 = vmatprep.subr.bf16.mxu0 0
    %328 = vmatpush1.bf16.msra.mxu0 0
    %329 = vmatprep.mubr.bf16.mxu0 0
    %330 = vmatmul.mubr.bf16.gmra.mrb[0].mxu0 %v167
    %v331 = vpop.f32.mrb[0].mxu0
    %v332 = vadd.f32 %v283, %v331
    %v333 = vpop.f32.mrb[0].mxu0
    %v334 = vpop.f32.mrb[0].mxu0
    %v335 = vadd.f32 %v283, %v334
    %v336 = vpop.f32.mrb[0].mxu0
    %337 = vdwg.mxu0
    %v338 = vpack.c.bf16 %v204, %v204
    %v339 = vpack.c.bf16 %v268, %v268
    %v340 = vpack.c.bf16 %v332, %v332
    %vm341 = vcmask 130048
    %v343 = vsel %vm341, %v338, 0
    %v346 = vsel %vm341, %v339, 0
    %348 = vmatprep.subr.bf16.mxu0 0
    %349 = vmatpush1.bf16.xpose.msra.mxu0 %v346
    %350 = vmatprep.subr.bf16.mxu0 0
    %351 = vmatpush1.bf16.xpose.msra.mxu0 0
    %352 = vmatprep.subr.bf16.mxu0 0
    %353 = vmatpush1.bf16.xpose.msra.mxu0 0
    %354 = vmatprep.subr.bf16.mxu0 0
    %355 = vmatpush1.bf16.xpose.msra.mxu0 0
    %356 = vmatprep.subr.bf16.mxu0 0
    %357 = vmatpush1.bf16.xpose.msra.mxu0 0
    %358 = vmatprep.subr.bf16.mxu0 0
    %359 = vmatpush1.bf16.xpose.msra.mxu0 0
    %360 = vmatprep.subr.bf16.mxu0 0
    %361 = vmatpush1.bf16.xpose.msra.mxu0 0
    %362 = vmatprep.subr.bf16.mxu0 0
    %363 = vmatpush1.bf16.xpose.msra.mxu0 0
    %364 = vmatprep.subr.bf16.mxu0 0
    %365 = vmatpush1.bf16.xpose.msra.mxu0 0
    %366 = vmatprep.subr.bf16.mxu0 0
    %367 = vmatpush1.bf16.xpose.msra.mxu0 0
    %368 = vmatprep.subr.bf16.mxu0 0
    %369 = vmatpush1.bf16.xpose.msra.mxu0 0
    %370 = vmatprep.subr.bf16.mxu0 0
    %371 = vmatpush1.bf16.xpose.msra.mxu0 0
    %372 = vmatprep.subr.bf16.mxu0 0
    %373 = vmatpush1.bf16.xpose.msra.mxu0 0
    %374 = vmatprep.subr.bf16.mxu0 0
    %375 = vmatpush1.bf16.xpose.msra.mxu0 0
    %376 = vmatprep.subr.bf16.mxu0 0
    %377 = vmatpush1.bf16.xpose.msra.mxu0 0
    %378 = vmatprep.subr.bf16.mxu0 0
    %379 = vmatpush1.bf16.xpose.msra.mxu0 0
    %380 = vmatprep.mubr.bf16.mxu0 0
    %381 = vmatmul.mubr.bf16.gmra.mrb[0].mxu0 %v343
    %v382 = vpop.f32.mrb[0].mxu0
    %v383 = vadd.f32 %v132, %v382
    %v384 = vpop.f32.mrb[0].mxu0
    %v385 = vpop.f32.mrb[0].mxu0
    %v386 = vpop.f32.mrb[0].mxu0
    %387 = vdwg.mxu0
    %vm388 = vcmask 64512
    %v389 = vsel %vm388, %v383, -inf
    %390 = vmax.xlane.f32.xlu0 %v389
    %v391 = vpop.xlane.xlu0 %390
    %v392 = vsub.f32 %v383, %v391
    %v393 = vmul.f32 %v392, 1.442695
    %v394 = vpow.pop %v393
    %v395 = vsel %vm388, %v394, 0.0
    %396 = vadd.xlane.f32.xlu0 %v395
    %v397 = vpop.xlane.xlu0 %396
    %v398 = vrcp.pop %v397
    %v399 = vmul.f32 %v394, %v398
    %v400 = vpack.c.bf16 %v399, %v399
    %v402 = vsel %vm388, %v400, 0
    %vm404 = vcmask 1043456
    %v406 = vsel %vm404, %v340, 0
    %408 = vmatprep.subr.bf16.mxu0 0
    %409 = vmatpush1.bf16.msra.mxu0 %v406
    %410 = vmatprep.subr.bf16.mxu0 0
    %411 = vmatpush1.bf16.msra.mxu0 0
    %412 = vmatprep.subr.bf16.mxu0 0
    %413 = vmatpush1.bf16.msra.mxu0 0
    %414 = vmatprep.subr.bf16.mxu0 0
    %415 = vmatpush1.bf16.msra.mxu0 0
    %416 = vmatprep.subr.bf16.mxu0 0
    %417 = vmatpush1.bf16.msra.mxu0 0
    %418 = vmatprep.subr.bf16.mxu0 0
    %419 = vmatpush1.bf16.msra.mxu0 0
    %420 = vmatprep.subr.bf16.mxu0 0
    %421 = vmatpush1.bf16.msra.mxu0 0
    %422 = vmatprep.subr.bf16.mxu0 0
    %423 = vmatpush1.bf16.msra.mxu0 0
    %424 = vmatprep.subr.bf16.mxu0 0
    %425 = vmatpush1.bf16.msra.mxu0 0
    %426 = vmatprep.subr.bf16.mxu0 0
    %427 = vmatpush1.bf16.msra.mxu0 0
    %428 = vmatprep.subr.bf16.mxu0 0
    %429 = vmatpush1.bf16.msra.mxu0 0
    %430 = vmatprep.subr.bf16.mxu0 0
    %431 = vmatpush1.bf16.msra.mxu0 0
    %432 = vmatprep.subr.bf16.mxu0 0
    %433 = vmatpush1.bf16.msra.mxu0 0
    %434 = vmatprep.subr.bf16.mxu0 0
    %435 = vmatpush1.bf16.msra.mxu0 0
    %436 = vmatprep.subr.bf16.mxu0 0
    %437 = vmatpush1.bf16.msra.mxu0 0
    %438 = vmatprep.subr.bf16.mxu0 0
    %439 = vmatpush1.bf16.msra.mxu0 0
    %440 = vmatprep.mubr.bf16.mxu0 0
    %441 = vmatmul.mubr.bf16.gmra.mrb[0].mxu0 %v402
    %v442 = vpop.f32.mrb[0].mxu0
    %v443 = vadd.f32 0.0, %v442
    %v444 = vpop.f32.mrb[0].mxu0
    %v445 = vpop.f32.mrb[0].mxu0
    %v446 = vpop.f32.mrb[0].mxu0
    %447 = vdwg.mxu0
    %v448 = vpack.c.bf16 %v207, %v207
    %v449 = vpack.c.bf16 %v271, %v271
    %v450 = vpack.c.bf16 %v335, %v335
    %v452 = vsel %vm341, %v448, 0
    %v455 = vsel %vm341, %v449, 0
    %457 = vmatprep.subr.bf16.mxu0 0
    %458 = vmatpush1.bf16.xpose.msra.mxu0 %v455
    %459 = vmatprep.subr.bf16.mxu0 0
    %460 = vmatpush1.bf16.xpose.msra.mxu0 0
    %461 = vmatprep.subr.bf16.mxu0 0
    %462 = vmatpush1.bf16.xpose.msra.mxu0 0
    %463 = vmatprep.subr.bf16.mxu0 0
    %464 = vmatpush1.bf16.xpose.msra.mxu0 0
    %465 = vmatprep.subr.bf16.mxu0 0
    %466 = vmatpush1.bf16.xpose.msra.mxu0 0
    %467 = vmatprep.subr.bf16.mxu0 0
    %468 = vmatpush1.bf16.xpose.msra.mxu0 0
    %469 = vmatprep.subr.bf16.mxu0 0
    %470 = vmatpush1.bf16.xpose.msra.mxu0 0
    %471 = vmatprep.subr.bf16.mxu0 0
    %472 = vmatpush1.bf16.xpose.msra.mxu0 0
    %473 = vmatprep.subr.bf16.mxu0 0
    %474 = vmatpush1.bf16.xpose.msra.mxu0 0
    %475 = vmatprep.subr.bf16.mxu0 0
    %476 = vmatpush1.bf16.xpose.msra.mxu0 0
    %477 = vmatprep.subr.bf16.mxu0 0
    %478 = vmatpush1.bf16.xpose.msra.mxu0 0
    %479 = vmatprep.subr.bf16.mxu0 0
    %480 = vmatpush1.bf16.xpose.msra.mxu0 0
    %481 = vmatprep.subr.bf16.mxu0 0
    %482 = vmatpush1.bf16.xpose.msra.mxu0 0
    %483 = vmatprep.subr.bf16.mxu0 0
    %484 = vmatpush1.bf16.xpose.msra.mxu0 0
    %485 = vmatprep.subr.bf16.mxu0 0
    %486 = vmatpush1.bf16.xpose.msra.mxu0 0
    %487 = vmatprep.subr.bf16.mxu0 0
    %488 = vmatpush1.bf16.xpose.msra.mxu0 0
    %489 = vmatprep.mubr.bf16.mxu0 0
    %490 = vmatmul.mubr.bf16.gmra.mrb[0].mxu0 %v452
    %v491 = vpop.f32.mrb[0].mxu0
    %v492 = vadd.f32 %v140, %v491
    %v493 = vpop.f32.mrb[0].mxu0
    %v494 = vpop.f32.mrb[0].mxu0
    %v495 = vpop.f32.mrb[0].mxu0
    %496 = vdwg.mxu0
    %v497 = vsel %vm388, %v492, -inf
    %498 = vmax.xlane.f32.xlu0 %v497
    %v499 = vpop.xlane.xlu0 %498
    %v500 = vsub.f32 %v492, %v499
    %v501 = vmul.f32 %v500, 1.442695
    %v502 = vpow.pop %v501
    %v503 = vsel %vm388, %v502, 0.0
    %504 = vadd.xlane.f32.xlu0 %v503
    %v505 = vpop.xlane.xlu0 %504
    %v506 = vrcp.pop %v505
    %v507 = vmul.f32 %v502, %v506
    %v508 = vpack.c.bf16 %v507, %v507
    %v510 = vsel %vm388, %v508, 0
    %v513 = vsel %vm404, %v450, 0
    %515 = vmatprep.subr.bf16.mxu0 0
    %516 = vmatpush1.bf16.msra.mxu0 %v513
    %517 = vmatprep.subr.bf16.mxu0 0
    %518 = vmatpush1.bf16.msra.mxu0 0
    %519 = vmatprep.subr.bf16.mxu0 0
    %520 = vmatpush1.bf16.msra.mxu0 0
    %521 = vmatprep.subr.bf16.mxu0 0
    %522 = vmatpush1.bf16.msra.mxu0 0
    %523 = vmatprep.subr.bf16.mxu0 0
    %524 = vmatpush1.bf16.msra.mxu0 0
    %525 = vmatprep.subr.bf16.mxu0 0
    %526 = vmatpush1.bf16.msra.mxu0 0
    %527 = vmatprep.subr.bf16.mxu0 0
    %528 = vmatpush1.bf16.msra.mxu0 0
    %529 = vmatprep.subr.bf16.mxu0 0
    %530 = vmatpush1.bf16.msra.mxu0 0
    %531 = vmatprep.subr.bf16.mxu0 0
    %532 = vmatpush1.bf16.msra.mxu0 0
    %533 = vmatprep.subr.bf16.mxu0 0
    %534 = vmatpush1.bf16.msra.mxu0 0
    %535 = vmatprep.subr.bf16.mxu0 0
    %536 = vmatpush1.bf16.msra.mxu0 0
    %537 = vmatprep.subr.bf16.mxu0 0
    %538 = vmatpush1.bf16.msra.mxu0 0
    %539 = vmatprep.subr.bf16.mxu0 0
    %540 = vmatpush1.bf16.msra.mxu0 0
    %541 = vmatprep.subr.bf16.mxu0 0
    %542 = vmatpush1.bf16.msra.mxu0 0
    %543 = vmatprep.subr.bf16.mxu0 0
    %544 = vmatpush1.bf16.msra.mxu0 0
    %545 = vmatprep.subr.bf16.mxu0 0
    %546 = vmatpush1.bf16.msra.mxu0 0
    %547 = vmatprep.mubr.bf16.mxu0 0
    %548 = vmatmul.mubr.bf16.gmra.mrb[0].mxu0 %v510
    %v549 = vpop.f32.mrb[0].mxu0
    %v550 = vadd.f32 0.0, %v549
    %v551 = vpop.f32.mrb[0].mxu0
    %v552 = vpop.f32.mrb[0].mxu0
    %v553 = vpop.f32.mrb[0].mxu0
    %554 = vdwg.mxu0
    %v555 = vld [vmem:[%s10] sm:$0xf]
    %v556 = vld [vmem:[%s10 + $0x4] sm:$0xf]
    %v557 = vpack.c.bf16 %v550, %v443
    %s558 = scalar_lea.vmem %s4, 16
    %v559 = vld [vmem:[%s558] sm:$0xf]
    %v560 = vld [vmem:[%s558 + $0x4] sm:$0xf]
    %v561 = vld [vmem:[%s558 + $0x8] sm:$0xf]
    %v562 = vld [vmem:[%s558 + $0xc] sm:$0xf]
    %s563 = scalar_lea.vmem %s5, 1
    %v564 = vld [vmem:[%s563] sm:$0x1]
    %v566 = vlaneseq
    %v567 = vshrl.u32 %v566, 7
    %v568 = vsub.s32 0, %v567
    %v569 = vrot.slane %v564, %v568
    %v575 = vunpack.c.l.b16 %v559
    %v576 = vunpack.c.l.b16 %v560
    %v577 = vunpack.c.l.b16 %v561
    %v578 = vunpack.c.l.b16 %v562
    %v579 = vpack.c.b16 %v576, %v575
    %v580 = vpack.c.b16 %v578, %v577
    %583 = vmatprep.subr.bf16.mxu0 0
    %584 = vmatpush1.bf16.msra.mxu0 %v579
    %585 = vmatprep.subr.bf16.mxu0 0
    %586 = vmatpush1.bf16.msra.mxu0 %v580
    %587 = vmatprep.subr.bf16.mxu0 0
    %588 = vmatpush1.bf16.msra.mxu0 0
    %589 = vmatprep.subr.bf16.mxu0 0
    %590 = vmatpush1.bf16.msra.mxu0 0
    %591 = vmatprep.subr.bf16.mxu0 0
    %592 = vmatpush1.bf16.msra.mxu0 0
    %593 = vmatprep.subr.bf16.mxu0 0
    %594 = vmatpush1.bf16.msra.mxu0 0
    %595 = vmatprep.subr.bf16.mxu0 0
    %596 = vmatpush1.bf16.msra.mxu0 0
    %597 = vmatprep.subr.bf16.mxu0 0
    %598 = vmatpush1.bf16.msra.mxu0 0
    %599 = vmatprep.subr.bf16.mxu0 0
    %600 = vmatpush1.bf16.msra.mxu0 0
    %601 = vmatprep.subr.bf16.mxu0 0
    %602 = vmatpush1.bf16.msra.mxu0 0
    %603 = vmatprep.subr.bf16.mxu0 0
    %604 = vmatpush1.bf16.msra.mxu0 0
    %605 = vmatprep.subr.bf16.mxu0 0
    %606 = vmatpush1.bf16.msra.mxu0 0
    %607 = vmatprep.subr.bf16.mxu0 0
    %608 = vmatpush1.bf16.msra.mxu0 0
    %609 = vmatprep.subr.bf16.mxu0 0
    %610 = vmatpush1.bf16.msra.mxu0 0
    %611 = vmatprep.subr.bf16.mxu0 0
    %612 = vmatpush1.bf16.msra.mxu0 0
    %613 = vmatprep.subr.bf16.mxu0 0
    %614 = vmatpush1.bf16.msra.mxu0 0
    %615 = vmatprep.mubr.bf16.mxu0 0
    %616 = vmatmul.mubr.bf16.gmra.mrb[0].mxu0 %v167
    %v617 = vpop.f32.mrb[0].mxu0
    %v618 = vadd.f32 %v569, %v617
    %v619 = vpop.f32.mrb[0].mxu0
    %v620 = vpop.f32.mrb[0].mxu0
    %v621 = vadd.f32 %v569, %v620
    %v622 = vpop.f32.mrb[0].mxu0
    %623 = vdwg.mxu0
    %s624 = scalar_lea.vmem %s6, 16
    %v625 = vld [vmem:[%s624] sm:$0xf]
    %v626 = vld [vmem:[%s624 + $0x4] sm:$0xf]
    %v627 = vld [vmem:[%s624 + $0x8] sm:$0xf]
    %v628 = vld [vmem:[%s624 + $0xc] sm:$0xf]
    %s629 = scalar_lea.vmem %s7, 1
    %v630 = vld [vmem:[%s629] sm:$0x1]
    %v632 = vlaneseq
    %v633 = vshrl.u32 %v632, 7
    %v634 = vsub.s32 0, %v633
    %v635 = vrot.slane %v630, %v634
    %v641 = vunpack.c.l.b16 %v625
    %v642 = vunpack.c.l.b16 %v626
    %v643 = vunpack.c.l.b16 %v627
    %v644 = vunpack.c.l.b16 %v628
    %v645 = vpack.c.b16 %v642, %v641
    %v646 = vpack.c.b16 %v644, %v643
    %649 = vmatprep.subr.bf16.mxu0 0
    %650 = vmatpush1.bf16.msra.mxu0 %v645
    %651 = vmatprep.subr.bf16.mxu0 0
    %652 = vmatpush1.bf16.msra.mxu0 %v646
    %653 = vmatprep.subr.bf16.mxu0 0
    %654 = vmatpush1.bf16.msra.mxu0 0
    %655 = vmatprep.subr.bf16.mxu0 0
    %656 = vmatpush1.bf16.msra.mxu0 0
    %657 = vmatprep.subr.bf16.mxu0 0
    %658 = vmatpush1.bf16.msra.mxu0 0
    %659 = vmatprep.subr.bf16.mxu0 0
    %660 = vmatpush1.bf16.msra.mxu0 0
    %661 = vmatprep.subr.bf16.mxu0 0
    %662 = vmatpush1.bf16.msra.mxu0 0
    %663 = vmatprep.subr.bf16.mxu0 0
    %664 = vmatpush1.bf16.msra.mxu0 0
    %665 = vmatprep.subr.bf16.mxu0 0
    %666 = vmatpush1.bf16.msra.mxu0 0
    %667 = vmatprep.subr.bf16.mxu0 0
    %668 = vmatpush1.bf16.msra.mxu0 0
    %669 = vmatprep.subr.bf16.mxu0 0
    %670 = vmatpush1.bf16.msra.mxu0 0
    %671 = vmatprep.subr.bf16.mxu0 0
    %672 = vmatpush1.bf16.msra.mxu0 0
    %673 = vmatprep.subr.bf16.mxu0 0
    %674 = vmatpush1.bf16.msra.mxu0 0
    %675 = vmatprep.subr.bf16.mxu0 0
    %676 = vmatpush1.bf16.msra.mxu0 0
    %677 = vmatprep.subr.bf16.mxu0 0
    %678 = vmatpush1.bf16.msra.mxu0 0
    %679 = vmatprep.subr.bf16.mxu0 0
    %680 = vmatpush1.bf16.msra.mxu0 0
    %681 = vmatprep.mubr.bf16.mxu0 0
    %682 = vmatmul.mubr.bf16.gmra.mrb[0].mxu0 %v167
    %v683 = vpop.f32.mrb[0].mxu0
    %v684 = vadd.f32 %v635, %v683
    %v685 = vpop.f32.mrb[0].mxu0
    %v686 = vpop.f32.mrb[0].mxu0
    %v687 = vadd.f32 %v635, %v686
    %v688 = vpop.f32.mrb[0].mxu0
    %689 = vdwg.mxu0
    %s690 = scalar_lea.vmem %s8, 16
    %v691 = vld [vmem:[%s690] sm:$0xf]
    %v692 = vld [vmem:[%s690 + $0x4] sm:$0xf]
    %v693 = vld [vmem:[%s690 + $0x8] sm:$0xf]
    %v694 = vld [vmem:[%s690 + $0xc] sm:$0xf]
    %s695 = scalar_lea.vmem %s9, 1
    %v696 = vld [vmem:[%s695] sm:$0x1]
    %v698 = vlaneseq
    %v699 = vshrl.u32 %v698, 7
    %v700 = vsub.s32 0, %v699
    %v701 = vrot.slane %v696, %v700
    %v707 = vunpack.c.l.b16 %v691
    %v708 = vunpack.c.l.b16 %v692
    %v709 = vunpack.c.l.b16 %v693
    %v710 = vunpack.c.l.b16 %v694
    %v711 = vpack.c.b16 %v708, %v707
    %v712 = vpack.c.b16 %v710, %v709
    %715 = vmatprep.subr.bf16.mxu0 0
    %716 = vmatpush1.bf16.msra.mxu0 %v711
    %717 = vmatprep.subr.bf16.mxu0 0
    %718 = vmatpush1.bf16.msra.mxu0 %v712
    %719 = vmatprep.subr.bf16.mxu0 0
    %720 = vmatpush1.bf16.msra.mxu0 0
    %721 = vmatprep.subr.bf16.mxu0 0
    %722 = vmatpush1.bf16.msra.mxu0 0
    %723 = vmatprep.subr.bf16.mxu0 0
    %724 = vmatpush1.bf16.msra.mxu0 0
    %725 = vmatprep.subr.bf16.mxu0 0
    %726 = vmatpush1.bf16.msra.mxu0 0
    %727 = vmatprep.subr.bf16.mxu0 0
    %728 = vmatpush1.bf16.msra.mxu0 0
    %729 = vmatprep.subr.bf16.mxu0 0
    %730 = vmatpush1.bf16.msra.mxu0 0
    %731 = vmatprep.subr.bf16.mxu0 0
    %732 = vmatpush1.bf16.msra.mxu0 0
    %733 = vmatprep.subr.bf16.mxu0 0
    %734 = vmatpush1.bf16.msra.mxu0 0
    %735 = vmatprep.subr.bf16.mxu0 0
    %736 = vmatpush1.bf16.msra.mxu0 0
    %737 = vmatprep.subr.bf16.mxu0 0
    %738 = vmatpush1.bf16.msra.mxu0 0
    %739 = vmatprep.subr.bf16.mxu0 0
    %740 = vmatpush1.bf16.msra.mxu0 0
    %741 = vmatprep.subr.bf16.mxu0 0
    %742 = vmatpush1.bf16.msra.mxu0 0
    %743 = vmatprep.subr.bf16.mxu0 0
    %744 = vmatpush1.bf16.msra.mxu0 0
    %745 = vmatprep.subr.bf16.mxu0 0
    %746 = vmatpush1.bf16.msra.mxu0 0
    %747 = vmatprep.mubr.bf16.mxu0 0
    %748 = vmatmul.mubr.bf16.gmra.mrb[0].mxu0 %v167
    %v749 = vpop.f32.mrb[0].mxu0
    %v750 = vadd.f32 %v701, %v749
    %v751 = vpop.f32.mrb[0].mxu0
    %v752 = vpop.f32.mrb[0].mxu0
    %v753 = vadd.f32 %v701, %v752
    %v754 = vpop.f32.mrb[0].mxu0
    %755 = vdwg.mxu0
    %v756 = vpack.c.bf16 %v618, %v618
    %v757 = vpack.c.bf16 %v684, %v684
    %v758 = vpack.c.bf16 %v750, %v750
    %v760 = vsel %vm341, %v756, 0
    %v763 = vsel %vm341, %v757, 0
    %765 = vmatprep.subr.bf16.mxu0 0
    %766 = vmatpush1.bf16.xpose.msra.mxu0 %v763
    %767 = vmatprep.subr.bf16.mxu0 0
    %768 = vmatpush1.bf16.xpose.msra.mxu0 0
    %769 = vmatprep.subr.bf16.mxu0 0
    %770 = vmatpush1.bf16.xpose.msra.mxu0 0
    %771 = vmatprep.subr.bf16.mxu0 0
    %772 = vmatpush1.bf16.xpose.msra.mxu0 0
    %773 = vmatprep.subr.bf16.mxu0 0
    %774 = vmatpush1.bf16.xpose.msra.mxu0 0
    %775 = vmatprep.subr.bf16.mxu0 0
    %776 = vmatpush1.bf16.xpose.msra.mxu0 0
    %777 = vmatprep.subr.bf16.mxu0 0
    %778 = vmatpush1.bf16.xpose.msra.mxu0 0
    %779 = vmatprep.subr.bf16.mxu0 0
    %780 = vmatpush1.bf16.xpose.msra.mxu0 0
    %781 = vmatprep.subr.bf16.mxu0 0
    %782 = vmatpush1.bf16.xpose.msra.mxu0 0
    %783 = vmatprep.subr.bf16.mxu0 0
    %784 = vmatpush1.bf16.xpose.msra.mxu0 0
    %785 = vmatprep.subr.bf16.mxu0 0
    %786 = vmatpush1.bf16.xpose.msra.mxu0 0
    %787 = vmatprep.subr.bf16.mxu0 0
    %788 = vmatpush1.bf16.xpose.msra.mxu0 0
    %789 = vmatprep.subr.bf16.mxu0 0
    %790 = vmatpush1.bf16.xpose.msra.mxu0 0
    %791 = vmatprep.subr.bf16.mxu0 0
    %792 = vmatpush1.bf16.xpose.msra.mxu0 0
    %793 = vmatprep.subr.bf16.mxu0 0
    %794 = vmatpush1.bf16.xpose.msra.mxu0 0
    %795 = vmatprep.subr.bf16.mxu0 0
    %796 = vmatpush1.bf16.xpose.msra.mxu0 0
    %797 = vmatprep.mubr.bf16.mxu0 0
    %798 = vmatmul.mubr.bf16.gmra.mrb[0].mxu0 %v760
    %v799 = vpop.f32.mrb[0].mxu0
    %v800 = vadd.f32 %v132, %v799
    %v801 = vpop.f32.mrb[0].mxu0
    %v802 = vpop.f32.mrb[0].mxu0
    %v803 = vpop.f32.mrb[0].mxu0
    %804 = vdwg.mxu0
    %v805 = vsel %vm388, %v800, -inf
    %806 = vmax.xlane.f32.xlu0 %v805
    %v807 = vpop.xlane.xlu0 %806
    %v808 = vsub.f32 %v800, %v807
    %v809 = vmul.f32 %v808, 1.442695
    %v810 = vpow.pop %v809
    %v811 = vsel %vm388, %v810, 0.0
    %812 = vadd.xlane.f32.xlu0 %v811
    %v813 = vpop.xlane.xlu0 %812
    %v814 = vrcp.pop %v813
    %v815 = vmul.f32 %v810, %v814
    %v816 = vpack.c.bf16 %v815, %v815
    %v818 = vsel %vm388, %v816, 0
    %v821 = vsel %vm404, %v758, 0
    %823 = vmatprep.subr.bf16.mxu0 0
    %824 = vmatpush1.bf16.msra.mxu0 %v821
    %825 = vmatprep.subr.bf16.mxu0 0
    %826 = vmatpush1.bf16.msra.mxu0 0
    %827 = vmatprep.subr.bf16.mxu0 0
    %828 = vmatpush1.bf16.msra.mxu0 0
    %829 = vmatprep.subr.bf16.mxu0 0
    %830 = vmatpush1.bf16.msra.mxu0 0
    %831 = vmatprep.subr.bf16.mxu0 0
    %832 = vmatpush1.bf16.msra.mxu0 0
    %833 = vmatprep.subr.bf16.mxu0 0
    %834 = vmatpush1.bf16.msra.mxu0 0
    %835 = vmatprep.subr.bf16.mxu0 0
    %836 = vmatpush1.bf16.msra.mxu0 0
    %837 = vmatprep.subr.bf16.mxu0 0
    %838 = vmatpush1.bf16.msra.mxu0 0
    %839 = vmatprep.subr.bf16.mxu0 0
    %840 = vmatpush1.bf16.msra.mxu0 0
    %841 = vmatprep.subr.bf16.mxu0 0
    %842 = vmatpush1.bf16.msra.mxu0 0
    %843 = vmatprep.subr.bf16.mxu0 0
    %844 = vmatpush1.bf16.msra.mxu0 0
    %845 = vmatprep.subr.bf16.mxu0 0
    %846 = vmatpush1.bf16.msra.mxu0 0
    %847 = vmatprep.subr.bf16.mxu0 0
    %848 = vmatpush1.bf16.msra.mxu0 0
    %849 = vmatprep.subr.bf16.mxu0 0
    %850 = vmatpush1.bf16.msra.mxu0 0
    %851 = vmatprep.subr.bf16.mxu0 0
    %852 = vmatpush1.bf16.msra.mxu0 0
    %853 = vmatprep.subr.bf16.mxu0 0
    %854 = vmatpush1.bf16.msra.mxu0 0
    %855 = vmatprep.mubr.bf16.mxu0 0
    %856 = vmatmul.mubr.bf16.gmra.mrb[0].mxu0 %v818
    %v857 = vpop.f32.mrb[0].mxu0
    %v858 = vadd.f32 0.0, %v857
    %v859 = vpop.f32.mrb[0].mxu0
    %v860 = vpop.f32.mrb[0].mxu0
    %v861 = vpop.f32.mrb[0].mxu0
    %862 = vdwg.mxu0
    %v863 = vpack.c.bf16 %v621, %v621
    %v864 = vpack.c.bf16 %v687, %v687
    %v865 = vpack.c.bf16 %v753, %v753
    %v867 = vsel %vm341, %v863, 0
    %v870 = vsel %vm341, %v864, 0
    %872 = vmatprep.subr.bf16.mxu0 0
    %873 = vmatpush1.bf16.xpose.msra.mxu0 %v870
    %874 = vmatprep.subr.bf16.mxu0 0
    %875 = vmatpush1.bf16.xpose.msra.mxu0 0
    %876 = vmatprep.subr.bf16.mxu0 0
    %877 = vmatpush1.bf16.xpose.msra.mxu0 0
    %878 = vmatprep.subr.bf16.mxu0 0
    %879 = vmatpush1.bf16.xpose.msra.mxu0 0
    %880 = vmatprep.subr.bf16.mxu0 0
    %881 = vmatpush1.bf16.xpose.msra.mxu0 0
    %882 = vmatprep.subr.bf16.mxu0 0
    %883 = vmatpush1.bf16.xpose.msra.mxu0 0
    %884 = vmatprep.subr.bf16.mxu0 0
    %885 = vmatpush1.bf16.xpose.msra.mxu0 0
    %886 = vmatprep.subr.bf16.mxu0 0
    %887 = vmatpush1.bf16.xpose.msra.mxu0 0
    %888 = vmatprep.subr.bf16.mxu0 0
    %889 = vmatpush1.bf16.xpose.msra.mxu0 0
    %890 = vmatprep.subr.bf16.mxu0 0
    %891 = vmatpush1.bf16.xpose.msra.mxu0 0
    %892 = vmatprep.subr.bf16.mxu0 0
    %893 = vmatpush1.bf16.xpose.msra.mxu0 0
    %894 = vmatprep.subr.bf16.mxu0 0
    %895 = vmatpush1.bf16.xpose.msra.mxu0 0
    %896 = vmatprep.subr.bf16.mxu0 0
    %897 = vmatpush1.bf16.xpose.msra.mxu0 0
    %898 = vmatprep.subr.bf16.mxu0 0
    %899 = vmatpush1.bf16.xpose.msra.mxu0 0
    %900 = vmatprep.subr.bf16.mxu0 0
    %901 = vmatpush1.bf16.xpose.msra.mxu0 0
    %902 = vmatprep.subr.bf16.mxu0 0
    %903 = vmatpush1.bf16.xpose.msra.mxu0 0
    %904 = vmatprep.mubr.bf16.mxu0 0
    %905 = vmatmul.mubr.bf16.gmra.mrb[0].mxu0 %v867
    %v906 = vpop.f32.mrb[0].mxu0
    %v907 = vadd.f32 %v140, %v906
    %v908 = vpop.f32.mrb[0].mxu0
    %v909 = vpop.f32.mrb[0].mxu0
    %v910 = vpop.f32.mrb[0].mxu0
    %911 = vdwg.mxu0
    %v912 = vsel %vm388, %v907, -inf
    %913 = vmax.xlane.f32.xlu0 %v912
    %v914 = vpop.xlane.xlu0 %913
    %v915 = vsub.f32 %v907, %v914
    %v916 = vmul.f32 %v915, 1.442695
    %v917 = vpow.pop %v916
    %v918 = vsel %vm388, %v917, 0.0
    %919 = vadd.xlane.f32.xlu0 %v918
    %v920 = vpop.xlane.xlu0 %919
    %v921 = vrcp.pop %v920
    %v922 = vmul.f32 %v917, %v921
    %v923 = vpack.c.bf16 %v922, %v922
    %v925 = vsel %vm388, %v923, 0
    %v928 = vsel %vm404, %v865, 0
    %930 = vmatprep.subr.bf16.mxu0 0
    %931 = vmatpush1.bf16.msra.mxu0 %v928
    %932 = vmatprep.subr.bf16.mxu0 0
    %933 = vmatpush1.bf16.msra.mxu0 0
    %934 = vmatprep.subr.bf16.mxu0 0
    %935 = vmatpush1.bf16.msra.mxu0 0
    %936 = vmatprep.subr.bf16.mxu0 0
    %937 = vmatpush1.bf16.msra.mxu0 0
    %938 = vmatprep.subr.bf16.mxu0 0
    %939 = vmatpush1.bf16.msra.mxu0 0
    %940 = vmatprep.subr.bf16.mxu0 0
    %941 = vmatpush1.bf16.msra.mxu0 0
    %942 = vmatprep.subr.bf16.mxu0 0
    %943 = vmatpush1.bf16.msra.mxu0 0
    %944 = vmatprep.subr.bf16.mxu0 0
    %945 = vmatpush1.bf16.msra.mxu0 0
    %946 = vmatprep.subr.bf16.mxu0 0
    %947 = vmatpush1.bf16.msra.mxu0 0
    %948 = vmatprep.subr.bf16.mxu0 0
    %949 = vmatpush1.bf16.msra.mxu0 0
    %950 = vmatprep.subr.bf16.mxu0 0
    %951 = vmatpush1.bf16.msra.mxu0 0
    %952 = vmatprep.subr.bf16.mxu0 0
    %953 = vmatpush1.bf16.msra.mxu0 0
    %954 = vmatprep.subr.bf16.mxu0 0
    %955 = vmatpush1.bf16.msra.mxu0 0
    %956 = vmatprep.subr.bf16.mxu0 0
    %957 = vmatpush1.bf16.msra.mxu0 0
    %958 = vmatprep.subr.bf16.mxu0 0
    %959 = vmatpush1.bf16.msra.mxu0 0
    %960 = vmatprep.subr.bf16.mxu0 0
    %961 = vmatpush1.bf16.msra.mxu0 0
    %962 = vmatprep.mubr.bf16.mxu0 0
    %963 = vmatmul.mubr.bf16.gmra.mrb[0].mxu0 %v925
    %v964 = vpop.f32.mrb[0].mxu0
    %v965 = vadd.f32 0.0, %v964
    %v966 = vpop.f32.mrb[0].mxu0
    %v967 = vpop.f32.mrb[0].mxu0
    %v968 = vpop.f32.mrb[0].mxu0
    %969 = vdwg.mxu0
    %s970 = scalar_lea.vmem %s10, 8
    %v971 = vld [vmem:[%s970] sm:$0xf]
    %v972 = vld [vmem:[%s970 + $0x4] sm:$0xf]
    %v973 = vpack.c.bf16 %v965, %v858
    %v976 = vunpack.c.l.b16 %v971
    %v977 = vunpack.c.l.b16 %v972
    %v978 = vpack.c.b16 %v977, %v976
    %v981 = vsel %vm341, %v973, 0
    %983 = vmatprep.subr.bf16.mxu0 0
    %984 = vmatpush1.bf16.msra.mxu0 %v978
    %985 = vmatprep.subr.bf16.mxu0 0
    %986 = vmatpush1.bf16.msra.mxu0 0
    %987 = vmatprep.subr.bf16.mxu0 0
    %988 = vmatpush1.bf16.msra.mxu0 0
    %989 = vmatprep.subr.bf16.mxu0 0
    %990 = vmatpush1.bf16.msra.mxu0 0
    %991 = vmatprep.subr.bf16.mxu0 0
    %992 = vmatpush1.bf16.msra.mxu0 0
    %993 = vmatprep.subr.bf16.mxu0 0
    %994 = vmatpush1.bf16.msra.mxu0 0
    %995 = vmatprep.subr.bf16.mxu0 0
    %996 = vmatpush1.bf16.msra.mxu0 0
    %997 = vmatprep.subr.bf16.mxu0 0
    %998 = vmatpush1.bf16.msra.mxu0 0
    %999 = vmatprep.subr.bf16.mxu0 0
    %1000 = vmatpush1.bf16.msra.mxu0 0
    %1001 = vmatprep.subr.bf16.mxu0 0
    %1002 = vmatpush1.bf16.msra.mxu0 0
    %1003 = vmatprep.subr.bf16.mxu0 0
    %1004 = vmatpush1.bf16.msra.mxu0 0
    %1005 = vmatprep.subr.bf16.mxu0 0
    %1006 = vmatpush1.bf16.msra.mxu0 0
    %1007 = vmatprep.subr.bf16.mxu0 0
    %1008 = vmatpush1.bf16.msra.mxu0 0
    %1009 = vmatprep.subr.bf16.mxu0 0
    %1010 = vmatpush1.bf16.msra.mxu0 0
    %1011 = vmatprep.subr.bf16.mxu0 0
    %1012 = vmatpush1.bf16.msra.mxu0 0
    %1013 = vmatprep.subr.bf16.mxu0 0
    %1014 = vmatpush1.bf16.msra.mxu0 0
    %1015 = vmatprep.mubr.bf16.mxu0 0
    %1016 = vmatmul.mubr.bf16.gmra.mrb[0].mxu0 %v981
    %v1017 = vpop.f32.mrb[0].mxu0
    %v1018 = vadd.f32 0.0, %v1017
    %v1019 = vpop.f32.mrb[0].mxu0
    %v1020 = vpop.f32.mrb[0].mxu0
    %v1021 = vadd.f32 0.0, %v1020
    %v1022 = vpop.f32.mrb[0].mxu0
    %1023 = vdwg.mxu0
    %v1026 = vunpack.c.l.b16 %v555
    %v1027 = vunpack.c.l.b16 %v556
    %v1028 = vpack.c.b16 %v1027, %v1026
    %v1031 = vsel %vm341, %v557, 0
    %1033 = vmatprep.subr.bf16.mxu0 0
    %1034 = vmatpush1.bf16.msra.mxu0 %v1028
    %1035 = vmatprep.subr.bf16.mxu0 0
    %1036 = vmatpush1.bf16.msra.mxu0 0
    %1037 = vmatprep.subr.bf16.mxu0 0
    %1038 = vmatpush1.bf16.msra.mxu0 0
    %1039 = vmatprep.subr.bf16.mxu0 0
    %1040 = vmatpush1.bf16.msra.mxu0 0
    %1041 = vmatprep.subr.bf16.mxu0 0
    %1042 = vmatpush1.bf16.msra.mxu0 0
    %1043 = vmatprep.subr.bf16.mxu0 0
    %1044 = vmatpush1.bf16.msra.mxu0 0
    %1045 = vmatprep.subr.bf16.mxu0 0
    %1046 = vmatpush1.bf16.msra.mxu0 0
    %1047 = vmatprep.subr.bf16.mxu0 0
    %1048 = vmatpush1.bf16.msra.mxu0 0
    %1049 = vmatprep.subr.bf16.mxu0 0
    %1050 = vmatpush1.bf16.msra.mxu0 0
    %1051 = vmatprep.subr.bf16.mxu0 0
    %1052 = vmatpush1.bf16.msra.mxu0 0
    %1053 = vmatprep.subr.bf16.mxu0 0
    %1054 = vmatpush1.bf16.msra.mxu0 0
    %1055 = vmatprep.subr.bf16.mxu0 0
    %1056 = vmatpush1.bf16.msra.mxu0 0
    %1057 = vmatprep.subr.bf16.mxu0 0
    %1058 = vmatpush1.bf16.msra.mxu0 0
    %1059 = vmatprep.subr.bf16.mxu0 0
    %1060 = vmatpush1.bf16.msra.mxu0 0
    %1061 = vmatprep.subr.bf16.mxu0 0
    %1062 = vmatpush1.bf16.msra.mxu0 0
    %1063 = vmatprep.subr.bf16.mxu0 0
    %1064 = vmatpush1.bf16.msra.mxu0 0
    %1065 = vmatprep.mubr.bf16.mxu0 0
    %1066 = vmatmul.mubr.bf16.gmra.mrb[0].mxu0 %v1031
    %v1067 = vpop.f32.mrb[0].mxu0
    %v1068 = vadd.f32 %v1018, %v1067
    %v1069 = vpop.f32.mrb[0].mxu0
    %v1070 = vpop.f32.mrb[0].mxu0
    %v1071 = vadd.f32 %v1021, %v1070
    %v1072 = vpop.f32.mrb[0].mxu0
    %1073 = vdwg.mxu0
    %v1074 = vld [vmem:[%s11] sm:$0x1]
    %v1076 = vlaneseq
    %v1077 = vshrl.u32 %v1076, 7
    %v1078 = vsub.s32 0, %v1077
    %v1079 = vrot.slane %v1074, %v1078
    %v1081 = vadd.f32 %v1068, %v1079
    %v1082 = vadd.f32 %v1071, %v1079
    %v1083 = vadd.f32 %v1081, %v125
    %v1084 = vadd.f32 %v1082, %v126
    %v1085 = vld [vmem:[%s12] sm:$0x1]
    %v1086 = vld [vmem:[%s13] sm:$0x1]
    %v1087 = vsel %vm83, %v1083, 0.0
    %1088 = vadd.xlane.f32.xlu0 %v1087
    %v1089 = vpop.xlane.xlu0 %1088
    %v1090 = vsel %vm83, %v1084, 0.0
    %1091 = vadd.xlane.f32.xlu0 %v1090
    %v1092 = vpop.xlane.xlu0 %1091
    %v1093 = vmul.f32 %v1089, %v90
    %v1094 = vmul.f32 %v1092, %v90
    %v1095 = vsub.f32 %v1083, %v1093
    %v1096 = vsub.f32 %v1084, %v1094
    %v1097 = vmul.f32 %v1095, %v1095
    %v1098 = vmul.f32 %v1096, %v1096
    %v1099 = vsel %vm83, %v1097, 0.0
    %1100 = vadd.xlane.f32.xlu0 %v1099
    %v1101 = vpop.xlane.xlu0 %1100
    %v1102 = vsel %vm83, %v1098, 0.0
    %1103 = vadd.xlane.f32.xlu0 %v1102
    %v1104 = vpop.xlane.xlu0 %1103
    %v1105 = vmul.f32 %v1101, %v90
    %v1106 = vmul.f32 %v1104, %v90
    %v1107 = vadd.f32 %v1105, 1e-12
    %v1108 = vadd.f32 %v1106, 1e-12
    %v1109 = vrsqrt.pop %v1107
    %v1110 = vrsqrt.pop %v1108
    %v1111 = vmul.f32 %v1095, %v1109
    %v1112 = vmul.f32 %v1096, %v1110
    %v1114 = vlaneseq
    %v1115 = vshrl.u32 %v1114, 7
    %v1116 = vsub.s32 0, %v1115
    %v1117 = vrot.slane %v1085, %v1116
    %v1119 = vmul.f32 %v1111, %v1117
    %v1120 = vmul.f32 %v1112, %v1117
    %v1122 = vlaneseq
    %v1123 = vshrl.u32 %v1122, 7
    %v1124 = vsub.s32 0, %v1123
    %v1125 = vrot.slane %v1086, %v1124
    %v1127 = vadd.f32 %v1119, %v1125
    %v1128 = vadd.f32 %v1120, %v1125
    %v1129 = vld [vmem:[%s14] sm:$0xf]
    %v1130 = vld [vmem:[%s14 + $0x4] sm:$0xf]
    %v1131 = vld [vmem:[%s14 + $0x8] sm:$0xf]
    %v1132 = vld [vmem:[%s14 + $0xc] sm:$0xf]
    %v1133 = vpack.c.bf16 %v1128, %v1127
    %v1134 = vld [vmem:[%s15] sm:$0x1]
    %v1136 = vlaneseq
    %v1137 = vshrl.u32 %v1136, 7
    %v1138 = vsub.s32 0, %v1137
    %v1139 = vrot.slane %v1134, %v1138
    %v1145 = vunpack.c.l.b16 %v1129
    %v1146 = vunpack.c.l.b16 %v1130
    %v1147 = vunpack.c.l.b16 %v1131
    %v1148 = vunpack.c.l.b16 %v1132
    %v1149 = vpack.c.b16 %v1146, %v1145
    %v1150 = vpack.c.b16 %v1148, %v1147
    %v1154 = vsel %vm83, %v1133, 0
    %1156 = vmatprep.subr.bf16.mxu0 0
    %1157 = vmatpush1.bf16.msra.mxu0 %v1149
    %1158 = vmatprep.subr.bf16.mxu0 0
    %1159 = vmatpush1.bf16.msra.mxu0 %v1150
    %1160 = vmatprep.subr.bf16.mxu0 0
    %1161 = vmatpush1.bf16.msra.mxu0 0
    %1162 = vmatprep.subr.bf16.mxu0 0
    %1163 = vmatpush1.bf16.msra.mxu0 0
    %1164 = vmatprep.subr.bf16.mxu0 0
    %1165 = vmatpush1.bf16.msra.mxu0 0
    %1166 = vmatprep.subr.bf16.mxu0 0
    %1167 = vmatpush1.bf16.msra.mxu0 0
    %1168 = vmatprep.subr.bf16.mxu0 0
    %1169 = vmatpush1.bf16.msra.mxu0 0
    %1170 = vmatprep.subr.bf16.mxu0 0
    %1171 = vmatpush1.bf16.msra.mxu0 0
    %1172 = vmatprep.subr.bf16.mxu0 0
    %1173 = vmatpush1.bf16.msra.mxu0 0
    %1174 = vmatprep.subr.bf16.mxu0 0
    %1175 = vmatpush1.bf16.msra.mxu0 0
    %1176 = vmatprep.subr.bf16.mxu0 0
    %1177 = vmatpush1.bf16.msra.mxu0 0
    %1178 = vmatprep.subr.bf16.mxu0 0
    %1179 = vmatpush1.bf16.msra.mxu0 0
    %1180 = vmatprep.subr.bf16.mxu0 0
    %1181 = vmatpush1.bf16.msra.mxu0 0
    %1182 = vmatprep.subr.bf16.mxu0 0
    %1183 = vmatpush1.bf16.msra.mxu0 0
    %1184 = vmatprep.subr.bf16.mxu0 0
    %1185 = vmatpush1.bf16.msra.mxu0 0
    %1186 = vmatprep.subr.bf16.mxu0 0
    %1187 = vmatpush1.bf16.msra.mxu0 0
    %1188 = vmatprep.mubr.bf16.mxu0 0
    %1189 = vmatmul.mubr.bf16.gmra.mrb[0].mxu0 %v1154
    %v1190 = vpop.f32.mrb[0].mxu0
    %v1191 = vadd.f32 %v1139, %v1190
    %v1192 = vpop.f32.mrb[0].mxu0
    %v1193 = vpop.f32.mrb[0].mxu0
    %v1194 = vadd.f32 %v1139, %v1193
    %v1195 = vpop.f32.mrb[0].mxu0
    %1196 = vdwg.mxu0
    %v1197 = vmul.f32 %v1191, 0.5
    %v1198 = vmul.f32 %v1194, 0.5
    %v1199 = vmul.f32 %v1191, 0.044715
    %v1200 = vmul.f32 %v1194, 0.044715
    %v1201 = vmul.f32 %v1199, %v1191
    %v1202 = vmul.f32 %v1200, %v1194
    %v1203 = vmul.f32 %v1201, %v1191
    %v1204 = vmul.f32 %v1202, %v1194
    %v1205 = vadd.f32 %v1191, %v1203
    %v1206 = vadd.f32 %v1194, %v1204
    %v1207 = vmul.f32 %v1205, 0.7978846
    %v1208 = vmul.f32 %v1206, 0.7978846
    %v1209 = vtanh.pop %v1207
    %v1210 = vtanh.pop %v1208
    %v1211 = vadd.f32 %v1209, 1.0
    %v1212 = vadd.f32 %v1210, 1.0
    %v1213 = vmul.f32 %v1197, %v1211
    %v1214 = vmul.f32 %v1198, %v1212
    %v1215 = vld [vmem:[%s16] sm:$0xf]
    %v1216 = vld [vmem:[%s16 + $0x4] sm:$0xf]
    %v1217 = vld [vmem:[%s16 + $0x8] sm:$0xf]
    %v1218 = vld [vmem:[%s16 + $0xc] sm:$0xf]
    %v1219 = vld [vmem:[%s16 + $0x10] sm:$0xf]
    %v1220 = vld [vmem:[%s16 + $0x14] sm:$0xf]
    %v1221 = vld [vmem:[%s16 + $0x18] sm:$0xf]
    %v1222 = vld [vmem:[%s16 + $0x1c] sm:$0xf]
    %v1223 = vpack.c.bf16 %v1214, %v1213
    %v1224 = vld [vmem:[%s17] sm:$0x1]
    %v1226 = vlaneseq
    %v1227 = vshrl.u32 %v1226, 7
    %v1228 = vsub.s32 0, %v1227
    %v1229 = vrot.slane %v1224, %v1228
    %v1239 = vunpack.c.l.b16 %v1215
    %v1240 = vunpack.c.l.b16 %v1216
    %v1241 = vunpack.c.l.b16 %v1217
    %v1242 = vunpack.c.l.b16 %v1218
    %v1243 = vunpack.c.l.b16 %v1219
    %v1244 = vunpack.c.l.b16 %v1220
    %v1245 = vunpack.c.l.b16 %v1221
    %v1246 = vunpack.c.l.b16 %v1222
    %v1247 = vpack.c.b16 %v1240, %v1239
    %v1248 = vpack.c.b16 %v1242, %v1241
    %v1249 = vpack.c.b16 %v1244, %v1243
    %v1250 = vpack.c.b16 %v1246, %v1245
    %vm1255 = vcmask 523264
    %v1257 = vsel %vm1255, %v1223, 0
    %1259 = vmatprep.subr.bf16.mxu0 0
    %1260 = vmatpush1.bf16.msra.mxu0 %v1247
    %1261 = vmatprep.subr.bf16.mxu0 0
    %1262 = vmatpush1.bf16.msra.mxu0 %v1248
    %1263 = vmatprep.subr.bf16.mxu0 0
    %1264 = vmatpush1.bf16.msra.mxu0 %v1249
    %1265 = vmatprep.subr.bf16.mxu0 0
    %1266 = vmatpush1.bf16.msra.mxu0 %v1250
    %1267 = vmatprep.subr.bf16.mxu0 0
    %1268 = vmatpush1.bf16.msra.mxu0 0
    %1269 = vmatprep.subr.bf16.mxu0 0
    %1270 = vmatpush1.bf16.msra.mxu0 0
    %1271 = vmatprep.subr.bf16.mxu0 0
    %1272 = vmatpush1.bf16.msra.mxu0 0
    %1273 = vmatprep.subr.bf16.mxu0 0
    %1274 = vmatpush1.bf16.msra.mxu0 0
    %1275 = vmatprep.subr.bf16.mxu0 0
    %1276 = vmatpush1.bf16.msra.mxu0 0
    %1277 = vmatprep.subr.bf16.mxu0 0
    %1278 = vmatpush1.bf16.msra.mxu0 0
    %1279 = vmatprep.subr.bf16.mxu0 0
    %1280 = vmatpush1.bf16.msra.mxu0 0
    %1281 = vmatprep.subr.bf16.mxu0 0
    %1282 = vmatpush1.bf16.msra.mxu0 0
    %1283 = vmatprep.subr.bf16.mxu0 0
    %1284 = vmatpush1.bf16.msra.mxu0 0
    %1285 = vmatprep.subr.bf16.mxu0 0
    %1286 = vmatpush1.bf16.msra.mxu0 0
    %1287 = vmatprep.subr.bf16.mxu0 0
    %1288 = vmatpush1.bf16.msra.mxu0 0
    %1289 = vmatprep.subr.bf16.mxu0 0
    %1290 = vmatpush1.bf16.msra.mxu0 0
    %1291 = vmatprep.mubr.bf16.mxu0 0
    %1292 = vmatmul.mubr.bf16.gmra.mrb[0].mxu0 %v1257
    %v1293 = vpop.f32.mrb[0].mxu0
    %v1294 = vadd.f32 %v1229, %v1293
    %v1295 = vpop.f32.mrb[0].mxu0
    %v1296 = vpop.f32.mrb[0].mxu0
    %v1297 = vadd.f32 %v1229, %v1296
    %v1298 = vpop.f32.mrb[0].mxu0
    %1299 = vdwg.mxu0
    %v1300 = vadd.f32 %v1294, %v1127
    %v1301 = vadd.f32 %v1297, %v1128
    %v1302 = vld [vmem:[%s18] sm:$0x1]
    %v1303 = vld [vmem:[%s19] sm:$0x1]
    %v1304 = vsel %vm83, %v1300, 0.0
    %1305 = vadd.xlane.f32.xlu0 %v1304
    %v1306 = vpop.xlane.xlu0 %1305
    %v1307 = vsel %vm83, %v1301, 0.0
    %1308 = vadd.xlane.f32.xlu0 %v1307
    %v1309 = vpop.xlane.xlu0 %1308
    %v1310 = vmul.f32 %v1306, %v90
    %v1311 = vmul.f32 %v1309, %v90
    %v1312 = vsub.f32 %v1300, %v1310
    %v1313 = vsub.f32 %v1301, %v1311
    %v1314 = vmul.f32 %v1312, %v1312
    %v1315 = vmul.f32 %v1313, %v1313
    %v1316 = vsel %vm83, %v1314, 0.0
    %1317 = vadd.xlane.f32.xlu0 %v1316
    %v1318 = vpop.xlane.xlu0 %1317
    %v1319 = vsel %vm83, %v1315, 0.0
    %1320 = vadd.xlane.f32.xlu0 %v1319
    %v1321 = vpop.xlane.xlu0 %1320
    %v1322 = vmul.f32 %v1318, %v90
    %v1323 = vmul.f32 %v1321, %v90
    %v1324 = vadd.f32 %v1322, 1e-12
    %v1325 = vadd.f32 %v1323, 1e-12
    %v1326 = vrsqrt.pop %v1324
    %v1327 = vrsqrt.pop %v1325
    %v1328 = vmul.f32 %v1312, %v1326
    %v1329 = vmul.f32 %v1313, %v1327
    %v1331 = vlaneseq
    %v1332 = vshrl.u32 %v1331, 7
    %v1333 = vsub.s32 0, %v1332
    %v1334 = vrot.slane %v1302, %v1333
    %v1336 = vmul.f32 %v1328, %v1334
    %v1337 = vmul.f32 %v1329, %v1334
    %v1339 = vlaneseq
    %v1340 = vshrl.u32 %v1339, 7
    %v1341 = vsub.s32 0, %v1340
    %v1342 = vrot.slane %v1303, %v1341
    %v1344 = vadd.f32 %v1336, %v1342
    %v1345 = vadd.f32 %v1337, %v1342
    %v1346 = vpack.c.bf16 %v1345, %v1344
    %s1347 = scalar_lea.vmem %s4, 32
    %v1348 = vld [vmem:[%s1347] sm:$0xf]
    %v1349 = vld [vmem:[%s1347 + $0x4] sm:$0xf]
    %v1350 = vld [vmem:[%s1347 + $0x8] sm:$0xf]
    %v1351 = vld [vmem:[%s1347 + $0xc] sm:$0xf]
    %s1352 = scalar_lea.vmem %s5, 2
    %v1353 = vld [vmem:[%s1352] sm:$0x1]
    %v1355 = vlaneseq
    %v1356 = vshrl.u32 %v1355, 7
    %v1357 = vsub.s32 0, %v1356
    %v1358 = vrot.slane %v1353, %v1357
    %v1364 = vunpack.c.l.b16 %v1348
    %v1365 = vunpack.c.l.b16 %v1349
    %v1366 = vunpack.c.l.b16 %v1350
    %v1367 = vunpack.c.l.b16 %v1351
    %v1368 = vpack.c.b16 %v1365, %v1364
    %v1369 = vpack.c.b16 %v1367, %v1366
    %v1373 = vsel %vm83, %v1346, 0
    %1375 = vmatprep.subr.bf16.mxu0 0
    %1376 = vmatpush1.bf16.msra.mxu0 %v1368
    %1377 = vmatprep.subr.bf16.mxu0 0
    %1378 = vmatpush1.bf16.msra.mxu0 %v1369
    %1379 = vmatprep.subr.bf16.mxu0 0
    %1380 = vmatpush1.bf16.msra.mxu0 0
    %1381 = vmatprep.subr.bf16.mxu0 0
    %1382 = vmatpush1.bf16.msra.mxu0 0
    %1383 = vmatprep.subr.bf16.mxu0 0
    %1384 = vmatpush1.bf16.msra.mxu0 0
    %1385 = vmatprep.subr.bf16.mxu0 0
    %1386 = vmatpush1.bf16.msra.mxu0 0
    %1387 = vmatprep.subr.bf16.mxu0 0
    %1388 = vmatpush1.bf16.msra.mxu0 0
    %1389 = vmatprep.subr.bf16.mxu0 0
    %1390 = vmatpush1.bf16.msra.mxu0 0
    %1391 = vmatprep.subr.bf16.mxu0 0
    %1392 = vmatpush1.bf16.msra.mxu0 0
    %1393 = vmatprep.subr.bf16.mxu0 0
    %1394 = vmatpush1.bf16.msra.mxu0 0
    %1395 = vmatprep.subr.bf16.mxu0 0
    %1396 = vmatpush1.bf16.msra.mxu0 0
    %1397 = vmatprep.subr.bf16.mxu0 0
    %1398 = vmatpush1.bf16.msra.mxu0 0
    %1399 = vmatprep.subr.bf16.mxu0 0
    %1400 = vmatpush1.bf16.msra.mxu0 0
    %1401 = vmatprep.subr.bf16.mxu0 0
    %1402 = vmatpush1.bf16.msra.mxu0 0
    %1403 = vmatprep.subr.bf16.mxu0 0
    %1404 = vmatpush1.bf16.msra.mxu0 0
    %1405 = vmatprep.subr.bf16.mxu0 0
    %1406 = vmatpush1.bf16.msra.mxu0 0
    %1407 = vmatprep.mubr.bf16.mxu0 0
    %1408 = vmatmul.mubr.bf16.gmra.mrb[0].mxu0 %v1373
    %v1409 = vpop.f32.mrb[0].mxu0
    %v1410 = vadd.f32 %v1358, %v1409
    %v1411 = vpop.f32.mrb[0].mxu0
    %v1412 = vpop.f32.mrb[0].mxu0
    %v1413 = vadd.f32 %v1358, %v1412
    %v1414 = vpop.f32.mrb[0].mxu0
    %1415 = vdwg.mxu0
    %s1416 = scalar_lea.vmem %s6, 32
    %v1417 = vld [vmem:[%s1416] sm:$0xf]
    %v1418 = vld [vmem:[%s1416 + $0x4] sm:$0xf]
    %v1419 = vld [vmem:[%s1416 + $0x8] sm:$0xf]
    %v1420 = vld [vmem:[%s1416 + $0xc] sm:$0xf]
    %s1421 = scalar_lea.vmem %s7, 2
    %v1422 = vld [vmem:[%s1421] sm:$0x1]
    %v1424 = vlaneseq
    %v1425 = vshrl.u32 %v1424, 7
    %v1426 = vsub.s32 0, %v1425
    %v1427 = vrot.slane %v1422, %v1426
    %v1433 = vunpack.c.l.b16 %v1417
    %v1434 = vunpack.c.l.b16 %v1418
    %v1435 = vunpack.c.l.b16 %v1419
    %v1436 = vunpack.c.l.b16 %v1420
    %v1437 = vpack.c.b16 %v1434, %v1433
    %v1438 = vpack.c.b16 %v1436, %v1435
    %1441 = vmatprep.subr.bf16.mxu0 0
    %1442 = vmatpush1.bf16.msra.mxu0 %v1437
    %1443 = vmatprep.subr.bf16.mxu0 0
    %1444 = vmatpush1.bf16.msra.mxu0 %v1438
    %1445 = vmatprep.subr.bf16.mxu0 0
    %1446 = vmatpush1.bf16.msra.mxu0 0
    %1447 = vmatprep.subr.bf16.mxu0 0
    %1448 = vmatpush1.bf16.msra.mxu0 0
    %1449 = vmatprep.subr.bf16.mxu0 0
    %1450 = vmatpush1.bf16.msra.mxu0 0
    %1451 = vmatprep.subr.bf16.mxu0 0
    %1452 = vmatpush1.bf16.msra.mxu0 0
    %1453 = vmatprep.subr.bf16.mxu0 0
    %1454 = vmatpush1.bf16.msra.mxu0 0
    %1455 = vmatprep.subr.bf16.mxu0 0
    %1456 = vmatpush1.bf16.msra.mxu0 0
    %1457 = vmatprep.subr.bf16.mxu0 0
    %1458 = vmatpush1.bf16.msra.mxu0 0
    %1459 = vmatprep.subr.bf16.mxu0 0
    %1460 = vmatpush1.bf16.msra.mxu0 0
    %1461 = vmatprep.subr.bf16.mxu0 0
    %1462 = vmatpush1.bf16.msra.mxu0 0
    %1463 = vmatprep.subr.bf16.mxu0 0
    %1464 = vmatpush1.bf16.msra.mxu0 0
    %1465 = vmatprep.subr.bf16.mxu0 0
    %1466 = vmatpush1.bf16.msra.mxu0 0
    %1467 = vmatprep.subr.bf16.mxu0 0
    %1468 = vmatpush1.bf16.msra.mxu0 0
    %1469 = vmatprep.subr.bf16.mxu0 0
    %1470 = vmatpush1.bf16.msra.mxu0 0
    %1471 = vmatprep.subr.bf16.mxu0 0
    %1472 = vmatpush1.bf16.msra.mxu0 0
    %1473 = vmatprep.mubr.bf16.mxu0 0
    %1474 = vmatmul.mubr.bf16.gmra.mrb[0].mxu0 %v1373
    %v1475 = vpop.f32.mrb[0].mxu0
    %v1476 = vadd.f32 %v1427, %v1475
    %v1477 = vpop.f32.mrb[0].mxu0
    %v1478 = vpop.f32.mrb[0].mxu0
    %v1479 = vadd.f32 %v1427, %v1478
    %v1480 = vpop.f32.mrb[0].mxu0
    %1481 = vdwg.mxu0
    %s1482 = scalar_lea.vmem %s8, 32
    %v1483 = vld [vmem:[%s1482] sm:$0xf]
    %v1484 = vld [vmem:[%s1482 + $0x4] sm:$0xf]
    %v1485 = vld [vmem:[%s1482 + $0x8] sm:$0xf]
    %v1486 = vld [vmem:[%s1482 + $0xc] sm:$0xf]
    %s1487 = scalar_lea.vmem %s9, 2
    %v1488 = vld [vmem:[%s1487] sm:$0x1]
    %v1490 = vlaneseq
    %v1491 = vshrl.u32 %v1490, 7
    %v1492 = vsub.s32 0, %v1491
    %v1493 = vrot.slane %v1488, %v1492
    %v1499 = vunpack.c.l.b16 %v1483
    %v1500 = vunpack.c.l.b16 %v1484
    %v1501 = vunpack.c.l.b16 %v1485
    %v1502 = vunpack.c.l.b16 %v1486
    %v1503 = vpack.c.b16 %v1500, %v1499
    %v1504 = vpack.c.b16 %v1502, %v1501
    %1507 = vmatprep.subr.bf16.mxu0 0
    %1508 = vmatpush1.bf16.msra.mxu0 %v1503
    %1509 = vmatprep.subr.bf16.mxu0 0
    %1510 = vmatpush1.bf16.msra.mxu0 %v1504
    %1511 = vmatprep.subr.bf16.mxu0 0
    %1512 = vmatpush1.bf16.msra.mxu0 0
    %1513 = vmatprep.subr.bf16.mxu0 0
    %1514 = vmatpush1.bf16.msra.mxu0 0
    %1515 = vmatprep.subr.bf16.mxu0 0
    %1516 = vmatpush1.bf16.msra.mxu0 0
    %1517 = vmatprep.subr.bf16.mxu0 0
    %1518 = vmatpush1.bf16.msra.mxu0 0
    %1519 = vmatprep.subr.bf16.mxu0 0
    %1520 = vmatpush1.bf16.msra.mxu0 0
    %1521 = vmatprep.subr.bf16.mxu0 0
    %1522 = vmatpush1.bf16.msra.mxu0 0
    %1523 = vmatprep.subr.bf16.mxu0 0
    %1524 = vmatpush1.bf16.msra.mxu0 0
    %1525 = vmatprep.subr.bf16.mxu0 0
    %1526 = vmatpush1.bf16.msra.mxu0 0
    %1527 = vmatprep.subr.bf16.mxu0 0
    %1528 = vmatpush1.bf16.msra.mxu0 0
    %1529 = vmatprep.subr.bf16.mxu0 0
    %1530 = vmatpush1.bf16.msra.mxu0 0
    %1531 = vmatprep.subr.bf16.mxu0 0
    %1532 = vmatpush1.bf16.msra.mxu0 0
    %1533 = vmatprep.subr.bf16.mxu0 0
    %1534 = vmatpush1.bf16.msra.mxu0 0
    %1535 = vmatprep.subr.bf16.mxu0 0
    %1536 = vmatpush1.bf16.msra.mxu0 0
    %1537 = vmatprep.subr.bf16.mxu0 0
    %1538 = vmatpush1.bf16.msra.mxu0 0
    %1539 = vmatprep.mubr.bf16.mxu0 0
    %1540 = vmatmul.mubr.bf16.gmra.mrb[0].mxu0 %v1373
    %v1541 = vpop.f32.mrb[0].mxu0
    %v1542 = vadd.f32 %v1493, %v1541
    %v1543 = vpop.f32.mrb[0].mxu0
    %v1544 = vpop.f32.mrb[0].mxu0
    %v1545 = vadd.f32 %v1493, %v1544
    %v1546 = vpop.f32.mrb[0].mxu0
    %1547 = vdwg.mxu0
    %v1548 = vpack.c.bf16 %v1410, %v1410
    %v1549 = vpack.c.bf16 %v1476, %v1476
    %v1550 = vpack.c.bf16 %v1542, %v1542
    %v1552 = vsel %vm341, %v1548, 0
    %v1555 = vsel %vm341, %v1549, 0
    %1557 = vmatprep.subr.bf16.mxu0 0
    %1558 = vmatpush1.bf16.xpose.msra.mxu0 %v1555
    %1559 = vmatprep.subr.bf16.mxu0 0
    %1560 = vmatpush1.bf16.xpose.msra.mxu0 0
    %1561 = vmatprep.subr.bf16.mxu0 0
    %1562 = vmatpush1.bf16.xpose.msra.mxu0 0
    %1563 = vmatprep.subr.bf16.mxu0 0
    %1564 = vmatpush1.bf16.xpose.msra.mxu0 0
    %1565 = vmatprep.subr.bf16.mxu0 0
    %1566 = vmatpush1.bf16.xpose.msra.mxu0 0
    %1567 = vmatprep.subr.bf16.mxu0 0
    %1568 = vmatpush1.bf16.xpose.msra.mxu0 0
    %1569 = vmatprep.subr.bf16.mxu0 0
    %1570 = vmatpush1.bf16.xpose.msra.mxu0 0
    %1571 = vmatprep.subr.bf16.mxu0 0
    %1572 = vmatpush1.bf16.xpose.msra.mxu0 0
    %1573 = vmatprep.subr.bf16.mxu0 0
    %1574 = vmatpush1.bf16.xpose.msra.mxu0 0
    %1575 = vmatprep.subr.bf16.mxu0 0
    %1576 = vmatpush1.bf16.xpose.msra.mxu0 0
    %1577 = vmatprep.subr.bf16.mxu0 0
    %1578 = vmatpush1.bf16.xpose.msra.mxu0 0
    %1579 = vmatprep.subr.bf16.mxu0 0
    %1580 = vmatpush1.bf16.xpose.msra.mxu0 0
    %1581 = vmatprep.subr.bf16.mxu0 0
    %1582 = vmatpush1.bf16.xpose.msra.mxu0 0
    %1583 = vmatprep.subr.bf16.mxu0 0
    %1584 = vmatpush1.bf16.xpose.msra.mxu0 0
    %1585 = vmatprep.subr.bf16.mxu0 0
    %1586 = vmatpush1.bf16.xpose.msra.mxu0 0
    %1587 = vmatprep.subr.bf16.mxu0 0
    %1588 = vmatpush1.bf16.xpose.msra.mxu0 0
    %1589 = vmatprep.mubr.bf16.mxu0 0
    %1590 = vmatmul.mubr.bf16.gmra.mrb[0].mxu0 %v1552
    %v1591 = vpop.f32.mrb[0].mxu0
    %v1592 = vadd.f32 %v132, %v1591
    %v1593 = vpop.f32.mrb[0].mxu0
    %v1594 = vpop.f32.mrb[0].mxu0
    %v1595 = vpop.f32.mrb[0].mxu0
    %1596 = vdwg.mxu0
    %v1597 = vsel %vm388, %v1592, -inf
    %1598 = vmax.xlane.f32.xlu0 %v1597
    %v1599 = vpop.xlane.xlu0 %1598
    %v1600 = vsub.f32 %v1592, %v1599
    %v1601 = vmul.f32 %v1600, 1.442695
    %v1602 = vpow.pop %v1601
    %v1603 = vsel %vm388, %v1602, 0.0
    %1604 = vadd.xlane.f32.xlu0 %v1603
    %v1605 = vpop.xlane.xlu0 %1604
    %v1606 = vrcp.pop %v1605
    %v1607 = vmul.f32 %v1602, %v1606
    %v1608 = vpack.c.bf16 %v1607, %v1607
    %v1610 = vsel %vm388, %v1608, 0
    %v1613 = vsel %vm404, %v1550, 0
    %1615 = vmatprep.subr.bf16.mxu0 0
    %1616 = vmatpush1.bf16.msra.mxu0 %v1613
    %1617 = vmatprep.subr.bf16.mxu0 0
    %1618 = vmatpush1.bf16.msra.mxu0 0
    %1619 = vmatprep.subr.bf16.mxu0 0
    %1620 = vmatpush1.bf16.msra.mxu0 0
    %1621 = vmatprep.subr.bf16.mxu0 0
    %1622 = vmatpush1.bf16.msra.mxu0 0
    %1623 = vmatprep.subr.bf16.mxu0 0
    %1624 = vmatpush1.bf16.msra.mxu0 0
    %1625 = vmatprep.subr.bf16.mxu0 0
    %1626 = vmatpush1.bf16.msra.mxu0 0
    %1627 = vmatprep.subr.bf16.mxu0 0
    %1628 = vmatpush1.bf16.msra.mxu0 0
    %1629 = vmatprep.subr.bf16.mxu0 0
    %1630 = vmatpush1.bf16.msra.mxu0 0
    %1631 = vmatprep.subr.bf16.mxu0 0
    %1632 = vmatpush1.bf16.msra.mxu0 0
    %1633 = vmatprep.subr.bf16.mxu0 0
    %1634 = vmatpush1.bf16.msra.mxu0 0
    %1635 = vmatprep.subr.bf16.mxu0 0
    %1636 = vmatpush1.bf16.msra.mxu0 0
    %1637 = vmatprep.subr.bf16.mxu0 0
    %1638 = vmatpush1.bf16.msra.mxu0 0
    %1639 = vmatprep.subr.bf16.mxu0 0
    %1640 = vmatpush1.bf16.msra.mxu0 0
    %1641 = vmatprep.subr.bf16.mxu0 0
    %1642 = vmatpush1.bf16.msra.mxu0 0
    %1643 = vmatprep.subr.bf16.mxu0 0
    %1644 = vmatpush1.bf16.msra.mxu0 0
    %1645 = vmatprep.subr.bf16.mxu0 0
    %1646 = vmatpush1.bf16.msra.mxu0 0
    %1647 = vmatprep.mubr.bf16.mxu0 0
    %1648 = vmatmul.mubr.bf16.gmra.mrb[0].mxu0 %v1610
    %v1649 = vpop.f32.mrb[0].mxu0
    %v1650 = vadd.f32 0.0, %v1649
    %v1651 = vpop.f32.mrb[0].mxu0
    %v1652 = vpop.f32.mrb[0].mxu0
    %v1653 = vpop.f32.mrb[0].mxu0
    %1654 = vdwg.mxu0
    %v1655 = vpack.c.bf16 %v1413, %v1413
    %v1656 = vpack.c.bf16 %v1479, %v1479
    %v1657 = vpack.c.bf16 %v1545, %v1545
    %v1659 = vsel %vm341, %v1655, 0
    %v1662 = vsel %vm341, %v1656, 0
    %1664 = vmatprep.subr.bf16.mxu0 0
    %1665 = vmatpush1.bf16.xpose.msra.mxu0 %v1662
    %1666 = vmatprep.subr.bf16.mxu0 0
    %1667 = vmatpush1.bf16.xpose.msra.mxu0 0
    %1668 = vmatprep.subr.bf16.mxu0 0
    %1669 = vmatpush1.bf16.xpose.msra.mxu0 0
    %1670 = vmatprep.subr.bf16.mxu0 0
    %1671 = vmatpush1.bf16.xpose.msra.mxu0 0
    %1672 = vmatprep.subr.bf16.mxu0 0
    %1673 = vmatpush1.bf16.xpose.msra.mxu0 0
    %1674 = vmatprep.subr.bf16.mxu0 0
    %1675 = vmatpush1.bf16.xpose.msra.mxu0 0
    %1676 = vmatprep.subr.bf16.mxu0 0
    %1677 = vmatpush1.bf16.xpose.msra.mxu0 0
    %1678 = vmatprep.subr.bf16.mxu0 0
    %1679 = vmatpush1.bf16.xpose.msra.mxu0 0
    %1680 = vmatprep.subr.bf16.mxu0 0
    %1681 = vmatpush1.bf16.xpose.msra.mxu0 0
    %1682 = vmatprep.subr.bf16.mxu0 0
    %1683 = vmatpush1.bf16.xpose.msra.mxu0 0
    %1684 = vmatprep.subr.bf16.mxu0 0
    %1685 = vmatpush1.bf16.xpose.msra.mxu0 0
    %1686 = vmatprep.subr.bf16.mxu0 0
    %1687 = vmatpush1.bf16.xpose.msra.mxu0 0
    %1688 = vmatprep.subr.bf16.mxu0 0
    %1689 = vmatpush1.bf16.xpose.msra.mxu0 0
    %1690 = vmatprep.subr.bf16.mxu0 0
    %1691 = vmatpush1.bf16.xpose.msra.mxu0 0
    %1692 = vmatprep.subr.bf16.mxu0 0
    %1693 = vmatpush1.bf16.xpose.msra.mxu0 0
    %1694 = vmatprep.subr.bf16.mxu0 0
    %1695 = vmatpush1.bf16.xpose.msra.mxu0 0
    %1696 = vmatprep.mubr.bf16.mxu0 0
    %1697 = vmatmul.mubr.bf16.gmra.mrb[0].mxu0 %v1659
    %v1698 = vpop.f32.mrb[0].mxu0
    %v1699 = vadd.f32 %v140, %v1698
    %v1700 = vpop.f32.mrb[0].mxu0
    %v1701 = vpop.f32.mrb[0].mxu0
    %v1702 = vpop.f32.mrb[0].mxu0
    %1703 = vdwg.mxu0
    %v1704 = vsel %vm388, %v1699, -inf
    %1705 = vmax.xlane.f32.xlu0 %v1704
    %v1706 = vpop.xlane.xlu0 %1705
    %v1707 = vsub.f32 %v1699, %v1706
    %v1708 = vmul.f32 %v1707, 1.442695
    %v1709 = vpow.pop %v1708
    %v1710 = vsel %vm388, %v1709, 0.0
    %1711 = vadd.xlane.f32.xlu0 %v1710
    %v1712 = vpop.xlane.xlu0 %1711
    %v1713 = vrcp.pop %v1712
    %v1714 = vmul.f32 %v1709, %v1713
    %v1715 = vpack.c.bf16 %v1714, %v1714
    %v1717 = vsel %vm388, %v1715, 0
    %v1720 = vsel %vm404, %v1657, 0
    %1722 = vmatprep.subr.bf16.mxu0 0
    %1723 = vmatpush1.bf16.msra.mxu0 %v1720
    %1724 = vmatprep.subr.bf16.mxu0 0
    %1725 = vmatpush1.bf16.msra.mxu0 0
    %1726 = vmatprep.subr.bf16.mxu0 0
    %1727 = vmatpush1.bf16.msra.mxu0 0
    %1728 = vmatprep.subr.bf16.mxu0 0
    %1729 = vmatpush1.bf16.msra.mxu0 0
    %1730 = vmatprep.subr.bf16.mxu0 0
    %1731 = vmatpush1.bf16.msra.mxu0 0
    %1732 = vmatprep.subr.bf16.mxu0 0
    %1733 = vmatpush1.bf16.msra.mxu0 0
    %1734 = vmatprep.subr.bf16.mxu0 0
    %1735 = vmatpush1.bf16.msra.mxu0 0
    %1736 = vmatprep.subr.bf16.mxu0 0
    %1737 = vmatpush1.bf16.msra.mxu0 0
    %1738 = vmatprep.subr.bf16.mxu0 0
    %1739 = vmatpush1.bf16.msra.mxu0 0
    %1740 = vmatprep.subr.bf16.mxu0 0
    %1741 = vmatpush1.bf16.msra.mxu0 0
    %1742 = vmatprep.subr.bf16.mxu0 0
    %1743 = vmatpush1.bf16.msra.mxu0 0
    %1744 = vmatprep.subr.bf16.mxu0 0
    %1745 = vmatpush1.bf16.msra.mxu0 0
    %1746 = vmatprep.subr.bf16.mxu0 0
    %1747 = vmatpush1.bf16.msra.mxu0 0
    %1748 = vmatprep.subr.bf16.mxu0 0
    %1749 = vmatpush1.bf16.msra.mxu0 0
    %1750 = vmatprep.subr.bf16.mxu0 0
    %1751 = vmatpush1.bf16.msra.mxu0 0
    %1752 = vmatprep.subr.bf16.mxu0 0
    %1753 = vmatpush1.bf16.msra.mxu0 0
    %1754 = vmatprep.mubr.bf16.mxu0 0
    %1755 = vmatmul.mubr.bf16.gmra.mrb[0].mxu0 %v1717
    %v1756 = vpop.f32.mrb[0].mxu0
    %v1757 = vadd.f32 0.0, %v1756
    %v1758 = vpop.f32.mrb[0].mxu0
    %v1759 = vpop.f32.mrb[0].mxu0
    %v1760 = vpop.f32.mrb[0].mxu0
    %1761 = vdwg.mxu0
    %s1762 = scalar_lea.vmem %s10, 16
    %v1763 = vld [vmem:[%s1762] sm:$0xf]
    %v1764 = vld [vmem:[%s1762 + $0x4] sm:$0xf]
    %v1765 = vpack.c.bf16 %v1757, %v1650
    %s1766 = scalar_lea.vmem %s4, 48
    %v1767 = vld [vmem:[%s1766] sm:$0xf]
    %v1768 = vld [vmem:[%s1766 + $0x4] sm:$0xf]
    %v1769 = vld [vmem:[%s1766 + $0x8] sm:$0xf]
    %v1770 = vld [vmem:[%s1766 + $0xc] sm:$0xf]
    %s1771 = scalar_lea.vmem %s5, 3
    %v1772 = vld [vmem:[%s1771] sm:$0x1]
    %v1774 = vlaneseq
    %v1775 = vshrl.u32 %v1774, 7
    %v1776 = vsub.s32 0, %v1775
    %v1777 = vrot.slane %v1772, %v1776
    %v1783 = vunpack.c.l.b16 %v1767
    %v1784 = vunpack.c.l.b16 %v1768
    %v1785 = vunpack.c.l.b16 %v1769
    %v1786 = vunpack.c.l.b16 %v1770
    %v1787 = vpack.c.b16 %v1784, %v1783
    %v1788 = vpack.c.b16 %v1786, %v1785
    %1791 = vmatprep.subr.bf16.mxu0 0
    %1792 = vmatpush1.bf16.msra.mxu0 %v1787
    %1793 = vmatprep.subr.bf16.mxu0 0
    %1794 = vmatpush1.bf16.msra.mxu0 %v1788
    %1795 = vmatprep.subr.bf16.mxu0 0
    %1796 = vmatpush1.bf16.msra.mxu0 0
    %1797 = vmatprep.subr.bf16.mxu0 0
    %1798 = vmatpush1.bf16.msra.mxu0 0
    %1799 = vmatprep.subr.bf16.mxu0 0
    %1800 = vmatpush1.bf16.msra.mxu0 0
    %1801 = vmatprep.subr.bf16.mxu0 0
    %1802 = vmatpush1.bf16.msra.mxu0 0
    %1803 = vmatprep.subr.bf16.mxu0 0
    %1804 = vmatpush1.bf16.msra.mxu0 0
    %1805 = vmatprep.subr.bf16.mxu0 0
    %1806 = vmatpush1.bf16.msra.mxu0 0
    %1807 = vmatprep.subr.bf16.mxu0 0
    %1808 = vmatpush1.bf16.msra.mxu0 0
    %1809 = vmatprep.subr.bf16.mxu0 0
    %1810 = vmatpush1.bf16.msra.mxu0 0
    %1811 = vmatprep.subr.bf16.mxu0 0
    %1812 = vmatpush1.bf16.msra.mxu0 0
    %1813 = vmatprep.subr.bf16.mxu0 0
    %1814 = vmatpush1.bf16.msra.mxu0 0
    %1815 = vmatprep.subr.bf16.mxu0 0
    %1816 = vmatpush1.bf16.msra.mxu0 0
    %1817 = vmatprep.subr.bf16.mxu0 0
    %1818 = vmatpush1.bf16.msra.mxu0 0
    %1819 = vmatprep.subr.bf16.mxu0 0
    %1820 = vmatpush1.bf16.msra.mxu0 0
    %1821 = vmatprep.subr.bf16.mxu0 0
    %1822 = vmatpush1.bf16.msra.mxu0 0
    %1823 = vmatprep.mubr.bf16.mxu0 0
    %1824 = vmatmul.mubr.bf16.gmra.mrb[0].mxu0 %v1373
    %v1825 = vpop.f32.mrb[0].mxu0
    %v1826 = vadd.f32 %v1777, %v1825
    %v1827 = vpop.f32.mrb[0].mxu0
    %v1828 = vpop.f32.mrb[0].mxu0
    %v1829 = vadd.f32 %v1777, %v1828
    %v1830 = vpop.f32.mrb[0].mxu0
    %1831 = vdwg.mxu0
    %s1832 = scalar_lea.vmem %s6, 48
    %v1833 = vld [vmem:[%s1832] sm:$0xf]
    %v1834 = vld [vmem:[%s1832 + $0x4] sm:$0xf]
    %v1835 = vld [vmem:[%s1832 + $0x8] sm:$0xf]
    %v1836 = vld [vmem:[%s1832 + $0xc] sm:$0xf]
    %s1837 = scalar_lea.vmem %s7, 3
    %v1838 = vld [vmem:[%s1837] sm:$0x1]
    %v1840 = vlaneseq
    %v1841 = vshrl.u32 %v1840, 7
    %v1842 = vsub.s32 0, %v1841
    %v1843 = vrot.slane %v1838, %v1842
    %v1849 = vunpack.c.l.b16 %v1833
    %v1850 = vunpack.c.l.b16 %v1834
    %v1851 = vunpack.c.l.b16 %v1835
    %v1852 = vunpack.c.l.b16 %v1836
    %v1853 = vpack.c.b16 %v1850, %v1849
    %v1854 = vpack.c.b16 %v1852, %v1851
    %1857 = vmatprep.subr.bf16.mxu0 0
    %1858 = vmatpush1.bf16.msra.mxu0 %v1853
    %1859 = vmatprep.subr.bf16.mxu0 0
    %1860 = vmatpush1.bf16.msra.mxu0 %v1854
    %1861 = vmatprep.subr.bf16.mxu0 0
    %1862 = vmatpush1.bf16.msra.mxu0 0
    %1863 = vmatprep.subr.bf16.mxu0 0
    %1864 = vmatpush1.bf16.msra.mxu0 0
    %1865 = vmatprep.subr.bf16.mxu0 0
    %1866 = vmatpush1.bf16.msra.mxu0 0
    %1867 = vmatprep.subr.bf16.mxu0 0
    %1868 = vmatpush1.bf16.msra.mxu0 0
    %1869 = vmatprep.subr.bf16.mxu0 0
    %1870 = vmatpush1.bf16.msra.mxu0 0
    %1871 = vmatprep.subr.bf16.mxu0 0
    %1872 = vmatpush1.bf16.msra.mxu0 0
    %1873 = vmatprep.subr.bf16.mxu0 0
    %1874 = vmatpush1.bf16.msra.mxu0 0
    %1875 = vmatprep.subr.bf16.mxu0 0
    %1876 = vmatpush1.bf16.msra.mxu0 0
    %1877 = vmatprep.subr.bf16.mxu0 0
    %1878 = vmatpush1.bf16.msra.mxu0 0
    %1879 = vmatprep.subr.bf16.mxu0 0
    %1880 = vmatpush1.bf16.msra.mxu0 0
    %1881 = vmatprep.subr.bf16.mxu0 0
    %1882 = vmatpush1.bf16.msra.mxu0 0
    %1883 = vmatprep.subr.bf16.mxu0 0
    %1884 = vmatpush1.bf16.msra.mxu0 0
    %1885 = vmatprep.subr.bf16.mxu0 0
    %1886 = vmatpush1.bf16.msra.mxu0 0
    %1887 = vmatprep.subr.bf16.mxu0 0
    %1888 = vmatpush1.bf16.msra.mxu0 0
    %1889 = vmatprep.mubr.bf16.mxu0 0
    %1890 = vmatmul.mubr.bf16.gmra.mrb[0].mxu0 %v1373
    %v1891 = vpop.f32.mrb[0].mxu0
    %v1892 = vadd.f32 %v1843, %v1891
    %v1893 = vpop.f32.mrb[0].mxu0
    %v1894 = vpop.f32.mrb[0].mxu0
    %v1895 = vadd.f32 %v1843, %v1894
    %v1896 = vpop.f32.mrb[0].mxu0
    %1897 = vdwg.mxu0
    %s1898 = scalar_lea.vmem %s8, 48
    %v1899 = vld [vmem:[%s1898] sm:$0xf]
    %v1900 = vld [vmem:[%s1898 + $0x4] sm:$0xf]
    %v1901 = vld [vmem:[%s1898 + $0x8] sm:$0xf]
    %v1902 = vld [vmem:[%s1898 + $0xc] sm:$0xf]
    %s1903 = scalar_lea.vmem %s9, 3
    %v1904 = vld [vmem:[%s1903] sm:$0x1]
    %v1906 = vlaneseq
    %v1907 = vshrl.u32 %v1906, 7
    %v1908 = vsub.s32 0, %v1907
    %v1909 = vrot.slane %v1904, %v1908
    %v1915 = vunpack.c.l.b16 %v1899
    %v1916 = vunpack.c.l.b16 %v1900
    %v1917 = vunpack.c.l.b16 %v1901
    %v1918 = vunpack.c.l.b16 %v1902
    %v1919 = vpack.c.b16 %v1916, %v1915
    %v1920 = vpack.c.b16 %v1918, %v1917
    %1923 = vmatprep.subr.bf16.mxu0 0
    %1924 = vmatpush1.bf16.msra.mxu0 %v1919
    %1925 = vmatprep.subr.bf16.mxu0 0
    %1926 = vmatpush1.bf16.msra.mxu0 %v1920
    %1927 = vmatprep.subr.bf16.mxu0 0
    %1928 = vmatpush1.bf16.msra.mxu0 0
    %1929 = vmatprep.subr.bf16.mxu0 0
    %1930 = vmatpush1.bf16.msra.mxu0 0
    %1931 = vmatprep.subr.bf16.mxu0 0
    %1932 = vmatpush1.bf16.msra.mxu0 0
    %1933 = vmatprep.subr.bf16.mxu0 0
    %1934 = vmatpush1.bf16.msra.mxu0 0
    %1935 = vmatprep.subr.bf16.mxu0 0
    %1936 = vmatpush1.bf16.msra.mxu0 0
    %1937 = vmatprep.subr.bf16.mxu0 0
    %1938 = vmatpush1.bf16.msra.mxu0 0
    %1939 = vmatprep.subr.bf16.mxu0 0
    %1940 = vmatpush1.bf16.msra.mxu0 0
    %1941 = vmatprep.subr.bf16.mxu0 0
    %1942 = vmatpush1.bf16.msra.mxu0 0
    %1943 = vmatprep.subr.bf16.mxu0 0
    %1944 = vmatpush1.bf16.msra.mxu0 0
    %1945 = vmatprep.subr.bf16.mxu0 0
    %1946 = vmatpush1.bf16.msra.mxu0 0
    %1947 = vmatprep.subr.bf16.mxu0 0
    %1948 = vmatpush1.bf16.msra.mxu0 0
    %1949 = vmatprep.subr.bf16.mxu0 0
    %1950 = vmatpush1.bf16.msra.mxu0 0
    %1951 = vmatprep.subr.bf16.mxu0 0
    %1952 = vmatpush1.bf16.msra.mxu0 0
    %1953 = vmatprep.subr.bf16.mxu0 0
    %1954 = vmatpush1.bf16.msra.mxu0 0
    %1955 = vmatprep.mubr.bf16.mxu0 0
    %1956 = vmatmul.mubr.bf16.gmra.mrb[0].mxu0 %v1373
    %v1957 = vpop.f32.mrb[0].mxu0
    %v1958 = vadd.f32 %v1909, %v1957
    %v1959 = vpop.f32.mrb[0].mxu0
    %v1960 = vpop.f32.mrb[0].mxu0
    %v1961 = vadd.f32 %v1909, %v1960
    %v1962 = vpop.f32.mrb[0].mxu0
    %1963 = vdwg.mxu0
    %v1964 = vpack.c.bf16 %v1826, %v1826
    %v1965 = vpack.c.bf16 %v1892, %v1892
    %v1966 = vpack.c.bf16 %v1958, %v1958
    %v1968 = vsel %vm341, %v1964, 0
    %v1971 = vsel %vm341, %v1965, 0
    %1973 = vmatprep.subr.bf16.mxu0 0
    %1974 = vmatpush1.bf16.xpose.msra.mxu0 %v1971
    %1975 = vmatprep.subr.bf16.mxu0 0
    %1976 = vmatpush1.bf16.xpose.msra.mxu0 0
    %1977 = vmatprep.subr.bf16.mxu0 0
    %1978 = vmatpush1.bf16.xpose.msra.mxu0 0
    %1979 = vmatprep.subr.bf16.mxu0 0
    %1980 = vmatpush1.bf16.xpose.msra.mxu0 0
    %1981 = vmatprep.subr.bf16.mxu0 0
    %1982 = vmatpush1.bf16.xpose.msra.mxu0 0
    %1983 = vmatprep.subr.bf16.mxu0 0
    %1984 = vmatpush1.bf16.xpose.msra.mxu0 0
    %1985 = vmatprep.subr.bf16.mxu0 0
    %1986 = vmatpush1.bf16.xpose.msra.mxu0 0
    %1987 = vmatprep.subr.bf16.mxu0 0
    %1988 = vmatpush1.bf16.xpose.msra.mxu0 0
    %1989 = vmatprep.subr.bf16.mxu0 0
    %1990 = vmatpush1.bf16.xpose.msra.mxu0 0
    %1991 = vmatprep.subr.bf16.mxu0 0
    %1992 = vmatpush1.bf16.xpose.msra.mxu0 0
    %1993 = vmatprep.subr.bf16.mxu0 0
    %1994 = vmatpush1.bf16.xpose.msra.mxu0 0
    %1995 = vmatprep.subr.bf16.mxu0 0
    %1996 = vmatpush1.bf16.xpose.msra.mxu0 0
    %1997 = vmatprep.subr.bf16.mxu0 0
    %1998 = vmatpush1.bf16.xpose.msra.mxu0 0
    %1999 = vmatprep.subr.bf16.mxu0 0
    %2000 = vmatpush1.bf16.xpose.msra.mxu0 0
    %2001 = vmatprep.subr.bf16.mxu0 0
    %2002 = vmatpush1.bf16.xpose.msra.mxu0 0
    %2003 = vmatprep.subr.bf16.mxu0 0
    %2004 = vmatpush1.bf16.xpose.msra.mxu0 0
    %2005 = vmatprep.mubr.bf16.mxu0 0
    %2006 = vmatmul.mubr.bf16.gmra.mrb[0].mxu0 %v1968
    %v2007 = vpop.f32.mrb[0].mxu0
    %v2008 = vadd.f32 %v132, %v2007
    %v2009 = vpop.f32.mrb[0].mxu0
    %v2010 = vpop.f32.mrb[0].mxu0
    %v2011 = vpop.f32.mrb[0].mxu0
    %2012 = vdwg.mxu0
    %v2013 = vsel %vm388, %v2008, -inf
    %2014 = vmax.xlane.f32.xlu0 %v2013
    %v2015 = vpop.xlane.xlu0 %2014
    %v2016 = vsub.f32 %v2008, %v2015
    %v2017 = vmul.f32 %v2016, 1.442695
    %v2018 = vpow.pop %v2017
    %v2019 = vsel %vm388, %v2018, 0.0
    %2020 = vadd.xlane.f32.xlu0 %v2019
    %v2021 = vpop.xlane.xlu0 %2020
    %v2022 = vrcp.pop %v2021
    %v2023 = vmul.f32 %v2018, %v2022
    %v2024 = vpack.c.bf16 %v2023, %v2023
    %v2026 = vsel %vm388, %v2024, 0
    %v2029 = vsel %vm404, %v1966, 0
    %2031 = vmatprep.subr.bf16.mxu0 0
    %2032 = vmatpush1.bf16.msra.mxu0 %v2029
    %2033 = vmatprep.subr.bf16.mxu0 0
    %2034 = vmatpush1.bf16.msra.mxu0 0
    %2035 = vmatprep.subr.bf16.mxu0 0
    %2036 = vmatpush1.bf16.msra.mxu0 0
    %2037 = vmatprep.subr.bf16.mxu0 0
    %2038 = vmatpush1.bf16.msra.mxu0 0
    %2039 = vmatprep.subr.bf16.mxu0 0
    %2040 = vmatpush1.bf16.msra.mxu0 0
    %2041 = vmatprep.subr.bf16.mxu0 0
    %2042 = vmatpush1.bf16.msra.mxu0 0
    %2043 = vmatprep.subr.bf16.mxu0 0
    %2044 = vmatpush1.bf16.msra.mxu0 0
    %2045 = vmatprep.subr.bf16.mxu0 0
    %2046 = vmatpush1.bf16.msra.mxu0 0
    %2047 = vmatprep.subr.bf16.mxu0 0
    %2048 = vmatpush1.bf16.msra.mxu0 0
    %2049 = vmatprep.subr.bf16.mxu0 0
    %2050 = vmatpush1.bf16.msra.mxu0 0
    %2051 = vmatprep.subr.bf16.mxu0 0
    %2052 = vmatpush1.bf16.msra.mxu0 0
    %2053 = vmatprep.subr.bf16.mxu0 0
    %2054 = vmatpush1.bf16.msra.mxu0 0
    %2055 = vmatprep.subr.bf16.mxu0 0
    %2056 = vmatpush1.bf16.msra.mxu0 0
    %2057 = vmatprep.subr.bf16.mxu0 0
    %2058 = vmatpush1.bf16.msra.mxu0 0
    %2059 = vmatprep.subr.bf16.mxu0 0
    %2060 = vmatpush1.bf16.msra.mxu0 0
    %2061 = vmatprep.subr.bf16.mxu0 0
    %2062 = vmatpush1.bf16.msra.mxu0 0
    %2063 = vmatprep.mubr.bf16.mxu0 0
    %2064 = vmatmul.mubr.bf16.gmra.mrb[0].mxu0 %v2026
    %v2065 = vpop.f32.mrb[0].mxu0
    %v2066 = vadd.f32 0.0, %v2065
    %v2067 = vpop.f32.mrb[0].mxu0
    %v2068 = vpop.f32.mrb[0].mxu0
    %v2069 = vpop.f32.mrb[0].mxu0
    %2070 = vdwg.mxu0
    %v2071 = vpack.c.bf16 %v1829, %v1829
    %v2072 = vpack.c.bf16 %v1895, %v1895
    %v2073 = vpack.c.bf16 %v1961, %v1961
    %v2075 = vsel %vm341, %v2071, 0
    %v2078 = vsel %vm341, %v2072, 0
    %2080 = vmatprep.subr.bf16.mxu0 0
    %2081 = vmatpush1.bf16.xpose.msra.mxu0 %v2078
    %2082 = vmatprep.subr.bf16.mxu0 0
    %2083 = vmatpush1.bf16.xpose.msra.mxu0 0
    %2084 = vmatprep.subr.bf16.mxu0 0
    %2085 = vmatpush1.bf16.xpose.msra.mxu0 0
    %2086 = vmatprep.subr.bf16.mxu0 0
    %2087 = vmatpush1.bf16.xpose.msra.mxu0 0
    %2088 = vmatprep.subr.bf16.mxu0 0
    %2089 = vmatpush1.bf16.xpose.msra.mxu0 0
    %2090 = vmatprep.subr.bf16.mxu0 0
    %2091 = vmatpush1.bf16.xpose.msra.mxu0 0
    %2092 = vmatprep.subr.bf16.mxu0 0
    %2093 = vmatpush1.bf16.xpose.msra.mxu0 0
    %2094 = vmatprep.subr.bf16.mxu0 0
    %2095 = vmatpush1.bf16.xpose.msra.mxu0 0
    %2096 = vmatprep.subr.bf16.mxu0 0
    %2097 = vmatpush1.bf16.xpose.msra.mxu0 0
    %2098 = vmatprep.subr.bf16.mxu0 0
    %2099 = vmatpush1.bf16.xpose.msra.mxu0 0
    %2100 = vmatprep.subr.bf16.mxu0 0
    %2101 = vmatpush1.bf16.xpose.msra.mxu0 0
    %2102 = vmatprep.subr.bf16.mxu0 0
    %2103 = vmatpush1.bf16.xpose.msra.mxu0 0
    %2104 = vmatprep.subr.bf16.mxu0 0
    %2105 = vmatpush1.bf16.xpose.msra.mxu0 0
    %2106 = vmatprep.subr.bf16.mxu0 0
    %2107 = vmatpush1.bf16.xpose.msra.mxu0 0
    %2108 = vmatprep.subr.bf16.mxu0 0
    %2109 = vmatpush1.bf16.xpose.msra.mxu0 0
    %2110 = vmatprep.subr.bf16.mxu0 0
    %2111 = vmatpush1.bf16.xpose.msra.mxu0 0
    %2112 = vmatprep.mubr.bf16.mxu0 0
    %2113 = vmatmul.mubr.bf16.gmra.mrb[0].mxu0 %v2075
    %v2114 = vpop.f32.mrb[0].mxu0
    %v2115 = vadd.f32 %v140, %v2114
    %v2116 = vpop.f32.mrb[0].mxu0
    %v2117 = vpop.f32.mrb[0].mxu0
    %v2118 = vpop.f32.mrb[0].mxu0
    %2119 = vdwg.mxu0
    %v2120 = vsel %vm388, %v2115, -inf
    %2121 = vmax.xlane.f32.xlu0 %v2120
    %v2122 = vpop.xlane.xlu0 %2121
    %v2123 = vsub.f32 %v2115, %v2122
    %v2124 = vmul.f32 %v2123, 1.442695
    %v2125 = vpow.pop %v2124
    %v2126 = vsel %vm388, %v2125, 0.0
    %2127 = vadd.xlane.f32.xlu0 %v2126
    %v2128 = vpop.xlane.xlu0 %2127
    %v2129 = vrcp.pop %v2128
    %v2130 = vmul.f32 %v2125, %v2129
    %v2131 = vpack.c.bf16 %v2130, %v2130
    %v2133 = vsel %vm388, %v2131, 0
    %v2136 = vsel %vm404, %v2073, 0
    %2138 = vmatprep.subr.bf16.mxu0 0
    %2139 = vmatpush1.bf16.msra.mxu0 %v2136
    %2140 = vmatprep.subr.bf16.mxu0 0
    %2141 = vmatpush1.bf16.msra.mxu0 0
    %2142 = vmatprep.subr.bf16.mxu0 0
    %2143 = vmatpush1.bf16.msra.mxu0 0
    %2144 = vmatprep.subr.bf16.mxu0 0
    %2145 = vmatpush1.bf16.msra.mxu0 0
    %2146 = vmatprep.subr.bf16.mxu0 0
    %2147 = vmatpush1.bf16.msra.mxu0 0
    %2148 = vmatprep.subr.bf16.mxu0 0
    %2149 = vmatpush1.bf16.msra.mxu0 0
    %2150 = vmatprep.subr.bf16.mxu0 0
    %2151 = vmatpush1.bf16.msra.mxu0 0
    %2152 = vmatprep.subr.bf16.mxu0 0
    %2153 = vmatpush1.bf16.msra.mxu0 0
    %2154 = vmatprep.subr.bf16.mxu0 0
    %2155 = vmatpush1.bf16.msra.mxu0 0
    %2156 = vmatprep.subr.bf16.mxu0 0
    %2157 = vmatpush1.bf16.msra.mxu0 0
    %2158 = vmatprep.subr.bf16.mxu0 0
    %2159 = vmatpush1.bf16.msra.mxu0 0
    %2160 = vmatprep.subr.bf16.mxu0 0
    %2161 = vmatpush1.bf16.msra.mxu0 0
    %2162 = vmatprep.subr.bf16.mxu0 0
    %2163 = vmatpush1.bf16.msra.mxu0 0
    %2164 = vmatprep.subr.bf16.mxu0 0
    %2165 = vmatpush1.bf16.msra.mxu0 0
    %2166 = vmatprep.subr.bf16.mxu0 0
    %2167 = vmatpush1.bf16.msra.mxu0 0
    %2168 = vmatprep.subr.bf16.mxu0 0
    %2169 = vmatpush1.bf16.msra.mxu0 0
    %2170 = vmatprep.mubr.bf16.mxu0 0
    %2171 = vmatmul.mubr.bf16.gmra.mrb[0].mxu0 %v2133
    %v2172 = vpop.f32.mrb[0].mxu0
    %v2173 = vadd.f32 0.0, %v2172
    %v2174 = vpop.f32.mrb[0].mxu0
    %v2175 = vpop.f32.mrb[0].mxu0
    %v2176 = vpop.f32.mrb[0].mxu0
    %2177 = vdwg.mxu0
    %s2178 = scalar_lea.vmem %s10, 24
    %v2179 = vld [vmem:[%s2178] sm:$0xf]
    %v2180 = vld [vmem:[%s2178 + $0x4] sm:$0xf]
    %v2181 = vpack.c.bf16 %v2173, %v2066
    %v2184 = vunpack.c.l.b16 %v2179
    %v2185 = vunpack.c.l.b16 %v2180
    %v2186 = vpack.c.b16 %v2185, %v2184
    %v2189 = vsel %vm341, %v2181, 0
    %2191 = vmatprep.subr.bf16.mxu0 0
    %2192 = vmatpush1.bf16.msra.mxu0 %v2186
    %2193 = vmatprep.subr.bf16.mxu0 0
    %2194 = vmatpush1.bf16.msra.mxu0 0
    %2195 = vmatprep.subr.bf16.mxu0 0
    %2196 = vmatpush1.bf16.msra.mxu0 0
    %2197 = vmatprep.subr.bf16.mxu0 0
    %2198 = vmatpush1.bf16.msra.mxu0 0
    %2199 = vmatprep.subr.bf16.mxu0 0
    %2200 = vmatpush1.bf16.msra.mxu0 0
    %2201 = vmatprep.subr.bf16.mxu0 0
    %2202 = vmatpush1.bf16.msra.mxu0 0
    %2203 = vmatprep.subr.bf16.mxu0 0
    %2204 = vmatpush1.bf16.msra.mxu0 0
    %2205 = vmatprep.subr.bf16.mxu0 0
    %2206 = vmatpush1.bf16.msra.mxu0 0
    %2207 = vmatprep.subr.bf16.mxu0 0
    %2208 = vmatpush1.bf16.msra.mxu0 0
    %2209 = vmatprep.subr.bf16.mxu0 0
    %2210 = vmatpush1.bf16.msra.mxu0 0
    %2211 = vmatprep.subr.bf16.mxu0 0
    %2212 = vmatpush1.bf16.msra.mxu0 0
    %2213 = vmatprep.subr.bf16.mxu0 0
    %2214 = vmatpush1.bf16.msra.mxu0 0
    %2215 = vmatprep.subr.bf16.mxu0 0
    %2216 = vmatpush1.bf16.msra.mxu0 0
    %2217 = vmatprep.subr.bf16.mxu0 0
    %2218 = vmatpush1.bf16.msra.mxu0 0
    %2219 = vmatprep.subr.bf16.mxu0 0
    %2220 = vmatpush1.bf16.msra.mxu0 0
    %2221 = vmatprep.subr.bf16.mxu0 0
    %2222 = vmatpush1.bf16.msra.mxu0 0
    %2223 = vmatprep.mubr.bf16.mxu0 0
    %2224 = vmatmul.mubr.bf16.gmra.mrb[0].mxu0 %v2189
    %v2225 = vpop.f32.mrb[0].mxu0
    %v2226 = vadd.f32 0.0, %v2225
    %v2227 = vpop.f32.mrb[0].mxu0
    %v2228 = vpop.f32.mrb[0].mxu0
    %v2229 = vadd.f32 0.0, %v2228
    %v2230 = vpop.f32.mrb[0].mxu0
    %2231 = vdwg.mxu0
    %v2234 = vunpack.c.l.b16 %v1763
    %v2235 = vunpack.c.l.b16 %v1764
    %v2236 = vpack.c.b16 %v2235, %v2234
    %v2239 = vsel %vm341, %v1765, 0
    %2241 = vmatprep.subr.bf16.mxu0 0
    %2242 = vmatpush1.bf16.msra.mxu0 %v2236
    %2243 = vmatprep.subr.bf16.mxu0 0
    %2244 = vmatpush1.bf16.msra.mxu0 0
    %2245 = vmatprep.subr.bf16.mxu0 0
    %2246 = vmatpush1.bf16.msra.mxu0 0
    %2247 = vmatprep.subr.bf16.mxu0 0
    %2248 = vmatpush1.bf16.msra.mxu0 0
    %2249 = vmatprep.subr.bf16.mxu0 0
    %2250 = vmatpush1.bf16.msra.mxu0 0
    %2251 = vmatprep.subr.bf16.mxu0 0
    %2252 = vmatpush1.bf16.msra.mxu0 0
    %2253 = vmatprep.subr.bf16.mxu0 0
    %2254 = vmatpush1.bf16.msra.mxu0 0
    %2255 = vmatprep.subr.bf16.mxu0 0
    %2256 = vmatpush1.bf16.msra.mxu0 0
    %2257 = vmatprep.subr.bf16.mxu0 0
    %2258 = vmatpush1.bf16.msra.mxu0 0
    %2259 = vmatprep.subr.bf16.mxu0 0
    %2260 = vmatpush1.bf16.msra.mxu0 0
    %2261 = vmatprep.subr.bf16.mxu0 0
    %2262 = vmatpush1.bf16.msra.mxu0 0
    %2263 = vmatprep.subr.bf16.mxu0 0
    %2264 = vmatpush1.bf16.msra.mxu0 0
    %2265 = vmatprep.subr.bf16.mxu0 0
    %2266 = vmatpush1.bf16.msra.mxu0 0
    %2267 = vmatprep.subr.bf16.mxu0 0
    %2268 = vmatpush1.bf16.msra.mxu0 0
    %2269 = vmatprep.subr.bf16.mxu0 0
    %2270 = vmatpush1.bf16.msra.mxu0 0
    %2271 = vmatprep.subr.bf16.mxu0 0
    %2272 = vmatpush1.bf16.msra.mxu0 0
    %2273 = vmatprep.mubr.bf16.mxu0 0
    %2274 = vmatmul.mubr.bf16.gmra.mrb[0].mxu0 %v2239
    %v2275 = vpop.f32.mrb[0].mxu0
    %v2276 = vadd.f32 %v2226, %v2275
    %v2277 = vpop.f32.mrb[0].mxu0
    %v2278 = vpop.f32.mrb[0].mxu0
    %v2279 = vadd.f32 %v2229, %v2278
    %v2280 = vpop.f32.mrb[0].mxu0
    %2281 = vdwg.mxu0
    %s2282 = scalar_lea.vmem %s11, 1
    %v2283 = vld [vmem:[%s2282] sm:$0x1]
    %v2285 = vlaneseq
    %v2286 = vshrl.u32 %v2285, 7
    %v2287 = vsub.s32 0, %v2286
    %v2288 = vrot.slane %v2283, %v2287
    %v2290 = vadd.f32 %v2276, %v2288
    %v2291 = vadd.f32 %v2279, %v2288
    %v2292 = vadd.f32 %v2290, %v1344
    %v2293 = vadd.f32 %v2291, %v1345
    %s2294 = scalar_lea.vmem %s12, 1
    %v2295 = vld [vmem:[%s2294] sm:$0x1]
    %s2296 = scalar_lea.vmem %s13, 1
    %v2297 = vld [vmem:[%s2296] sm:$0x1]
    %v2298 = vsel %vm83, %v2292, 0.0
    %2299 = vadd.xlane.f32.xlu0 %v2298
    %v2300 = vpop.xlane.xlu0 %2299
    %v2301 = vsel %vm83, %v2293, 0.0
    %2302 = vadd.xlane.f32.xlu0 %v2301
    %v2303 = vpop.xlane.xlu0 %2302
    %v2304 = vmul.f32 %v2300, %v90
    %v2305 = vmul.f32 %v2303, %v90
    %v2306 = vsub.f32 %v2292, %v2304
    %v2307 = vsub.f32 %v2293, %v2305
    %v2308 = vmul.f32 %v2306, %v2306
    %v2309 = vmul.f32 %v2307, %v2307
    %v2310 = vsel %vm83, %v2308, 0.0
    %2311 = vadd.xlane.f32.xlu0 %v2310
    %v2312 = vpop.xlane.xlu0 %2311
    %v2313 = vsel %vm83, %v2309, 0.0
    %2314 = vadd.xlane.f32.xlu0 %v2313
    %v2315 = vpop.xlane.xlu0 %2314
    %v2316 = vmul.f32 %v2312, %v90
    %v2317 = vmul.f32 %v2315, %v90
    %v2318 = vadd.f32 %v2316, 1e-12
    %v2319 = vadd.f32 %v2317, 1e-12
    %v2320 = vrsqrt.pop %v2318
    %v2321 = vrsqrt.pop %v2319
    %v2322 = vmul.f32 %v2306, %v2320
    %v2323 = vmul.f32 %v2307, %v2321
    %v2325 = vlaneseq
    %v2326 = vshrl.u32 %v2325, 7
    %v2327 = vsub.s32 0, %v2326
    %v2328 = vrot.slane %v2295, %v2327
    %v2330 = vmul.f32 %v2322, %v2328
    %v2331 = vmul.f32 %v2323, %v2328
    %v2333 = vlaneseq
    %v2334 = vshrl.u32 %v2333, 7
    %v2335 = vsub.s32 0, %v2334
    %v2336 = vrot.slane %v2297, %v2335
    %v2338 = vadd.f32 %v2330, %v2336
    %v2339 = vadd.f32 %v2331, %v2336
    %s2340 = scalar_lea.vmem %s14, 16
    %v2341 = vld [vmem:[%s2340] sm:$0xf]
    %v2342 = vld [vmem:[%s2340 + $0x4] sm:$0xf]
    %v2343 = vld [vmem:[%s2340 + $0x8] sm:$0xf]
    %v2344 = vld [vmem:[%s2340 + $0xc] sm:$0xf]
    %v2345 = vpack.c.bf16 %v2339, %v2338
    %s2346 = scalar_lea.vmem %s15, 1
    %v2347 = vld [vmem:[%s2346] sm:$0x1]
    %v2349 = vlaneseq
    %v2350 = vshrl.u32 %v2349, 7
    %v2351 = vsub.s32 0, %v2350
    %v2352 = vrot.slane %v2347, %v2351
    %v2358 = vunpack.c.l.b16 %v2341
    %v2359 = vunpack.c.l.b16 %v2342
    %v2360 = vunpack.c.l.b16 %v2343
    %v2361 = vunpack.c.l.b16 %v2344
    %v2362 = vpack.c.b16 %v2359, %v2358
    %v2363 = vpack.c.b16 %v2361, %v2360
    %v2367 = vsel %vm83, %v2345, 0
    %2369 = vmatprep.subr.bf16.mxu0 0
    %2370 = vmatpush1.bf16.msra.mxu0 %v2362
    %2371 = vmatprep.subr.bf16.mxu0 0
    %2372 = vmatpush1.bf16.msra.mxu0 %v2363
    %2373 = vmatprep.subr.bf16.mxu0 0
    %2374 = vmatpush1.bf16.msra.mxu0 0
    %2375 = vmatprep.subr.bf16.mxu0 0
    %2376 = vmatpush1.bf16.msra.mxu0 0
    %2377 = vmatprep.subr.bf16.mxu0 0
    %2378 = vmatpush1.bf16.msra.mxu0 0
    %2379 = vmatprep.subr.bf16.mxu0 0
    %2380 = vmatpush1.bf16.msra.mxu0 0
    %2381 = vmatprep.subr.bf16.mxu0 0
    %2382 = vmatpush1.bf16.msra.mxu0 0
    %2383 = vmatprep.subr.bf16.mxu0 0
    %2384 = vmatpush1.bf16.msra.mxu0 0
    %2385 = vmatprep.subr.bf16.mxu0 0
    %2386 = vmatpush1.bf16.msra.mxu0 0
    %2387 = vmatprep.subr.bf16.mxu0 0
    %2388 = vmatpush1.bf16.msra.mxu0 0
    %2389 = vmatprep.subr.bf16.mxu0 0
    %2390 = vmatpush1.bf16.msra.mxu0 0
    %2391 = vmatprep.subr.bf16.mxu0 0
    %2392 = vmatpush1.bf16.msra.mxu0 0
    %2393 = vmatprep.subr.bf16.mxu0 0
    %2394 = vmatpush1.bf16.msra.mxu0 0
    %2395 = vmatprep.subr.bf16.mxu0 0
    %2396 = vmatpush1.bf16.msra.mxu0 0
    %2397 = vmatprep.subr.bf16.mxu0 0
    %2398 = vmatpush1.bf16.msra.mxu0 0
    %2399 = vmatprep.subr.bf16.mxu0 0
    %2400 = vmatpush1.bf16.msra.mxu0 0
    %2401 = vmatprep.mubr.bf16.mxu0 0
    %2402 = vmatmul.mubr.bf16.gmra.mrb[0].mxu0 %v2367
    %v2403 = vpop.f32.mrb[0].mxu0
    %v2404 = vadd.f32 %v2352, %v2403
    %v2405 = vpop.f32.mrb[0].mxu0
    %v2406 = vpop.f32.mrb[0].mxu0
    %v2407 = vadd.f32 %v2352, %v2406
    %v2408 = vpop.f32.mrb[0].mxu0
    %2409 = vdwg.mxu0
    %v2410 = vmul.f32 %v2404, 0.5
    %v2411 = vmul.f32 %v2407, 0.5
    %v2412 = vmul.f32 %v2404, 0.044715
    %v2413 = vmul.f32 %v2407, 0.044715
    %v2414 = vmul.f32 %v2412, %v2404
    %v2415 = vmul.f32 %v2413, %v2407
    %v2416 = vmul.f32 %v2414, %v2404
    %v2417 = vmul.f32 %v2415, %v2407
    %v2418 = vadd.f32 %v2404, %v2416
    %v2419 = vadd.f32 %v2407, %v2417
    %v2420 = vmul.f32 %v2418, 0.7978846
    %v2421 = vmul.f32 %v2419, 0.7978846
    %v2422 = vtanh.pop %v2420
    %v2423 = vtanh.pop %v2421
    %v2424 = vadd.f32 %v2422, 1.0
    %v2425 = vadd.f32 %v2423, 1.0
    %v2426 = vmul.f32 %v2410, %v2424
    %v2427 = vmul.f32 %v2411, %v2425
    %s2428 = scalar_lea.vmem %s16, 32
    %v2429 = vld [vmem:[%s2428] sm:$0xf]
    %v2430 = vld [vmem:[%s2428 + $0x4] sm:$0xf]
    %v2431 = vld [vmem:[%s2428 + $0x8] sm:$0xf]
    %v2432 = vld [vmem:[%s2428 + $0xc] sm:$0xf]
    %v2433 = vld [vmem:[%s2428 + $0x10] sm:$0xf]
    %v2434 = vld [vmem:[%s2428 + $0x14] sm:$0xf]
    %v2435 = vld [vmem:[%s2428 + $0x18] sm:$0xf]
    %v2436 = vld [vmem:[%s2428 + $0x1c] sm:$0xf]
    %v2437 = vpack.c.bf16 %v2427, %v2426
    %s2438 = scalar_lea.vmem %s17, 1
    %v2439 = vld [vmem:[%s2438] sm:$0x1]
    %v2441 = vlaneseq
    %v2442 = vshrl.u32 %v2441, 7
    %v2443 = vsub.s32 0, %v2442
    %v2444 = vrot.slane %v2439, %v2443
    %v2454 = vunpack.c.l.b16 %v2429
    %v2455 = vunpack.c.l.b16 %v2430
    %v2456 = vunpack.c.l.b16 %v2431
    %v2457 = vunpack.c.l.b16 %v2432
    %v2458 = vunpack.c.l.b16 %v2433
    %v2459 = vunpack.c.l.b16 %v2434
    %v2460 = vunpack.c.l.b16 %v2435
    %v2461 = vunpack.c.l.b16 %v2436
    %v2462 = vpack.c.b16 %v2455, %v2454
    %v2463 = vpack.c.b16 %v2457, %v2456
    %v2464 = vpack.c.b16 %v2459, %v2458
    %v2465 = vpack.c.b16 %v2461, %v2460
    %v2471 = vsel %vm1255, %v2437, 0
    %2473 = vmatprep.subr.bf16.mxu0 0
    %2474 = vmatpush1.bf16.msra.mxu0 %v2462
    %2475 = vmatprep.subr.bf16.mxu0 0
    %2476 = vmatpush1.bf16.msra.mxu0 %v2463
    %2477 = vmatprep.subr.bf16.mxu0 0
    %2478 = vmatpush1.bf16.msra.mxu0 %v2464
    %2479 = vmatprep.subr.bf16.mxu0 0
    %2480 = vmatpush1.bf16.msra.mxu0 %v2465
    %2481 = vmatprep.subr.bf16.mxu0 0
    %2482 = vmatpush1.bf16.msra.mxu0 0
    %2483 = vmatprep.subr.bf16.mxu0 0
    %2484 = vmatpush1.bf16.msra.mxu0 0
    %2485 = vmatprep.subr.bf16.mxu0 0
    %2486 = vmatpush1.bf16.msra.mxu0 0
    %2487 = vmatprep.subr.bf16.mxu0 0
    %2488 = vmatpush1.bf16.msra.mxu0 0
    %2489 = vmatprep.subr.bf16.mxu0 0
    %2490 = vmatpush1.bf16.msra.mxu0 0
    %2491 = vmatprep.subr.bf16.mxu0 0
    %2492 = vmatpush1.bf16.msra.mxu0 0
    %2493 = vmatprep.subr.bf16.mxu0 0
    %2494 = vmatpush1.bf16.msra.mxu0 0
    %2495 = vmatprep.subr.bf16.mxu0 0
    %2496 = vmatpush1.bf16.msra.mxu0 0
    %2497 = vmatprep.subr.bf16.mxu0 0
    %2498 = vmatpush1.bf16.msra.mxu0 0
    %2499 = vmatprep.subr.bf16.mxu0 0
    %2500 = vmatpush1.bf16.msra.mxu0 0
    %2501 = vmatprep.subr.bf16.mxu0 0
    %2502 = vmatpush1.bf16.msra.mxu0 0
    %2503 = vmatprep.subr.bf16.mxu0 0
    %2504 = vmatpush1.bf16.msra.mxu0 0
    %2505 = vmatprep.mubr.bf16.mxu0 0
    %2506 = vmatmul.mubr.bf16.gmra.mrb[0].mxu0 %v2471
    %v2507 = vpop.f32.mrb[0].mxu0
    %v2508 = vadd.f32 %v2444, %v2507
    %v2509 = vpop.f32.mrb[0].mxu0
    %v2510 = vpop.f32.mrb[0].mxu0
    %v2511 = vadd.f32 %v2444, %v2510
    %v2512 = vpop.f32.mrb[0].mxu0
    %2513 = vdwg.mxu0
    %v2514 = vadd.f32 %v2508, %v2338
    %v2515 = vadd.f32 %v2511, %v2339
    %s2516 = scalar_lea.vmem %s18, 1
    %v2517 = vld [vmem:[%s2516] sm:$0x1]
    %s2518 = scalar_lea.vmem %s19, 1
    %v2519 = vld [vmem:[%s2518] sm:$0x1]
    %v2520 = vsel %vm83, %v2514, 0.0
    %2521 = vadd.xlane.f32.xlu0 %v2520
    %v2522 = vpop.xlane.xlu0 %2521
    %v2523 = vsel %vm83, %v2515, 0.0
    %2524 = vadd.xlane.f32.xlu0 %v2523
    %v2525 = vpop.xlane.xlu0 %2524
    %v2526 = vmul.f32 %v2522, %v90
    %v2527 = vmul.f32 %v2525, %v90
    %v2528 = vsub.f32 %v2514, %v2526
    %v2529 = vsub.f32 %v2515, %v2527
    %v2530 = vmul.f32 %v2528, %v2528
    %v2531 = vmul.f32 %v2529, %v2529
    %v2532 = vsel %vm83, %v2530, 0.0
    %2533 = vadd.xlane.f32.xlu0 %v2532
    %v2534 = vpop.xlane.xlu0 %2533
    %v2535 = vsel %vm83, %v2531, 0.0
    %2536 = vadd.xlane.f32.xlu0 %v2535
    %v2537 = vpop.xlane.xlu0 %2536
    %v2538 = vmul.f32 %v2534, %v90
    %v2539 = vmul.f32 %v2537, %v90
    %v2540 = vadd.f32 %v2538, 1e-12
    %v2541 = vadd.f32 %v2539, 1e-12
    %v2542 = vrsqrt.pop %v2540
    %v2543 = vrsqrt.pop %v2541
    %v2544 = vmul.f32 %v2528, %v2542
    %v2545 = vmul.f32 %v2529, %v2543
    %v2547 = vlaneseq
    %v2548 = vshrl.u32 %v2547, 7
    %v2549 = vsub.s32 0, %v2548
    %v2550 = vrot.slane %v2517, %v2549
    %v2552 = vmul.f32 %v2544, %v2550
    %v2553 = vmul.f32 %v2545, %v2550
    %v2555 = vlaneseq
    %v2556 = vshrl.u32 %v2555, 7
    %v2557 = vsub.s32 0, %v2556
    %v2558 = vrot.slane %v2519, %v2557
    %v2560 = vadd.f32 %v2552, %v2558
    %v2561 = vadd.f32 %v2553, %v2558
    %v2562 = vld [vmem:[%s20] sm:$0xf]
    %v2563 = vld [vmem:[%s20 + $0x4] sm:$0xf]
    %v2564 = vld [vmem:[%s20 + $0x8] sm:$0xf]
    %v2565 = vld [vmem:[%s20 + $0xc] sm:$0xf]
    %v2566 = vpack.c.bf16 %v2561, %v2560
    %v2567 = vld [vmem:[%s21] sm:$0x1]
    %v2569 = vlaneseq
    %v2570 = vshrl.u32 %v2569, 7
    %v2571 = vsub.s32 0, %v2570
    %v2572 = vrot.slane %v2567, %v2571
    %v2578 = vunpack.c.l.b16 %v2562
    %v2579 = vunpack.c.l.b16 %v2563
    %v2580 = vunpack.c.l.b16 %v2564
    %v2581 = vunpack.c.l.b16 %v2565
    %v2582 = vpack.c.b16 %v2579, %v2578
    %v2583 = vpack.c.b16 %v2581, %v2580
    %v2587 = vsel %vm83, %v2566, 0
    %2589 = vmatprep.subr.bf16.mxu0 0
    %2590 = vmatpush1.bf16.msra.mxu0 %v2582
    %2591 = vmatprep.subr.bf16.mxu0 0
    %2592 = vmatpush1.bf16.msra.mxu0 %v2583
    %2593 = vmatprep.subr.bf16.mxu0 0
    %2594 = vmatpush1.bf16.msra.mxu0 0
    %2595 = vmatprep.subr.bf16.mxu0 0
    %2596 = vmatpush1.bf16.msra.mxu0 0
    %2597 = vmatprep.subr.bf16.mxu0 0
    %2598 = vmatpush1.bf16.msra.mxu0 0
    %2599 = vmatprep.subr.bf16.mxu0 0
    %2600 = vmatpush1.bf16.msra.mxu0 0
    %2601 = vmatprep.subr.bf16.mxu0 0
    %2602 = vmatpush1.bf16.msra.mxu0 0
    %2603 = vmatprep.subr.bf16.mxu0 0
    %2604 = vmatpush1.bf16.msra.mxu0 0
    %2605 = vmatprep.subr.bf16.mxu0 0
    %2606 = vmatpush1.bf16.msra.mxu0 0
    %2607 = vmatprep.subr.bf16.mxu0 0
    %2608 = vmatpush1.bf16.msra.mxu0 0
    %2609 = vmatprep.subr.bf16.mxu0 0
    %2610 = vmatpush1.bf16.msra.mxu0 0
    %2611 = vmatprep.subr.bf16.mxu0 0
    %2612 = vmatpush1.bf16.msra.mxu0 0
    %2613 = vmatprep.subr.bf16.mxu0 0
    %2614 = vmatpush1.bf16.msra.mxu0 0
    %2615 = vmatprep.subr.bf16.mxu0 0
    %2616 = vmatpush1.bf16.msra.mxu0 0
    %2617 = vmatprep.subr.bf16.mxu0 0
    %2618 = vmatpush1.bf16.msra.mxu0 0
    %2619 = vmatprep.subr.bf16.mxu0 0
    %2620 = vmatpush1.bf16.msra.mxu0 0
    %2621 = vmatprep.mubr.bf16.mxu0 0
    %2622 = vmatmul.mubr.bf16.gmra.mrb[0].mxu0 %v2587
    %v2623 = vpop.f32.mrb[0].mxu0
    %v2624 = vadd.f32 %v2572, %v2623
    %v2625 = vpop.f32.mrb[0].mxu0
    %v2626 = vpop.f32.mrb[0].mxu0
    %v2627 = vadd.f32 %v2572, %v2626
    %v2628 = vpop.f32.mrb[0].mxu0
    %2629 = vdwg.mxu0
    %v2630 = vtanh.pop %v2624
    %v2631 = vtanh.pop %v2627
    %v2632 = vld [vmem:[%s22] sm:$0xf]
    %v2633 = vld [vmem:[%s22 + $0x4] sm:$0xf]
    %v2634 = vld [vmem:[%s22 + $0x8] sm:$0xf]
    %v2635 = vld [vmem:[%s22 + $0xc] sm:$0xf]
    %v2636 = vpack.c.bf16 %v2631, %v2630
    %v2637 = vld [vmem:[%s23] sm:$0x1]
    %v2639 = vlaneseq
    %v2640 = vshrl.u32 %v2639, 7
    %v2641 = vsub.s32 0, %v2640
    %v2642 = vrot.slane %v2637, %v2641
    %v2648 = vunpack.c.l.b16 %v2632
    %v2649 = vunpack.c.l.b16 %v2633
    %v2650 = vunpack.c.l.b16 %v2634
    %v2651 = vunpack.c.l.b16 %v2635
    %v2652 = vpack.c.b16 %v2649, %v2648
    %v2653 = vpack.c.b16 %v2651, %v2650
    %v2657 = vsel %vm83, %v2636, 0
    %2659 = vmatprep.subr.bf16.mxu0 0
    %2660 = vmatpush1.bf16.msra.mxu0 %v2652
    %2661 = vmatprep.subr.bf16.mxu0 0
    %2662 = vmatpush1.bf16.msra.mxu0 %v2653
    %2663 = vmatprep.subr.bf16.mxu0 0
    %2664 = vmatpush1.bf16.msra.mxu0 0
    %2665 = vmatprep.subr.bf16.mxu0 0
    %2666 = vmatpush1.bf16.msra.mxu0 0
    %2667 = vmatprep.subr.bf16.mxu0 0
    %2668 = vmatpush1.bf16.msra.mxu0 0
    %2669 = vmatprep.subr.bf16.mxu0 0
    %2670 = vmatpush1.bf16.msra.mxu0 0
    %2671 = vmatprep.subr.bf16.mxu0 0
    %2672 = vmatpush1.bf16.msra.mxu0 0
    %2673 = vmatprep.subr.bf16.mxu0 0
    %2674 = vmatpush1.bf16.msra.mxu0 0
    %2675 = vmatprep.subr.bf16.mxu0 0
    %2676 = vmatpush1.bf16.msra.mxu0 0
    %2677 = vmatprep.subr.bf16.mxu0 0
    %2678 = vmatpush1.bf16.msra.mxu0 0
    %2679 = vmatprep.subr.bf16.mxu0 0
    %2680 = vmatpush1.bf16.msra.mxu0 0
    %2681 = vmatprep.subr.bf16.mxu0 0
    %2682 = vmatpush1.bf16.msra.mxu0 0
    %2683 = vmatprep.subr.bf16.mxu0 0
    %2684 = vmatpush1.bf16.msra.mxu0 0
    %2685 = vmatprep.subr.bf16.mxu0 0
    %2686 = vmatpush1.bf16.msra.mxu0 0
    %2687 = vmatprep.subr.bf16.mxu0 0
    %2688 = vmatpush1.bf16.msra.mxu0 0
    %2689 = vmatprep.subr.bf16.mxu0 0
    %2690 = vmatpush1.bf16.msra.mxu0 0
    %2691 = vmatprep.mubr.bf16.mxu0 0
    %2692 = vmatmul.mubr.bf16.gmra.mrb[0].mxu0 %v2657
    %v2693 = vpop.f32.mrb[0].mxu0
    %v2694 = vadd.f32 %v2642, %v2693
    %v2695 = vpop.f32.mrb[0].mxu0
    %v2696 = vpop.f32.mrb[0].mxu0
    %v2697 = vadd.f32 %v2642, %v2696
    %v2698 = vpop.f32.mrb[0].mxu0
    %2699 = vdwg.mxu0
    %2700 = vst [vmem:[#allocation2] sm:$0xff] %v2694
    %2701 = vst [vmem:[#allocation2 + $0x8] sm:$0xff] %v2697
    // Predicated region
    $region98: #{tpu_custom_call.1} parent=1 // pred_check
      _
    $region99: #{tpu_custom_call.1} parent=1 // pred_check_branch
      %2703 = sbr.rel (0) target = $region101
    $region100: #{tpu_custom_call.1} parent=1 // pred_region
      %s2705 = ssub.s32 256, 256
      %2706 = vsyncadd [#allocation3], %s2705
      %s2707 = sshll.u32 [#allocation2], 4
      %s2708 = int_to_ptr.vmem [resolvable:$true] %s2707
      %2713 = dma.vmem_to_hbm [thread:$0]  %s2708, 256, %s24, [#allocation3], 128, 128, 8
    $region101: #{tpu_custom_call.1} parent=1 // pred_fallthru
      _
    // Predicated region
    $region102: #{tpu_custom_call.1} parent=1 // pred_check
      _
    $region103: #{tpu_custom_call.1} parent=1 // pred_check_branch
      %2715 = sbr.rel (0) target = $region105
    $region104: #{tpu_custom_call.1} parent=1 // pred_region
      %2716 = dma.done [#allocation3], 256
    $region105: #{tpu_custom_call.1} parent=1 // pred_fallthru
      _
    %2717 = vsyncpa [#allocation3], 1

</llo_original>
